<compile_context>
chip_gen: v5e
topology: v5e:2x2
jax: 0.10.0
libtpu: 0.0.40
codegen_flags: <defaults>
</compile_context>

<pallas_src>
import jax
import jax.numpy as jnp
from jax.experimental import pallas as pl
from jax.experimental.pallas import tpu as pltpu


# --------------------------------------------------------------------------
# Kernel factory: fused (upsampled-x, skip) -> conv1 -> conv2 for one image
# --------------------------------------------------------------------------
def _make_decoder_kernel(H2, W2, S, base, L, Cin, Cskip, Cout):
    Ctot = Cin + Cskip

    def kernel(xup_ref, skip_ref, mask_ref, w1_ref, b1_ref, w2_ref, b2_ref,
               o_ref, buf1_ref, buf2_ref):
        # ---- stage conv1 input: zero padding, channel concat, cast to bf16 --
        buf1_ref[...] = jnp.zeros_like(buf1_ref)
        buf1_ref[0:Cin, pl.ds(base, S)] = xup_ref[...]                    # bf16
        buf1_ref[Cin:Ctot, pl.ds(base, S)] = skip_ref[...].astype(jnp.bfloat16)

        mask_l = mask_ref[0:1, :]   # (1, S) f32: zeros where ox == 0
        mask_r = mask_ref[1:2, :]   # (1, S) f32: zeros where ox == W2 - 1

        def conv3x3(buf_ref, w_ref, b_ref):
            # accumulator pre-loaded with the folded-BN bias (f32, lane-dense)
            acc = jnp.broadcast_to(b_ref[...], (Cout, S)).astype(jnp.float32)
            for dx in range(3):
                contrib = None
                for dy in range(3):
                    # lane-shifted view of the flat zero-padded image
                    start = base + (dy - 1) * W2 + (dx - 1)
                    patch = buf_ref[:, pl.ds(start, S)]           # (C, S) bf16
                    d = jnp.dot(w_ref[dy, dx], patch,
                                preferred_element_type=jnp.float32)
                    contrib = d if contrib is None else contrib + d
                # cancel the left/right row wrap-around of the flat layout
                if dx == 0:
                    contrib = contrib * mask_l
                elif dx == 2:
                    contrib = contrib * mask_r
                acc = acc + contrib
            return acc

        # ---- conv1 + BN + ReLU (intermediate stays in VMEM) -----------------
        h1 = jnp.maximum(conv3x3(buf1_ref, w1_ref, b1_ref), 0.0)

        # ---- stage conv2 input --------------------------------------------
        buf2_ref[...] = jnp.zeros_like(buf2_ref)
        buf2_ref[:, pl.ds(base, S)] = h1.astype(jnp.bfloat16)

        # ---- conv2 + BN + ReLU -> single lane-dense (Cout, S) store --------
        o_ref[...] = jnp.maximum(conv3x3(buf2_ref, w2_ref, b2_ref),
                                 0.0).astype(o_ref.dtype)

    return kernel


# --------------------------------------------------------------------------
# DecoderBlock forward (thin wrapper + one fused Pallas call)
# --------------------------------------------------------------------------
def decoder_block_forward(x_nchw, skip_nchw, params):
    N, Cin, H, W = x_nchw.shape
    _, Cskip, H2, W2 = skip_nchw.shape
    assert H2 == 2 * H and W2 == 2 * W
    Cout = params["w1"].shape[-1]
    Ctot = Cin + Cskip
    S = H2 * W2

    # flat padded-buffer geometry: base >= W2 + 1, rounded to a lane multiple
    base = -(-(W2 + 1) // 128) * 128
    L = 2 * base + S

    # glue: nearest 2x upsample (bf16) + free reshapes to flat spatial (NCHW)
    xup = x_nchw.astype(jnp.bfloat16)
    xup = jnp.repeat(jnp.repeat(xup, 2, axis=2), 2, axis=3).reshape(N, Cin, S)
    skip_flat = skip_nchw.reshape(N, Cskip, S)          # cast to bf16 in-kernel

    # weights: HWIO -> (3, 3, Cout, Cin_total) bf16; biases (Cout, 1) f32
    w1 = jnp.transpose(params["w1"], (0, 1, 3, 2)).astype(jnp.bfloat16)
    w2 = jnp.transpose(params["w2"], (0, 1, 3, 2)).astype(jnp.bfloat16)
    b1 = params["b1"].reshape(Cout, 1).astype(jnp.float32)
    b2 = params["b2"].reshape(Cout, 1).astype(jnp.float32)

    # border masks (constant, folded by XLA): kill wrapped left/right taps
    col = jnp.arange(S, dtype=jnp.int32) % W2
    masks = jnp.stack([(col != 0), (col != W2 - 1)]).astype(jnp.float32)  # (2,S)

    kernel = _make_decoder_kernel(H2, W2, S, base, L, Cin, Cskip, Cout)

    flops = 2 * 9 * S * (Ctot * Cout + Cout * Cout) * N
    bytes_accessed = (xup.size * 2 + skip_flat.size * 4 + masks.size * 4
                      + w1.size * 2 + w2.size * 2 + b1.size * 4 + b2.size * 4
                      + N * Cout * S * 4)

    out = pl.pallas_call(
        kernel,
        out_shape=jax.ShapeDtypeStruct((N, Cout, S), jnp.float32),
        grid=(N,),
        in_specs=[
            pl.BlockSpec((None, Cin, S), lambda n: (n, 0, 0)),
            pl.BlockSpec((None, Cskip, S), lambda n: (n, 0, 0)),
            pl.BlockSpec((2, S), lambda n: (0, 0)),
            pl.BlockSpec((3, 3, Cout, Ctot), lambda n: (0, 0, 0, 0)),
            pl.BlockSpec((Cout, 1), lambda n: (0, 0)),
            pl.BlockSpec((3, 3, Cout, Cout), lambda n: (0, 0, 0, 0)),
            pl.BlockSpec((Cout, 1), lambda n: (0, 0)),
        ],
        out_specs=pl.BlockSpec((None, Cout, S), lambda n: (n, 0, 0)),
        scratch_shapes=[
            pltpu.VMEM((Ctot, L), jnp.bfloat16),   # flat padded conv1 input
            pltpu.VMEM((Cout, L), jnp.bfloat16),   # flat padded conv2 input
        ],
        compiler_params=pltpu.CompilerParams(
            dimension_semantics=("parallel",),
            vmem_limit_bytes=32 * 1024 * 1024,
        ),
        cost_estimate=pl.CostEstimate(
            flops=flops, transcendentals=0, bytes_accessed=bytes_accessed),
    )(xup, skip_flat, masks, w1, b1, w2, b2)

    return out.reshape(N, Cout, H2, W2)   # free trailing-dim reshape (NCHW)


# --------------------------------------------------------------------------
# Deterministic synthetic parameters (Conv2d bias=False + BatchNorm folded)
# --------------------------------------------------------------------------
def make_folded_conv_bn_params(key, cin, cout):
    k1, k2, k3, k4, k5 = jax.random.split(key, 5)
    w = 0.05 * jax.random.normal(k1, (3, 3, cin, cout), jnp.float32)  # HWIO
    gamma = 1.0 + 0.1 * jax.random.normal(k2, (cout,), jnp.float32)
    beta = 0.1 * jax.random.normal(k3, (cout,), jnp.float32)
    run_mean = 0.1 * jax.random.normal(k4, (cout,), jnp.float32)
    run_var = jnp.abs(jax.random.normal(k5, (cout,), jnp.float32)) + 0.5
    eps = 1e-5
    scale = gamma / jnp.sqrt(run_var + eps)
    return w * scale, beta - run_mean * scale


# --------------------------------------------------------------------------
# Reference (plain JAX, mirrors the kernel's bf16 rounding) for correctness
# --------------------------------------------------------------------------
def _conv_ref(h, w_hwio, bias):
    w = w_hwio.astype(jnp.bfloat16).astype(jnp.float32)
    out = jax.lax.conv_general_dilated(
        h, w, window_strides=(1, 1), padding="SAME",
        dimension_numbers=("NCHW", "HWIO", "NCHW"),
        precision=jax.lax.Precision.HIGHEST)
    return jnp.maximum(out + bias.reshape(1, -1, 1, 1), 0.0)


def _decoder_ref(x_nchw, skip_nchw, params):
    f32 = jnp.float32
    xb = x_nchw.astype(jnp.bfloat16).astype(f32)
    xup = jnp.repeat(jnp.repeat(xb, 2, axis=2), 2, axis=3)
    sb = skip_nchw.astype(jnp.bfloat16).astype(f32)
    h = jnp.concatenate([xup, sb], axis=1)
    h = _conv_ref(h, params["w1"], params["b1"])
    h = h.astype(jnp.bfloat16).astype(f32)
    h = _conv_ref(h, params["w2"], params["b2"])
    return h


if __name__ == "__main__":
    key = jax.random.PRNGKey(0)
    kx, ks, kp1, kp2 = jax.random.split(key, 4)

    # Small shapes consistent with the last Unet decoder stage (out_ch=16)
    N, Cin, Cskip, Cout = 2, 16, 16, 16
    H = W = 16  # x spatial; skip is 2x (32x32) to match the upsampled x

    x = jax.random.normal(kx, (N, Cin, H, W), jnp.float32)               # NCHW
    skip = jax.random.normal(ks, (N, Cskip, 2 * H, 2 * W), jnp.float32)

    w1, b1 = make_folded_conv_bn_params(kp1, Cin + Cskip, Cout)
    w2, b2 = make_folded_conv_bn_params(kp2, Cout, Cout)
    params = {"w1": w1, "b1": b1, "w2": w2, "b2": b2}

    out = jax.jit(decoder_block_forward)(x, skip, params)
    out = jax.block_until_ready(out)
    assert out.shape == (N, Cout, 2 * H, 2 * W), out.shape

    ref = jax.block_until_ready(_decoder_ref(x, skip, params))
    err = float(jnp.max(jnp.abs(out - ref)))
    assert jnp.allclose(out, ref, atol=2e-3, rtol=2e-3), err

    print("KERNEL_OK")
</pallas_src>

<mosaic_0001>
module attributes {stable_mosaic.version = 11 : i64} {
  func.func @kernel(%arg0: i32, %arg1: memref<1x16x1024xbf16, #tpu.memory_space<vmem>>, %arg2: memref<1x16x1024xf32, #tpu.memory_space<vmem>>, %arg3: memref<2x1024xf32, #tpu.memory_space<vmem>>, %arg4: memref<3x3x16x32xbf16, #tpu.memory_space<vmem>>, %arg5: memref<16x1xf32, #tpu.memory_space<vmem>>, %arg6: memref<3x3x16x16xbf16, #tpu.memory_space<vmem>>, %arg7: memref<16x1xf32, #tpu.memory_space<vmem>>, %arg8: memref<1x16x1024xf32, #tpu.memory_space<vmem>>, %arg9: memref<32x1280xbf16, #tpu.memory_space<vmem>>, %arg10: memref<16x1280xbf16, #tpu.memory_space<vmem>>) attributes {dimension_semantics = [#tpu.dimension_semantics<parallel>], iteration_bounds = array<i64: 2>, scalar_prefetch = 0 : i64, scratch_operands = 2 : i64, tpu.core_type = #tpu.core_type<tc>, window_params = [{transform_indices = @transform_0, window_bounds = array<i64: 1, 16, 1024>}, {transform_indices = @transform_1, window_bounds = array<i64: 1, 16, 1024>}, {pipeline_mode = #tpu.pipeline_mode<synchronous>, transform_indices = @transform_2, window_bounds = array<i64: 2, 1024>}, {pipeline_mode = #tpu.pipeline_mode<synchronous>, transform_indices = @transform_3, window_bounds = array<i64: 3, 3, 16, 32>}, {pipeline_mode = #tpu.pipeline_mode<synchronous>, transform_indices = @transform_4, window_bounds = array<i64: 16, 1>}, {pipeline_mode = #tpu.pipeline_mode<synchronous>, transform_indices = @transform_5, window_bounds = array<i64: 3, 3, 16, 16>}, {pipeline_mode = #tpu.pipeline_mode<synchronous>, transform_indices = @transform_6, window_bounds = array<i64: 16, 1>}, {transform_indices = @transform_7, window_bounds = array<i64: 1, 16, 1024>}]} {
    %cst = arith.constant 0.000000e+00 : bf16
    %0 = vector.broadcast %cst : bf16 to vector<32x1280xbf16>
    %c0 = arith.constant 0 : index
    %c0_0 = arith.constant 0 : index
    %1 = vector.load %arg9[%c0, %c0_0] : memref<32x1280xbf16, #tpu.memory_space<vmem>>, vector<32x1280xbf16>
    tpu.vector_store %arg9[%c0, %c0_0], %0 {strides = array<i32>} : memref<32x1280xbf16, #tpu.memory_space<vmem>>, vector<32x1280xbf16>,
    %c0_1 = arith.constant 0 : index
    %c0_2 = arith.constant 0 : index
    %c0_3 = arith.constant 0 : index
    %2 = vector.load %arg1[%c0_1, %c0_2, %c0_3] : memref<1x16x1024xbf16, #tpu.memory_space<vmem>>, vector<1x16x1024xbf16>
    %3 = vector.shape_cast %2 : vector<1x16x1024xbf16> to vector<16x1024xbf16>
    %c0_4 = arith.constant 0 : index
    %c128 = arith.constant 128 : index
    %4 = vector.load %arg9[%c0_4, %c128] : memref<32x1280xbf16, #tpu.memory_space<vmem>>, vector<16x1024xbf16>
    tpu.vector_store %arg9[%c0_4, %c128], %3 {strides = array<i32>} : memref<32x1280xbf16, #tpu.memory_space<vmem>>, vector<16x1024xbf16>,
    %c0_5 = arith.constant 0 : index
    %c0_6 = arith.constant 0 : index
    %c0_7 = arith.constant 0 : index
    %5 = vector.load %arg2[%c0_5, %c0_6, %c0_7] : memref<1x16x1024xf32, #tpu.memory_space<vmem>>, vector<1x16x1024xf32>
    %6 = vector.shape_cast %5 : vector<1x16x1024xf32> to vector<16x1024xf32>
    %7 = arith.truncf %6 : vector<16x1024xf32> to vector<16x1024xbf16>
    %c16 = arith.constant 16 : index
    %c128_8 = arith.constant 128 : index
    %8 = vector.load %arg9[%c16, %c128_8] : memref<32x1280xbf16, #tpu.memory_space<vmem>>, vector<16x1024xbf16>
    tpu.vector_store %arg9[%c16, %c128_8], %7 {strides = array<i32>} : memref<32x1280xbf16, #tpu.memory_space<vmem>>, vector<16x1024xbf16>,
    %c0_9 = arith.constant 0 : index
    %c0_10 = arith.constant 0 : index
    %9 = vector.load %arg3[%c0_9, %c0_10] : memref<2x1024xf32, #tpu.memory_space<vmem>>, vector<1x1024xf32>
    %c1 = arith.constant 1 : index
    %c0_11 = arith.constant 0 : index
    %10 = vector.load %arg3[%c1, %c0_11] : memref<2x1024xf32, #tpu.memory_space<vmem>>, vector<1x1024xf32>
    %c0_12 = arith.constant 0 : index
    %c0_13 = arith.constant 0 : index
    %11 = vector.load %arg5[%c0_12, %c0_13] : memref<16x1xf32, #tpu.memory_space<vmem>>, vector<16x1xf32>
    %12 = vector.shape_cast %11 : vector<16x1xf32> to vector<16x1xf32>
    %13 = vector.broadcast %12 : vector<16x1xf32> to vector<16x1024xf32>
    %c0_14 = arith.constant 0 : index
    %c95 = arith.constant 95 : index
    %14 = vector.load %arg9[%c0_14, %c95] : memref<32x1280xbf16, #tpu.memory_space<vmem>>, vector<32x1024xbf16>
    %c0_15 = arith.constant 0 : index
    %c0_16 = arith.constant 0 : index
    %c0_17 = arith.constant 0 : index
    %c0_18 = arith.constant 0 : index
    %15 = vector.load %arg4[%c0_15, %c0_16, %c0_17, %c0_18] : memref<3x3x16x32xbf16, #tpu.memory_space<vmem>>, vector<1x1x16x32xbf16>
    %16 = vector.shape_cast %15 : vector<1x1x16x32xbf16> to vector<16x32xbf16>
    %cst_19 = arith.constant dense<0.000000e+00> : vector<16x1024xf32>
    %17 = tpu.matmul %16, %14, %cst_19 {dimension_numbers = #tpu.dot_dimension_numbers<[1], [0], [0], [1], [0, 0, 1, 1], [], []>} : vector<16x32xbf16>, vector<32x1024xbf16>, vector<16x1024xf32> -> vector<16x1024xf32>
    %c0_20 = arith.constant 0 : index
    %c127 = arith.constant 127 : index
    %18 = vector.load %arg9[%c0_20, %c127] : memref<32x1280xbf16, #tpu.memory_space<vmem>>, vector<32x1024xbf16>
    %c1_21 = arith.constant 1 : index
    %c0_22 = arith.constant 0 : index
    %c0_23 = arith.constant 0 : index
    %c0_24 = arith.constant 0 : index
    %19 = vector.load %arg4[%c1_21, %c0_22, %c0_23, %c0_24] : memref<3x3x16x32xbf16, #tpu.memory_space<vmem>>, vector<1x1x16x32xbf16>
    %20 = vector.shape_cast %19 : vector<1x1x16x32xbf16> to vector<16x32xbf16>
    %cst_25 = arith.constant dense<0.000000e+00> : vector<16x1024xf32>
    %21 = tpu.matmul %20, %18, %cst_25 {dimension_numbers = #tpu.dot_dimension_numbers<[1], [0], [0], [1], [0, 0, 1, 1], [], []>} : vector<16x32xbf16>, vector<32x1024xbf16>, vector<16x1024xf32> -> vector<16x1024xf32>
    %22 = arith.addf %17, %21 : vector<16x1024xf32>
    %c0_26 = arith.constant 0 : index
    %c159 = arith.constant 159 : index
    %23 = vector.load %arg9[%c0_26, %c159] : memref<32x1280xbf16, #tpu.memory_space<vmem>>, vector<32x1024xbf16>
    %c2 = arith.constant 2 : index
    %c0_27 = arith.constant 0 : index
    %c0_28 = arith.constant 0 : index
    %c0_29 = arith.constant 0 : index
    %24 = vector.load %arg4[%c2, %c0_27, %c0_28, %c0_29] : memref<3x3x16x32xbf16, #tpu.memory_space<vmem>>, vector<1x1x16x32xbf16>
    %25 = vector.shape_cast %24 : vector<1x1x16x32xbf16> to vector<16x32xbf16>
    %cst_30 = arith.constant dense<0.000000e+00> : vector<16x1024xf32>
    %26 = tpu.matmul %25, %23, %cst_30 {dimension_numbers = #tpu.dot_dimension_numbers<[1], [0], [0], [1], [0, 0, 1, 1], [], []>} : vector<16x32xbf16>, vector<32x1024xbf16>, vector<16x1024xf32> -> vector<16x1024xf32>
    %27 = arith.addf %22, %26 : vector<16x1024xf32>
    %28 = vector.broadcast %9 : vector<1x1024xf32> to vector<16x1024xf32>
    %29 = arith.mulf %27, %28 : vector<16x1024xf32>
    %30 = arith.addf %13, %29 : vector<16x1024xf32>
    %c0_31 = arith.constant 0 : index
    %c96 = arith.constant 96 : index
    %31 = vector.load %arg9[%c0_31, %c96] : memref<32x1280xbf16, #tpu.memory_space<vmem>>, vector<32x1024xbf16>
    %c0_32 = arith.constant 0 : index
    %c1_33 = arith.constant 1 : index
    %c0_34 = arith.constant 0 : index
    %c0_35 = arith.constant 0 : index
    %32 = vector.load %arg4[%c0_32, %c1_33, %c0_34, %c0_35] : memref<3x3x16x32xbf16, #tpu.memory_space<vmem>>, vector<1x1x16x32xbf16>
    %33 = vector.shape_cast %32 : vector<1x1x16x32xbf16> to vector<16x32xbf16>
    %cst_36 = arith.constant dense<0.000000e+00> : vector<16x1024xf32>
    %34 = tpu.matmul %33, %31, %cst_36 {dimension_numbers = #tpu.dot_dimension_numbers<[1], [0], [0], [1], [0, 0, 1, 1], [], []>} : vector<16x32xbf16>, vector<32x1024xbf16>, vector<16x1024xf32> -> vector<16x1024xf32>
    %c0_37 = arith.constant 0 : index
    %c128_38 = arith.constant 128 : index
    %35 = vector.load %arg9[%c0_37, %c128_38] : memref<32x1280xbf16, #tpu.memory_space<vmem>>, vector<32x1024xbf16>
    %c1_39 = arith.constant 1 : index
    %c1_40 = arith.constant 1 : index
    %c0_41 = arith.constant 0 : index
    %c0_42 = arith.constant 0 : index
    %36 = vector.load %arg4[%c1_39, %c1_40, %c0_41, %c0_42] : memref<3x3x16x32xbf16, #tpu.memory_space<vmem>>, vector<1x1x16x32xbf16>
    %37 = vector.shape_cast %36 : vector<1x1x16x32xbf16> to vector<16x32xbf16>
    %cst_43 = arith.constant dense<0.000000e+00> : vector<16x1024xf32>
    %38 = tpu.matmul %37, %35, %cst_43 {dimension_numbers = #tpu.dot_dimension_numbers<[1], [0], [0], [1], [0, 0, 1, 1], [], []>} : vector<16x32xbf16>, vector<32x1024xbf16>, vector<16x1024xf32> -> vector<16x1024xf32>
    %39 = arith.addf %34, %38 : vector<16x1024xf32>
    %c0_44 = arith.constant 0 : index
    %c160 = arith.constant 160 : index
    %40 = vector.load %arg9[%c0_44, %c160] : memref<32x1280xbf16, #tpu.memory_space<vmem>>, vector<32x1024xbf16>
    %c2_45 = arith.constant 2 : index
    %c1_46 = arith.constant 1 : index
    %c0_47 = arith.constant 0 : index
    %c0_48 = arith.constant 0 : index
    %41 = vector.load %arg4[%c2_45, %c1_46, %c0_47, %c0_48] : memref<3x3x16x32xbf16, #tpu.memory_space<vmem>>, vector<1x1x16x32xbf16>
    %42 = vector.shape_cast %41 : vector<1x1x16x32xbf16> to vector<16x32xbf16>
    %cst_49 = arith.constant dense<0.000000e+00> : vector<16x1024xf32>
    %43 = tpu.matmul %42, %40, %cst_49 {dimension_numbers = #tpu.dot_dimension_numbers<[1], [0], [0], [1], [0, 0, 1, 1], [], []>} : vector<16x32xbf16>, vector<32x1024xbf16>, vector<16x1024xf32> -> vector<16x1024xf32>
    %44 = arith.addf %39, %43 : vector<16x1024xf32>
    %45 = arith.addf %30, %44 : vector<16x1024xf32>
    %c0_50 = arith.constant 0 : index
    %c97 = arith.constant 97 : index
    %46 = vector.load %arg9[%c0_50, %c97] : memref<32x1280xbf16, #tpu.memory_space<vmem>>, vector<32x1024xbf16>
    %c0_51 = arith.constant 0 : index
    %c2_52 = arith.constant 2 : index
    %c0_53 = arith.constant 0 : index
    %c0_54 = arith.constant 0 : index
    %47 = vector.load %arg4[%c0_51, %c2_52, %c0_53, %c0_54] : memref<3x3x16x32xbf16, #tpu.memory_space<vmem>>, vector<1x1x16x32xbf16>
    %48 = vector.shape_cast %47 : vector<1x1x16x32xbf16> to vector<16x32xbf16>
    %cst_55 = arith.constant dense<0.000000e+00> : vector<16x1024xf32>
    %49 = tpu.matmul %48, %46, %cst_55 {dimension_numbers = #tpu.dot_dimension_numbers<[1], [0], [0], [1], [0, 0, 1, 1], [], []>} : vector<16x32xbf16>, vector<32x1024xbf16>, vector<16x1024xf32> -> vector<16x1024xf32>
    %c0_56 = arith.constant 0 : index
    %c129 = arith.constant 129 : index
    %50 = vector.load %arg9[%c0_56, %c129] : memref<32x1280xbf16, #tpu.memory_space<vmem>>, vector<32x1024xbf16>
    %c1_57 = arith.constant 1 : index
    %c2_58 = arith.constant 2 : index
    %c0_59 = arith.constant 0 : index
    %c0_60 = arith.constant 0 : index
    %51 = vector.load %arg4[%c1_57, %c2_58, %c0_59, %c0_60] : memref<3x3x16x32xbf16, #tpu.memory_space<vmem>>, vector<1x1x16x32xbf16>
    %52 = vector.shape_cast %51 : vector<1x1x16x32xbf16> to vector<16x32xbf16>
    %cst_61 = arith.constant dense<0.000000e+00> : vector<16x1024xf32>
    %53 = tpu.matmul %52, %50, %cst_61 {dimension_numbers = #tpu.dot_dimension_numbers<[1], [0], [0], [1], [0, 0, 1, 1], [], []>} : vector<16x32xbf16>, vector<32x1024xbf16>, vector<16x1024xf32> -> vector<16x1024xf32>
    %54 = arith.addf %49, %53 : vector<16x1024xf32>
    %c0_62 = arith.constant 0 : index
    %c161 = arith.constant 161 : index
    %55 = vector.load %arg9[%c0_62, %c161] : memref<32x1280xbf16, #tpu.memory_space<vmem>>, vector<32x1024xbf16>
    %c2_63 = arith.constant 2 : index
    %c2_64 = arith.constant 2 : index
    %c0_65 = arith.constant 0 : index
    %c0_66 = arith.constant 0 : index
    %56 = vector.load %arg4[%c2_63, %c2_64, %c0_65, %c0_66] : memref<3x3x16x32xbf16, #tpu.memory_space<vmem>>, vector<1x1x16x32xbf16>
    %57 = vector.shape_cast %56 : vector<1x1x16x32xbf16> to vector<16x32xbf16>
    %cst_67 = arith.constant dense<0.000000e+00> : vector<16x1024xf32>
    %58 = tpu.matmul %57, %55, %cst_67 {dimension_numbers = #tpu.dot_dimension_numbers<[1], [0], [0], [1], [0, 0, 1, 1], [], []>} : vector<16x32xbf16>, vector<32x1024xbf16>, vector<16x1024xf32> -> vector<16x1024xf32>
    %59 = arith.addf %54, %58 : vector<16x1024xf32>
    %60 = vector.broadcast %10 : vector<1x1024xf32> to vector<16x1024xf32>
    %61 = arith.mulf %59, %60 : vector<16x1024xf32>
    %62 = arith.addf %45, %61 : vector<16x1024xf32>
    %cst_68 = arith.constant 0.000000e+00 : f32
    %63 = vector.broadcast %cst_68 : f32 to vector<16x1024xf32>
    %64 = arith.maximumf %62, %63 : vector<16x1024xf32>
    %cst_69 = arith.constant 0.000000e+00 : bf16
    %65 = vector.broadcast %cst_69 : bf16 to vector<16x1280xbf16>
    %c0_70 = arith.constant 0 : index
    %c0_71 = arith.constant 0 : index
    %66 = vector.load %arg10[%c0_70, %c0_71] : memref<16x1280xbf16, #tpu.memory_space<vmem>>, vector<16x1280xbf16>
    tpu.vector_store %arg10[%c0_70, %c0_71], %65 {strides = array<i32>} : memref<16x1280xbf16, #tpu.memory_space<vmem>>, vector<16x1280xbf16>,
    %67 = arith.truncf %64 : vector<16x1024xf32> to vector<16x1024xbf16>
    %c0_72 = arith.constant 0 : index
    %c128_73 = arith.constant 128 : index
    %68 = vector.load %arg10[%c0_72, %c128_73] : memref<16x1280xbf16, #tpu.memory_space<vmem>>, vector<16x1024xbf16>
    tpu.vector_store %arg10[%c0_72, %c128_73], %67 {strides = array<i32>} : memref<16x1280xbf16, #tpu.memory_space<vmem>>, vector<16x1024xbf16>,
    %c0_74 = arith.constant 0 : index
    %c0_75 = arith.constant 0 : index
    %69 = vector.load %arg7[%c0_74, %c0_75] : memref<16x1xf32, #tpu.memory_space<vmem>>, vector<16x1xf32>
    %70 = vector.shape_cast %69 : vector<16x1xf32> to vector<16x1xf32>
    %71 = vector.broadcast %70 : vector<16x1xf32> to vector<16x1024xf32>
    %c0_76 = arith.constant 0 : index
    %c95_77 = arith.constant 95 : index
    %72 = vector.load %arg10[%c0_76, %c95_77] : memref<16x1280xbf16, #tpu.memory_space<vmem>>, vector<16x1024xbf16>
    %c0_78 = arith.constant 0 : index
    %c0_79 = arith.constant 0 : index
    %c0_80 = arith.constant 0 : index
    %c0_81 = arith.constant 0 : index
    %73 = vector.load %arg6[%c0_78, %c0_79, %c0_80, %c0_81] : memref<3x3x16x16xbf16, #tpu.memory_space<vmem>>, vector<1x1x16x16xbf16>
    %74 = vector.shape_cast %73 : vector<1x1x16x16xbf16> to vector<16x16xbf16>
    %cst_82 = arith.constant dense<0.000000e+00> : vector<16x1024xf32>
    %75 = tpu.matmul %74, %72, %cst_82 {dimension_numbers = #tpu.dot_dimension_numbers<[1], [0], [0], [1], [0, 0, 1, 1], [], []>} : vector<16x16xbf16>, vector<16x1024xbf16>, vector<16x1024xf32> -> vector<16x1024xf32>
    %c0_83 = arith.constant 0 : index
    %c127_84 = arith.constant 127 : index
    %76 = vector.load %arg10[%c0_83, %c127_84] : memref<16x1280xbf16, #tpu.memory_space<vmem>>, vector<16x1024xbf16>
    %c1_85 = arith.constant 1 : index
    %c0_86 = arith.constant 0 : index
    %c0_87 = arith.constant 0 : index
    %c0_88 = arith.constant 0 : index
    %77 = vector.load %arg6[%c1_85, %c0_86, %c0_87, %c0_88] : memref<3x3x16x16xbf16, #tpu.memory_space<vmem>>, vector<1x1x16x16xbf16>
    %78 = vector.shape_cast %77 : vector<1x1x16x16xbf16> to vector<16x16xbf16>
    %cst_89 = arith.constant dense<0.000000e+00> : vector<16x1024xf32>
    %79 = tpu.matmul %78, %76, %cst_89 {dimension_numbers = #tpu.dot_dimension_numbers<[1], [0], [0], [1], [0, 0, 1, 1], [], []>} : vector<16x16xbf16>, vector<16x1024xbf16>, vector<16x1024xf32> -> vector<16x1024xf32>
    %80 = arith.addf %75, %79 : vector<16x1024xf32>
    %c0_90 = arith.constant 0 : index
    %c159_91 = arith.constant 159 : index
    %81 = vector.load %arg10[%c0_90, %c159_91] : memref<16x1280xbf16, #tpu.memory_space<vmem>>, vector<16x1024xbf16>
    %c2_92 = arith.constant 2 : index
    %c0_93 = arith.constant 0 : index
    %c0_94 = arith.constant 0 : index
    %c0_95 = arith.constant 0 : index
    %82 = vector.load %arg6[%c2_92, %c0_93, %c0_94, %c0_95] : memref<3x3x16x16xbf16, #tpu.memory_space<vmem>>, vector<1x1x16x16xbf16>
    %83 = vector.shape_cast %82 : vector<1x1x16x16xbf16> to vector<16x16xbf16>
    %cst_96 = arith.constant dense<0.000000e+00> : vector<16x1024xf32>
    %84 = tpu.matmul %83, %81, %cst_96 {dimension_numbers = #tpu.dot_dimension_numbers<[1], [0], [0], [1], [0, 0, 1, 1], [], []>} : vector<16x16xbf16>, vector<16x1024xbf16>, vector<16x1024xf32> -> vector<16x1024xf32>
    %85 = arith.addf %80, %84 : vector<16x1024xf32>
    %86 = vector.broadcast %9 : vector<1x1024xf32> to vector<16x1024xf32>
    %87 = arith.mulf %85, %86 : vector<16x1024xf32>
    %88 = arith.addf %71, %87 : vector<16x1024xf32>
    %c0_97 = arith.constant 0 : index
    %c96_98 = arith.constant 96 : index
    %89 = vector.load %arg10[%c0_97, %c96_98] : memref<16x1280xbf16, #tpu.memory_space<vmem>>, vector<16x1024xbf16>
    %c0_99 = arith.constant 0 : index
    %c1_100 = arith.constant 1 : index
    %c0_101 = arith.constant 0 : index
    %c0_102 = arith.constant 0 : index
    %90 = vector.load %arg6[%c0_99, %c1_100, %c0_101, %c0_102] : memref<3x3x16x16xbf16, #tpu.memory_space<vmem>>, vector<1x1x16x16xbf16>
    %91 = vector.shape_cast %90 : vector<1x1x16x16xbf16> to vector<16x16xbf16>
    %cst_103 = arith.constant dense<0.000000e+00> : vector<16x1024xf32>
    %92 = tpu.matmul %91, %89, %cst_103 {dimension_numbers = #tpu.dot_dimension_numbers<[1], [0], [0], [1], [0, 0, 1, 1], [], []>} : vector<16x16xbf16>, vector<16x1024xbf16>, vector<16x1024xf32> -> vector<16x1024xf32>
    %c0_104 = arith.constant 0 : index
    %c128_105 = arith.constant 128 : index
    %93 = vector.load %arg10[%c0_104, %c128_105] : memref<16x1280xbf16, #tpu.memory_space<vmem>>, vector<16x1024xbf16>
    %c1_106 = arith.constant 1 : index
    %c1_107 = arith.constant 1 : index
    %c0_108 = arith.constant 0 : index
    %c0_109 = arith.constant 0 : index
    %94 = vector.load %arg6[%c1_106, %c1_107, %c0_108, %c0_109] : memref<3x3x16x16xbf16, #tpu.memory_space<vmem>>, vector<1x1x16x16xbf16>
    %95 = vector.shape_cast %94 : vector<1x1x16x16xbf16> to vector<16x16xbf16>
    %cst_110 = arith.constant dense<0.000000e+00> : vector<16x1024xf32>
    %96 = tpu.matmul %95, %93, %cst_110 {dimension_numbers = #tpu.dot_dimension_numbers<[1], [0], [0], [1], [0, 0, 1, 1], [], []>} : vector<16x16xbf16>, vector<16x1024xbf16>, vector<16x1024xf32> -> vector<16x1024xf32>
    %97 = arith.addf %92, %96 : vector<16x1024xf32>
    %c0_111 = arith.constant 0 : index
    %c160_112 = arith.constant 160 : index
    %98 = vector.load %arg10[%c0_111, %c160_112] : memref<16x1280xbf16, #tpu.memory_space<vmem>>, vector<16x1024xbf16>
    %c2_113 = arith.constant 2 : index
    %c1_114 = arith.constant 1 : index
    %c0_115 = arith.constant 0 : index
    %c0_116 = arith.constant 0 : index
    %99 = vector.load %arg6[%c2_113, %c1_114, %c0_115, %c0_116] : memref<3x3x16x16xbf16, #tpu.memory_space<vmem>>, vector<1x1x16x16xbf16>
    %100 = vector.shape_cast %99 : vector<1x1x16x16xbf16> to vector<16x16xbf16>
    %cst_117 = arith.constant dense<0.000000e+00> : vector<16x1024xf32>
    %101 = tpu.matmul %100, %98, %cst_117 {dimension_numbers = #tpu.dot_dimension_numbers<[1], [0], [0], [1], [0, 0, 1, 1], [], []>} : vector<16x16xbf16>, vector<16x1024xbf16>, vector<16x1024xf32> -> vector<16x1024xf32>
    %102 = arith.addf %97, %101 : vector<16x1024xf32>
    %103 = arith.addf %88, %102 : vector<16x1024xf32>
    %c0_118 = arith.constant 0 : index
    %c97_119 = arith.constant 97 : index
    %104 = vector.load %arg10[%c0_118, %c97_119] : memref<16x1280xbf16, #tpu.memory_space<vmem>>, vector<16x1024xbf16>
    %c0_120 = arith.constant 0 : index
    %c2_121 = arith.constant 2 : index
    %c0_122 = arith.constant 0 : index
    %c0_123 = arith.constant 0 : index
    %105 = vector.load %arg6[%c0_120, %c2_121, %c0_122, %c0_123] : memref<3x3x16x16xbf16, #tpu.memory_space<vmem>>, vector<1x1x16x16xbf16>
    %106 = vector.shape_cast %105 : vector<1x1x16x16xbf16> to vector<16x16xbf16>
    %cst_124 = arith.constant dense<0.000000e+00> : vector<16x1024xf32>
    %107 = tpu.matmul %106, %104, %cst_124 {dimension_numbers = #tpu.dot_dimension_numbers<[1], [0], [0], [1], [0, 0, 1, 1], [], []>} : vector<16x16xbf16>, vector<16x1024xbf16>, vector<16x1024xf32> -> vector<16x1024xf32>
    %c0_125 = arith.constant 0 : index
    %c129_126 = arith.constant 129 : index
    %108 = vector.load %arg10[%c0_125, %c129_126] : memref<16x1280xbf16, #tpu.memory_space<vmem>>, vector<16x1024xbf16>
    %c1_127 = arith.constant 1 : index
    %c2_128 = arith.constant 2 : index
    %c0_129 = arith.constant 0 : index
    %c0_130 = arith.constant 0 : index
    %109 = vector.load %arg6[%c1_127, %c2_128, %c0_129, %c0_130] : memref<3x3x16x16xbf16, #tpu.memory_space<vmem>>, vector<1x1x16x16xbf16>
    %110 = vector.shape_cast %109 : vector<1x1x16x16xbf16> to vector<16x16xbf16>
    %cst_131 = arith.constant dense<0.000000e+00> : vector<16x1024xf32>
    %111 = tpu.matmul %110, %108, %cst_131 {dimension_numbers = #tpu.dot_dimension_numbers<[1], [0], [0], [1], [0, 0, 1, 1], [], []>} : vector<16x16xbf16>, vector<16x1024xbf16>, vector<16x1024xf32> -> vector<16x1024xf32>
    %112 = arith.addf %107, %111 : vector<16x1024xf32>
    %c0_132 = arith.constant 0 : index
    %c161_133 = arith.constant 161 : index
    %113 = vector.load %arg10[%c0_132, %c161_133] : memref<16x1280xbf16, #tpu.memory_space<vmem>>, vector<16x1024xbf16>
    %c2_134 = arith.constant 2 : index
    %c2_135 = arith.constant 2 : index
    %c0_136 = arith.constant 0 : index
    %c0_137 = arith.constant 0 : index
    %114 = vector.load %arg6[%c2_134, %c2_135, %c0_136, %c0_137] : memref<3x3x16x16xbf16, #tpu.memory_space<vmem>>, vector<1x1x16x16xbf16>
    %115 = vector.shape_cast %114 : vector<1x1x16x16xbf16> to vector<16x16xbf16>
    %cst_138 = arith.constant dense<0.000000e+00> : vector<16x1024xf32>
    %116 = tpu.matmul %115, %113, %cst_138 {dimension_numbers = #tpu.dot_dimension_numbers<[1], [0], [0], [1], [0, 0, 1, 1], [], []>} : vector<16x16xbf16>, vector<16x1024xbf16>, vector<16x1024xf32> -> vector<16x1024xf32>
    %117 = arith.addf %112, %116 : vector<16x1024xf32>
    %118 = vector.broadcast %10 : vector<1x1024xf32> to vector<16x1024xf32>
    %119 = arith.mulf %117, %118 : vector<16x1024xf32>
    %120 = arith.addf %103, %119 : vector<16x1024xf32>
    %cst_139 = arith.constant 0.000000e+00 : f32
    %121 = vector.broadcast %cst_139 : f32 to vector<16x1024xf32>
    %122 = arith.maximumf %120, %121 : vector<16x1024xf32>
    %c0_140 = arith.constant 0 : index
    %c0_141 = arith.constant 0 : index
    %c0_142 = arith.constant 0 : index
    %123 = vector.load %arg8[%c0_140, %c0_141, %c0_142] : memref<1x16x1024xf32, #tpu.memory_space<vmem>>, vector<1x16x1024xf32>
    %124 = vector.shape_cast %123 : vector<1x16x1024xf32> to vector<16x1024xf32>
    %125 = vector.shape_cast %122 : vector<16x1024xf32> to vector<1x16x1024xf32>
    tpu.vector_store %arg8[%c0_140, %c0_141, %c0_142], %125 {strides = array<i32>} : memref<1x16x1024xf32, #tpu.memory_space<vmem>>, vector<1x16x1024xf32>,
    return
  }
  func.func @transform_0(%arg0: i32) -> (i32, i32, i32) {
    %c0_i32 = arith.constant 0 : i32
    %c0_i32_0 = arith.constant 0 : i32
    %c0_i32_1 = arith.constant 0 : i32
    return %arg0, %c0_i32, %c0_i32_0 : i32, i32, i32
  }
  func.func @transform_1(%arg0: i32) -> (i32, i32, i32) {
    %c0_i32 = arith.constant 0 : i32
    %c0_i32_0 = arith.constant 0 : i32
    %c0_i32_1 = arith.constant 0 : i32
    return %arg0, %c0_i32, %c0_i32_0 : i32, i32, i32
  }
  func.func @transform_2(%arg0: i32) -> (i32, i32) {
    %c0_i32 = arith.constant 0 : i32
    %c0_i32_0 = arith.constant 0 : i32
    %c0_i32_1 = arith.constant 0 : i32
    return %c0_i32, %c0_i32_0 : i32, i32
  }
  func.func @transform_3(%arg0: i32) -> (i32, i32, i32, i32) {
    %c0_i32 = arith.constant 0 : i32
    %c0_i32_0 = arith.constant 0 : i32
    %c0_i32_1 = arith.constant 0 : i32
    %c0_i32_2 = arith.constant 0 : i32
    %c0_i32_3 = arith.constant 0 : i32
    return %c0_i32, %c0_i32_0, %c0_i32_1, %c0_i32_2 : i32, i32, i32, i32
  }
  func.func @transform_4(%arg0: i32) -> (i32, i32) {
    %c0_i32 = arith.constant 0 : i32
    %c0_i32_0 = arith.constant 0 : i32
    %c0_i32_1 = arith.constant 0 : i32
    return %c0_i32, %c0_i32_0 : i32, i32
  }
  func.func @transform_5(%arg0: i32) -> (i32, i32, i32, i32) {
    %c0_i32 = arith.constant 0 : i32
    %c0_i32_0 = arith.constant 0 : i32
    %c0_i32_1 = arith.constant 0 : i32
    %c0_i32_2 = arith.constant 0 : i32
    %c0_i32_3 = arith.constant 0 : i32
    return %c0_i32, %c0_i32_0, %c0_i32_1, %c0_i32_2 : i32, i32, i32, i32
  }
  func.func @transform_6(%arg0: i32) -> (i32, i32) {
    %c0_i32 = arith.constant 0 : i32
    %c0_i32_0 = arith.constant 0 : i32
    %c0_i32_1 = arith.constant 0 : i32
    return %c0_i32, %c0_i32_0 : i32, i32
  }
  func.func @transform_7(%arg0: i32) -> (i32, i32, i32) {
    %c0_i32 = arith.constant 0 : i32
    %c0_i32_0 = arith.constant 0 : i32
    %c0_i32_1 = arith.constant 0 : i32
    return %arg0, %c0_i32, %c0_i32_0 : i32, i32, i32
  }
}

</mosaic_0001>

<llo_original>
// kernel: decoder_block_forward.1
$region0: #{decoder_block_forward.1}
  #allocation0 [shape = 'u32[]', space=smem, size = 0x4, offset = 0x4, fixed_abs, tag = 'smem constant byte address 0x4 - core index']
  #allocation1 [shape = 'u32[72,128]{1,0:T(1,128)}', space=vmem, size = 0x9000, scoped, tag = 'internal scratch']
  #allocation2 [shape = 'bf16[32,1280]{1,0:T(8,128)(2,1)}', space=vmem, size = 0x14000, scoped, tag = 'scratch operand']
  #allocation3 [shape = 'bf16[16,1280]{1,0:T(8,128)(2,1)}', space=vmem, size = 0xa000, scoped, tag = 'scratch operand']
  %s0 = inlined_call_operand.vmem [shape: bf16[2,16,1024], index: 0, kind: input, shape index: {}]
  %s1 = inlined_call_operand.vmem [shape: f32[2,16,1024], index: 1, kind: input, shape index: {}]
  %s2 = inlined_call_operand.vmem [shape: f32[2,1024], index: 2, kind: input, shape index: {}]
  %s3 = inlined_call_operand.vmem [shape: bf16[3,3,16,32], index: 3, kind: input, shape index: {}]
  %s4 = inlined_call_operand.vmem [shape: f32[16,1], index: 4, kind: input, shape index: {}]
  %s5 = inlined_call_operand.vmem [shape: bf16[3,3,16,16], index: 5, kind: input, shape index: {}]
  %s6 = inlined_call_operand.vmem [shape: f32[16,1], index: 6, kind: input, shape index: {}]
  %s7 = inlined_call_operand.vmem [shape: f32[2,16,1024], index: 7, kind: output, shape index: {}]
  %s8 = sld [smem:[#allocation0]]
  $region61: #{decoder_block_forward.1} parent=0
    _
  %s10 = ssub.s32 1, %s8
  %s11 = scalar_select 0, %s10, %s8
  loop: start=0, step=1, limit=4
  $region2: #{decoder_block_forward.1} parent=0 // loop_pre_header
    _
  $region3: #{decoder_block_forward.1} parent=0 // loop_header
    %s13 = sphi 0, %s17
    %p14 = scmp.ge.s32.totalorder %s13, 4
    %s23 = sphi 0, %s25
    %s26 = sphi 0, %s23
    %s27 = sphi 0, %s26
    %s43 = sphi 0, %s27
    %s49 = sphi 0, %s51
    %s52 = sphi 0, %s49
    %s53 = sphi 0, %s52
    %s69 = sphi 0, %s53
    %s73 = sphi 0, %s73
    %s75 = sphi 0, %s73
    %s76 = sphi 0, %s75
    %s90 = sphi 0, %s76
    %s94 = sphi 0, %s94
    %s96 = sphi 0, %s94
    %s97 = sphi 0, %s96
    %s111 = sphi 0, %s97
    %s115 = sphi 0, %s115
    %s117 = sphi 0, %s115
    %s118 = sphi 0, %s117
    %s132 = sphi 0, %s118
    %s136 = sphi 0, %s136
    %s138 = sphi 0, %s136
    %s139 = sphi 0, %s138
    %s153 = sphi 0, %s139
    %s157 = sphi 0, %s157
    %s159 = sphi 0, %s157
    %s160 = sphi 0, %s159
    %s174 = sphi 0, %s160
    %s180 = sphi 0, %s182
    %s183 = sphi 0, %s180
    %s184 = sphi 0, %s183
    %s200 = sphi 0, %s184
  $region4: #{decoder_block_forward.1} parent=0 // loop_header_branch
    %16 = sbr.rel (%p14) target = $region8
  $region5: #{decoder_block_forward.1} parent=0 // loop_body
    %s18 = ssub.s32 %s13, 1
    %s19 = ssub.s32 %s13, 2
    %s20 = sadd.s32 %s13, 1
    %s21 = ssub.s32 %s13, %s20
    %p22 = scmp.eq.s32.totalorder %s21, 0
    %s24 = sadd.s32 %s23, 1
    %s25 = scalar_select %p22, %s23, %s24
    %p28 = pneg %p22
    %p29 = scmp.eq.s32.totalorder %s13, 1
    %p30 = por %p28, %p29
    %p31 = scmp.ne.s32.totalorder %s23, %s26
    %p32 = scmp.eq.s32.totalorder %s13, 0
    %p33 = por %p31, %p32
    %p34 = scmp.ne.s32.totalorder %s23, %s26
    %p35 = scmp.eq.s32.totalorder %s18, 1
    %p36 = por %p34, %p35
    %p37 = scmp.ne.s32.totalorder %s26, %s27
    %p38 = scmp.eq.s32.totalorder %s18, 0
    %p39 = por %p37, %p38
    %p40 = scmp.ne.s32.totalorder %s26, %s27
    %p41 = scmp.eq.s32.totalorder %s19, 1
    %p42 = por %p40, %p41
    %p44 = scmp.ne.s32.totalorder %s27, %s43
    %p45 = scmp.eq.s32.totalorder %s19, 0
    %p46 = por %p44, %p45
    %s47 = ssub.s32 %s13, %s20
    %p48 = scmp.eq.s32.totalorder %s47, 0
    %s50 = sadd.s32 %s49, 1
    %s51 = scalar_select %p48, %s49, %s50
    %p54 = pneg %p48
    %p55 = scmp.eq.s32.totalorder %s13, 1
    %p56 = por %p54, %p55
    %p57 = scmp.ne.s32.totalorder %s49, %s52
    %p58 = scmp.eq.s32.totalorder %s13, 0
    %p59 = por %p57, %p58
    %p60 = scmp.ne.s32.totalorder %s49, %s52
    %p61 = scmp.eq.s32.totalorder %s18, 1
    %p62 = por %p60, %p61
    %p63 = scmp.ne.s32.totalorder %s52, %s53
    %p64 = scmp.eq.s32.totalorder %s18, 0
    %p65 = por %p63, %p64
    %p66 = scmp.ne.s32.totalorder %s52, %s53
    %p67 = scmp.eq.s32.totalorder %s19, 1
    %p68 = por %p66, %p67
    %p70 = scmp.ne.s32.totalorder %s53, %s69
    %p71 = scmp.eq.s32.totalorder %s19, 0
    %p72 = por %p70, %p71
    %s74 = sadd.s32 %s73, 1
    %p77 = scmp.eq.s32.totalorder %s13, 1
    %p78 = scmp.ne.s32.totalorder %s73, %s75
    %p79 = scmp.eq.s32.totalorder %s13, 0
    %p80 = por %p78, %p79
    %p81 = scmp.ne.s32.totalorder %s73, %s75
    %p82 = scmp.eq.s32.totalorder %s18, 1
    %p83 = por %p81, %p82
    %p84 = scmp.ne.s32.totalorder %s75, %s76
    %p85 = scmp.eq.s32.totalorder %s18, 0
    %p86 = por %p84, %p85
    %p87 = scmp.ne.s32.totalorder %s75, %s76
    %p88 = scmp.eq.s32.totalorder %s19, 1
    %p89 = por %p87, %p88
    %p91 = scmp.ne.s32.totalorder %s76, %s90
    %p92 = scmp.eq.s32.totalorder %s19, 0
    %p93 = por %p91, %p92
    %s95 = sadd.s32 %s94, 1
    %p98 = scmp.eq.s32.totalorder %s13, 1
    %p99 = scmp.ne.s32.totalorder %s94, %s96
    %p100 = scmp.eq.s32.totalorder %s13, 0
    %p101 = por %p99, %p100
    %p102 = scmp.ne.s32.totalorder %s94, %s96
    %p103 = scmp.eq.s32.totalorder %s18, 1
    %p104 = por %p102, %p103
    %p105 = scmp.ne.s32.totalorder %s96, %s97
    %p106 = scmp.eq.s32.totalorder %s18, 0
    %p107 = por %p105, %p106
    %p108 = scmp.ne.s32.totalorder %s96, %s97
    %p109 = scmp.eq.s32.totalorder %s19, 1
    %p110 = por %p108, %p109
    %p112 = scmp.ne.s32.totalorder %s97, %s111
    %p113 = scmp.eq.s32.totalorder %s19, 0
    %p114 = por %p112, %p113
    %s116 = sadd.s32 %s115, 1
    %p119 = scmp.eq.s32.totalorder %s13, 1
    %p120 = scmp.ne.s32.totalorder %s115, %s117
    %p121 = scmp.eq.s32.totalorder %s13, 0
    %p122 = por %p120, %p121
    %p123 = scmp.ne.s32.totalorder %s115, %s117
    %p124 = scmp.eq.s32.totalorder %s18, 1
    %p125 = por %p123, %p124
    %p126 = scmp.ne.s32.totalorder %s117, %s118
    %p127 = scmp.eq.s32.totalorder %s18, 0
    %p128 = por %p126, %p127
    %p129 = scmp.ne.s32.totalorder %s117, %s118
    %p130 = scmp.eq.s32.totalorder %s19, 1
    %p131 = por %p129, %p130
    %p133 = scmp.ne.s32.totalorder %s118, %s132
    %p134 = scmp.eq.s32.totalorder %s19, 0
    %p135 = por %p133, %p134
    %s137 = sadd.s32 %s136, 1
    %p140 = scmp.eq.s32.totalorder %s13, 1
    %p141 = scmp.ne.s32.totalorder %s136, %s138
    %p142 = scmp.eq.s32.totalorder %s13, 0
    %p143 = por %p141, %p142
    %p144 = scmp.ne.s32.totalorder %s136, %s138
    %p145 = scmp.eq.s32.totalorder %s18, 1
    %p146 = por %p144, %p145
    %p147 = scmp.ne.s32.totalorder %s138, %s139
    %p148 = scmp.eq.s32.totalorder %s18, 0
    %p149 = por %p147, %p148
    %p150 = scmp.ne.s32.totalorder %s138, %s139
    %p151 = scmp.eq.s32.totalorder %s19, 1
    %p152 = por %p150, %p151
    %p154 = scmp.ne.s32.totalorder %s139, %s153
    %p155 = scmp.eq.s32.totalorder %s19, 0
    %p156 = por %p154, %p155
    %s158 = sadd.s32 %s157, 1
    %p161 = scmp.eq.s32.totalorder %s13, 1
    %p162 = scmp.ne.s32.totalorder %s157, %s159
    %p163 = scmp.eq.s32.totalorder %s13, 0
    %p164 = por %p162, %p163
    %p165 = scmp.ne.s32.totalorder %s157, %s159
    %p166 = scmp.eq.s32.totalorder %s18, 1
    %p167 = por %p165, %p166
    %p168 = scmp.ne.s32.totalorder %s159, %s160
    %p169 = scmp.eq.s32.totalorder %s18, 0
    %p170 = por %p168, %p169
    %p171 = scmp.ne.s32.totalorder %s159, %s160
    %p172 = scmp.eq.s32.totalorder %s19, 1
    %p173 = por %p171, %p172
    %p175 = scmp.ne.s32.totalorder %s160, %s174
    %p176 = scmp.eq.s32.totalorder %s19, 0
    %p177 = por %p175, %p176
    %s178 = ssub.s32 %s13, %s20
    %p179 = scmp.eq.s32.totalorder %s178, 0
    %s181 = sadd.s32 %s180, 1
    %s182 = scalar_select %p179, %s180, %s181
    %p185 = pneg %p179
    %p186 = scmp.eq.s32.totalorder %s13, 1
    %p187 = por %p185, %p186
    %p188 = scmp.ne.s32.totalorder %s180, %s183
    %p189 = scmp.eq.s32.totalorder %s13, 0
    %p190 = por %p188, %p189
    %p191 = scmp.ne.s32.totalorder %s180, %s183
    %p192 = scmp.eq.s32.totalorder %s18, 1
    %p193 = por %p191, %p192
    %p194 = scmp.ne.s32.totalorder %s183, %s184
    %p195 = scmp.eq.s32.totalorder %s18, 0
    %p196 = por %p194, %p195
    %p197 = scmp.ne.s32.totalorder %s183, %s184
    %p198 = scmp.eq.s32.totalorder %s19, 1
    %p199 = por %p197, %p198
    %p201 = scmp.ne.s32.totalorder %s184, %s200
    %p202 = scmp.eq.s32.totalorder %s19, 0
    %p203 = por %p201, %p202
    %p204 = scmp.le.s32.totalorder 1, %s13
    %p205 = scmp.lt.s32.totalorder %s13, 3
    %p206 = pnand %p204, %p205
    %p207 = pneg %p206
    // Predicated region
    $region9: #{decoder_block_forward.1} parent=5 // pred_check
      _
    $region10: #{decoder_block_forward.1} parent=5 // pred_check_branch
      %209 = sbr.rel (%p206) target = $region12
    $region11: #{decoder_block_forward.1} parent=5 // pred_region
      %s210 = ssub.s32 %s13, 1
      // Predicated region
      $region13: #{decoder_block_forward.1} parent=11 // pred_check
        %p211 = pneg %p86
      $region14: #{decoder_block_forward.1} parent=11 // pred_check_branch
        %213 = sbr.rel (%p211) target = $region16
      $region15: #{decoder_block_forward.1} parent=11 // pred_region
        _
      $region16: #{decoder_block_forward.1} parent=11 // pred_fallthru
        _
      // Predicated region
      $region17: #{decoder_block_forward.1} parent=11 // pred_check
        %p214 = pneg %p107
      $region18: #{decoder_block_forward.1} parent=11 // pred_check_branch
        %216 = sbr.rel (%p214) target = $region20
      $region19: #{decoder_block_forward.1} parent=11 // pred_region
        _
      $region20: #{decoder_block_forward.1} parent=11 // pred_fallthru
        _
      // Predicated region
      $region21: #{decoder_block_forward.1} parent=11 // pred_check
        %p217 = pneg %p128
      $region22: #{decoder_block_forward.1} parent=11 // pred_check_branch
        %219 = sbr.rel (%p217) target = $region24
      $region23: #{decoder_block_forward.1} parent=11 // pred_region
        _
      $region24: #{decoder_block_forward.1} parent=11 // pred_fallthru
        _
      // Predicated region
      $region25: #{decoder_block_forward.1} parent=11 // pred_check
        %p220 = pneg %p149
      $region26: #{decoder_block_forward.1} parent=11 // pred_check_branch
        %222 = sbr.rel (%p220) target = $region28
      $region27: #{decoder_block_forward.1} parent=11 // pred_region
        _
      $region28: #{decoder_block_forward.1} parent=11 // pred_fallthru
        _
      // Predicated region
      $region29: #{decoder_block_forward.1} parent=11 // pred_check
        %p223 = pneg %p170
      $region30: #{decoder_block_forward.1} parent=11 // pred_check_branch
        %225 = sbr.rel (%p223) target = $region32
      $region31: #{decoder_block_forward.1} parent=11 // pred_region
        _
      $region32: #{decoder_block_forward.1} parent=11 // pred_fallthru
        _
    $region12: #{decoder_block_forward.1} parent=5 // pred_fallthru
      _
    %p226 = scmp.lt.s32.totalorder %s13, 2
    // Predicated region
    $region33: #{decoder_block_forward.1} parent=5 // pred_check
      %p227 = pneg %p226
    $region34: #{decoder_block_forward.1} parent=5 // pred_check_branch
      %229 = sbr.rel (%p227) target = $region36
    $region35: #{decoder_block_forward.1} parent=5 // pred_region
      // Predicated region
      $region37: #{decoder_block_forward.1} parent=35 // pred_check
        %p230 = pneg %p33
      $region38: #{decoder_block_forward.1} parent=35 // pred_check_branch
        %232 = sbr.rel (%p230) target = $region40
      $region39: #{decoder_block_forward.1} parent=35 // pred_region
        %p233 = scmp.lt.s32.totalorder %s13, 1
        %s234 = scalar_select %p233, %s13, 1
        %s235 = smul.addr %s234, 16
        %s236 = smul.addr %s235, 4
        %s237 = scalar_lea.vmem %s0, %s236
      $region40: #{decoder_block_forward.1} parent=35 // pred_fallthru
        _
      // Predicated region
      $region41: #{decoder_block_forward.1} parent=35 // pred_check
        %p238 = pneg %p59
      $region42: #{decoder_block_forward.1} parent=35 // pred_check_branch
        %240 = sbr.rel (%p238) target = $region44
      $region43: #{decoder_block_forward.1} parent=35 // pred_region
        %p241 = scmp.lt.s32.totalorder %s13, 1
        %s242 = scalar_select %p241, %s13, 1
        %s243 = smul.addr %s242, 16
        %s244 = smul.addr %s243, 8
        %s245 = scalar_lea.vmem %s1, %s244
      $region44: #{decoder_block_forward.1} parent=35 // pred_fallthru
        _
    $region36: #{decoder_block_forward.1} parent=5 // pred_fallthru
      _
    %p246 = scmp.le.s32.totalorder 1, %s13
    %p247 = scmp.lt.s32.totalorder %s13, 3
    %p248 = pnand %p246, %p247
    %p249 = pneg %p248
    // Predicated region
    $region45: #{decoder_block_forward.1} parent=5 // pred_check
      _
    $region46: #{decoder_block_forward.1} parent=5 // pred_check_branch
      %251 = sbr.rel (%p248) target = $region48
    $region47: #{decoder_block_forward.1} parent=5 // pred_region
      %s252 = ssub.s32 %s13, 1
      %p253 = scmp.lt.s32.totalorder %s18, 1
      %s254 = scalar_select %p253, %s18, 1
      %s255 = smul.addr %s254, 16
      %s256 = smul.addr %s255, 4
      %s257 = scalar_lea.vmem %s0, %s256
      %p258 = pneg %p39
      %p259 = pneg %p36
      %p260 = scmp.lt.s32.totalorder %s18, 1
      %s261 = scalar_select %p260, %s18, 1
      %s262 = smul.addr %s261, 16
      %s263 = smul.addr %s262, 8
      %s264 = scalar_lea.vmem %s1, %s263
      %p265 = pneg %p65
      %p266 = pneg %p62
      %p267 = pneg %p86
      %p268 = pneg %p83
      %p269 = pneg %p107
      %p270 = pneg %p104
      %p271 = pneg %p128
      %p272 = pneg %p125
      %p273 = pneg %p149
      %p274 = pneg %p146
      %p275 = pneg %p170
      %p276 = pneg %p167
      %p277 = pneg %p196
      %p278 = pneg %p193
      %p279 = scmp.lt.s32.totalorder %s18, 1
      %s280 = scalar_select %p279, %s18, 1
      %s281 = smul.addr %s280, 16
      %s282 = smul.addr %s281, 8
      %s283 = scalar_lea.vmem %s7, %s282
      %p284 = scmp.lt.s32.totalorder %s18, 1
      %s285 = scalar_select %p284, %s18, 1
      %s286 = smul.addr %s285, 16
      %s287 = smul.addr %s286, 4
      %s288 = scalar_lea.vmem %s0, %s287
      %p289 = scmp.lt.s32.totalorder %s18, 1
      %s290 = scalar_select %p289, %s18, 1
      %s291 = smul.addr %s290, 16
      %s292 = smul.addr %s291, 8
      %s293 = scalar_lea.vmem %s1, %s292
      %p294 = scmp.lt.s32.totalorder %s18, 1
      %s295 = scalar_select %p294, %s18, 1
      %s296 = smul.addr %s295, 16
      %s297 = smul.addr %s296, 8
      %s298 = scalar_lea.vmem %s7, %s297
      %300 = vst [vmem:[#allocation2] sm:$0xff] 0
      %301 = vst [vmem:[#allocation2 + $0x8] sm:$0xff] 0
      %302 = vst [vmem:[#allocation2 + $0x10] sm:$0xff] 0
      %303 = vst [vmem:[#allocation2 + $0x18] sm:$0xff] 0
      %304 = vst [vmem:[#allocation2 + $0x20] sm:$0xff] 0
      %305 = vst [vmem:[#allocation2 + $0x28] sm:$0xff] 0
      %306 = vst [vmem:[#allocation2 + $0x30] sm:$0xff] 0
      %307 = vst [vmem:[#allocation2 + $0x38] sm:$0xff] 0
      %308 = vst [vmem:[#allocation2 + $0x40] sm:$0xff] 0
      %309 = vst [vmem:[#allocation2 + $0x48] sm:$0xff] 0
      %310 = vst [vmem:[#allocation2 + $0x50] sm:$0xff] 0
      %311 = vst [vmem:[#allocation2 + $0x58] sm:$0xff] 0
      %312 = vst [vmem:[#allocation2 + $0x60] sm:$0xff] 0
      %313 = vst [vmem:[#allocation2 + $0x68] sm:$0xff] 0
      %314 = vst [vmem:[#allocation2 + $0x70] sm:$0xff] 0
      %315 = vst [vmem:[#allocation2 + $0x78] sm:$0xff] 0
      %316 = vst [vmem:[#allocation2 + $0x80] sm:$0xff] 0
      %317 = vst [vmem:[#allocation2 + $0x88] sm:$0xff] 0
      %318 = vst [vmem:[#allocation2 + $0x90] sm:$0xff] 0
      %319 = vst [vmem:[#allocation2 + $0x98] sm:$0xff] 0
      %v320 = vld [vmem:[%s288] sm:$0xff]
      %v321 = vld [vmem:[%s288 + $0x8] sm:$0xff]
      %v322 = vld [vmem:[%s288 + $0x10] sm:$0xff]
      %v323 = vld [vmem:[%s288 + $0x18] sm:$0xff]
      %v324 = vld [vmem:[%s288 + $0x20] sm:$0xff]
      %v325 = vld [vmem:[%s288 + $0x28] sm:$0xff]
      %v326 = vld [vmem:[%s288 + $0x30] sm:$0xff]
      %v327 = vld [vmem:[%s288 + $0x38] sm:$0xff]
      %328 = vst [vmem:[#allocation2 + $0x4] sm:$0xff] %v320
      %329 = vst [vmem:[#allocation2 + $0xc] sm:$0xff] %v321
      %330 = vst [vmem:[#allocation2 + $0x14] sm:$0xff] %v322
      %331 = vst [vmem:[#allocation2 + $0x1c] sm:$0xff] %v323
      %332 = vst [vmem:[#allocation2 + $0x2c] sm:$0xff] %v324
      %333 = vst [vmem:[#allocation2 + $0x34] sm:$0xff] %v325
      %334 = vst [vmem:[#allocation2 + $0x3c] sm:$0xff] %v326
      %335 = vst [vmem:[#allocation2 + $0x44] sm:$0xff] %v327
      %v336 = vld [vmem:[%s293] sm:$0xff]
      %v337 = vld [vmem:[%s293 + $0x8] sm:$0xff]
      %v338 = vld [vmem:[%s293 + $0x10] sm:$0xff]
      %v339 = vld [vmem:[%s293 + $0x18] sm:$0xff]
      %v340 = vld [vmem:[%s293 + $0x20] sm:$0xff]
      %v341 = vld [vmem:[%s293 + $0x28] sm:$0xff]
      %v342 = vld [vmem:[%s293 + $0x30] sm:$0xff]
      %v343 = vld [vmem:[%s293 + $0x38] sm:$0xff]
      %v344 = vld [vmem:[%s293 + $0x40] sm:$0xff]
      %v345 = vld [vmem:[%s293 + $0x48] sm:$0xff]
      %v346 = vld [vmem:[%s293 + $0x50] sm:$0xff]
      %v347 = vld [vmem:[%s293 + $0x58] sm:$0xff]
      %v348 = vld [vmem:[%s293 + $0x60] sm:$0xff]
      %v349 = vld [vmem:[%s293 + $0x68] sm:$0xff]
      %v350 = vld [vmem:[%s293 + $0x70] sm:$0xff]
      %v351 = vld [vmem:[%s293 + $0x78] sm:$0xff]
      %v352 = vpack.c.bf16 %v337, %v336
      %v353 = vpack.c.bf16 %v339, %v338
      %v354 = vpack.c.bf16 %v341, %v340
      %v355 = vpack.c.bf16 %v343, %v342
      %v356 = vpack.c.bf16 %v345, %v344
      %v357 = vpack.c.bf16 %v347, %v346
      %v358 = vpack.c.bf16 %v349, %v348
      %v359 = vpack.c.bf16 %v351, %v350
      %360 = vst [vmem:[#allocation2 + $0x54] sm:$0xff] %v352
      %361 = vst [vmem:[#allocation2 + $0x5c] sm:$0xff] %v353
      %362 = vst [vmem:[#allocation2 + $0x64] sm:$0xff] %v354
      %363 = vst [vmem:[#allocation2 + $0x6c] sm:$0xff] %v355
      %364 = vst [vmem:[#allocation2 + $0x7c] sm:$0xff] %v356
      %365 = vst [vmem:[#allocation2 + $0x84] sm:$0xff] %v357
      %366 = vst [vmem:[#allocation2 + $0x8c] sm:$0xff] %v358
      %367 = vst [vmem:[#allocation2 + $0x94] sm:$0xff] %v359
      %v368 = vld [vmem:[%s2] ss:$2 sm:$0xff]
      %s369 = scalar_lea.vmem %s2, 1
      %v370 = vld [vmem:[%s369] ss:$2 sm:$0xff]
      %v371 = vld [vmem:[%s4] sm:$0xff]
      %v372 = vld [vmem:[%s4 + $0x8] sm:$0xff]
      %374 = vset.pattern.permute.xlu0 0
      %375 = vperm.xlu0 %374, %v371
      %v376 = vpop.permute.xlu0 %375
      %379 = vset.pattern.permute.xlu0 0
      %380 = vperm.xlu0 %379, %v372
      %v381 = vpop.permute.xlu0 %380
      %v383 = vld [vmem:[#allocation2] sm:$0xff]
      %v384 = vld [vmem:[#allocation2 + $0x8] sm:$0xff]
      %v385 = vld [vmem:[#allocation2 + $0x10] sm:$0xff]
      %v386 = vld [vmem:[#allocation2 + $0x18] sm:$0xff]
      %v387 = vld [vmem:[#allocation2 + $0x20] sm:$0xf]
      %v388 = vld [vmem:[#allocation2 + $0x28] sm:$0xff]
      %v389 = vld [vmem:[#allocation2 + $0x30] sm:$0xff]
      %v390 = vld [vmem:[#allocation2 + $0x38] sm:$0xff]
      %v391 = vld [vmem:[#allocation2 + $0x40] sm:$0xff]
      %v392 = vld [vmem:[#allocation2 + $0x48] sm:$0xf]
      %v393 = vld [vmem:[#allocation2 + $0x50] sm:$0xff]
      %v394 = vld [vmem:[#allocation2 + $0x58] sm:$0xff]
      %v395 = vld [vmem:[#allocation2 + $0x60] sm:$0xff]
      %v396 = vld [vmem:[#allocation2 + $0x68] sm:$0xff]
      %v397 = vld [vmem:[#allocation2 + $0x70] sm:$0xf]
      %v398 = vld [vmem:[#allocation2 + $0x78] sm:$0xff]
      %v399 = vld [vmem:[#allocation2 + $0x80] sm:$0xff]
      %v400 = vld [vmem:[#allocation2 + $0x88] sm:$0xff]
      %v401 = vld [vmem:[#allocation2 + $0x90] sm:$0xff]
      %v402 = vld [vmem:[#allocation2 + $0x98] sm:$0xf]
      %v403 = vld [vmem:[%s3] sm:$0xf]
      %v404 = vld [vmem:[%s3 + $0x4] sm:$0xf]
      %s405 = scalar_lea.vmem %s3, 24
      %v406 = vld [vmem:[%s405] sm:$0xf]
      %v407 = vld [vmem:[%s405 + $0x4] sm:$0xf]
      %v410 = vunpack.c.l.b16 %v406
      %v411 = vunpack.c.l.b16 %v407
      %v412 = vpack.c.b16 %v411, %v410
      %v433 = vunpack.c.l.b16 %v383
      %v434 = vunpack.c.h.b16 %v383
      %v435 = vunpack.c.l.b16 %v384
      %v436 = vunpack.c.h.b16 %v384
      %v437 = vunpack.c.l.b16 %v385
      %v438 = vunpack.c.h.b16 %v385
      %v439 = vunpack.c.l.b16 %v386
      %v440 = vunpack.c.h.b16 %v386
      %v441 = vunpack.c.l.b16 %v387
      %v442 = vunpack.c.l.b16 %v388
      %v443 = vunpack.c.h.b16 %v388
      %v444 = vunpack.c.l.b16 %v389
      %v445 = vunpack.c.h.b16 %v389
      %v446 = vunpack.c.l.b16 %v390
      %v447 = vunpack.c.h.b16 %v390
      %v448 = vunpack.c.l.b16 %v391
      %v449 = vunpack.c.h.b16 %v391
      %v450 = vunpack.c.l.b16 %v392
      %v451 = vunpack.c.l.b16 %v393
      %v452 = vunpack.c.h.b16 %v393
      %v453 = vunpack.c.l.b16 %v394
      %v454 = vunpack.c.h.b16 %v394
      %v455 = vunpack.c.l.b16 %v395
      %v456 = vunpack.c.h.b16 %v395
      %v457 = vunpack.c.l.b16 %v396
      %v458 = vunpack.c.h.b16 %v396
      %v459 = vunpack.c.l.b16 %v397
      %v460 = vunpack.c.l.b16 %v398
      %v461 = vunpack.c.h.b16 %v398
      %v462 = vunpack.c.l.b16 %v399
      %v463 = vunpack.c.h.b16 %v399
      %v464 = vunpack.c.l.b16 %v400
      %v465 = vunpack.c.h.b16 %v400
      %v466 = vunpack.c.l.b16 %v401
      %v467 = vunpack.c.h.b16 %v401
      %v468 = vunpack.c.l.b16 %v402
      %v469 = vpack.c.b16 %v442, %v433
      %v470 = vpack.c.b16 %v443, %v434
      %v471 = vpack.c.b16 %v444, %v435
      %v472 = vpack.c.b16 %v445, %v436
      %v473 = vpack.c.b16 %v446, %v437
      %v474 = vpack.c.b16 %v447, %v438
      %v475 = vpack.c.b16 %v448, %v439
      %v476 = vpack.c.b16 %v449, %v440
      %v477 = vpack.c.b16 %v450, %v441
      %v478 = vpack.c.b16 %v460, %v451
      %v479 = vpack.c.b16 %v461, %v452
      %v480 = vpack.c.b16 %v462, %v453
      %v481 = vpack.c.b16 %v463, %v454
      %v482 = vpack.c.b16 %v464, %v455
      %v483 = vpack.c.b16 %v465, %v456
      %v484 = vpack.c.b16 %v466, %v457
      %v485 = vpack.c.b16 %v467, %v458
      %v486 = vpack.c.b16 %v468, %v459
      %487 = vrot.lane.b32.xlu0 %v469, 1
      %v488 = vpop.permute.xlu0 %487
      %489 = vrot.lane.b32.xlu0 %v470, 1
      %v490 = vpop.permute.xlu0 %489
      %491 = vrot.lane.b32.xlu0 %v471, 1
      %v492 = vpop.permute.xlu0 %491
      %493 = vrot.lane.b32.xlu0 %v472, 1
      %v494 = vpop.permute.xlu0 %493
      %495 = vrot.lane.b32.xlu0 %v473, 1
      %v496 = vpop.permute.xlu0 %495
      %497 = vrot.lane.b32.xlu0 %v474, 1
      %v498 = vpop.permute.xlu0 %497
      %499 = vrot.lane.b32.xlu0 %v475, 1
      %v500 = vpop.permute.xlu0 %499
      %501 = vrot.lane.b32.xlu0 %v476, 1
      %v502 = vpop.permute.xlu0 %501
      %503 = vrot.lane.b32.xlu0 %v477, 1
      %v504 = vpop.permute.xlu0 %503
      %505 = vrot.lane.b32.xlu0 %v478, 1
      %v506 = vpop.permute.xlu0 %505
      %507 = vrot.lane.b32.xlu0 %v479, 1
      %v508 = vpop.permute.xlu0 %507
      %509 = vrot.lane.b32.xlu0 %v480, 1
      %v510 = vpop.permute.xlu0 %509
      %511 = vrot.lane.b32.xlu0 %v481, 1
      %v512 = vpop.permute.xlu0 %511
      %513 = vrot.lane.b32.xlu0 %v482, 1
      %v514 = vpop.permute.xlu0 %513
      %515 = vrot.lane.b32.xlu0 %v483, 1
      %v516 = vpop.permute.xlu0 %515
      %517 = vrot.lane.b32.xlu0 %v484, 1
      %v518 = vpop.permute.xlu0 %517
      %519 = vrot.lane.b32.xlu0 %v485, 1
      %v520 = vpop.permute.xlu0 %519
      %521 = vrot.lane.b32.xlu0 %v486, 1
      %v522 = vpop.permute.xlu0 %521
      %vm523 = vcmask 7168
      %v524 = vsel %vm523, %v488, %v490
      %v525 = vsel %vm523, %v490, %v492
      %v526 = vsel %vm523, %v492, %v494
      %v527 = vsel %vm523, %v494, %v496
      %v528 = vsel %vm523, %v496, %v498
      %v529 = vsel %vm523, %v498, %v500
      %v530 = vsel %vm523, %v500, %v502
      %v531 = vsel %vm523, %v502, %v504
      %v532 = vsel %vm523, %v506, %v508
      %v533 = vsel %vm523, %v508, %v510
      %v534 = vsel %vm523, %v510, %v512
      %v535 = vsel %vm523, %v512, %v514
      %v536 = vsel %vm523, %v514, %v516
      %v537 = vsel %vm523, %v516, %v518
      %v538 = vsel %vm523, %v518, %v520
      %v539 = vsel %vm523, %v520, %v522
      %vm556 = vcmask 261120
      %v558 = vsel %vm556, %v412, 0
      %560 = vmatpush.bf16.msra.mxu0 0
      %561 = vmatpush.bf16.msra.mxu0 0
      %562 = vmatpush.bf16.msra.mxu0 0
      %563 = vmatpush.bf16.msra.mxu0 0
      %564 = vmatpush.bf16.msra.mxu0 0
      %565 = vmatpush.bf16.msra.mxu0 0
      %566 = vmatpush.bf16.msra.mxu0 %v532
      %567 = vmatpush.bf16.msra.mxu0 %v524
      %568 = vmatmul.bf16.gmra.mxu0 %v558
      %v569 = vpop.f32.mrf.mxu0
      %v570 = vadd.f32 0.0, %v569
      %v571 = vpop.f32.mrf.mxu0
      %v572 = vadd.f32 0.0, %v571
      %573 = vdwg.mxu0
      %574 = vmatpush.bf16.msra.mxu0 0
      %575 = vmatpush.bf16.msra.mxu0 0
      %576 = vmatpush.bf16.msra.mxu0 0
      %577 = vmatpush.bf16.msra.mxu0 0
      %578 = vmatpush.bf16.msra.mxu0 0
      %579 = vmatpush.bf16.msra.mxu0 0
      %580 = vmatpush.bf16.msra.mxu0 %v533
      %581 = vmatpush.bf16.msra.mxu0 %v525
      %582 = vmatmul.bf16.gmra.mxu0 %v558
      %v583 = vpop.f32.mrf.mxu0
      %v584 = vadd.f32 0.0, %v583
      %v585 = vpop.f32.mrf.mxu0
      %v586 = vadd.f32 0.0, %v585
      %587 = vdwg.mxu0
      %588 = vmatpush.bf16.msra.mxu0 0
      %589 = vmatpush.bf16.msra.mxu0 0
      %590 = vmatpush.bf16.msra.mxu0 0
      %591 = vmatpush.bf16.msra.mxu0 0
      %592 = vmatpush.bf16.msra.mxu0 0
      %593 = vmatpush.bf16.msra.mxu0 0
      %594 = vmatpush.bf16.msra.mxu0 %v534
      %595 = vmatpush.bf16.msra.mxu0 %v526
      %596 = vmatmul.bf16.gmra.mxu0 %v558
      %v597 = vpop.f32.mrf.mxu0
      %v598 = vadd.f32 0.0, %v597
      %v599 = vpop.f32.mrf.mxu0
      %v600 = vadd.f32 0.0, %v599
      %601 = vdwg.mxu0
      %602 = vmatpush.bf16.msra.mxu0 0
      %603 = vmatpush.bf16.msra.mxu0 0
      %604 = vmatpush.bf16.msra.mxu0 0
      %605 = vmatpush.bf16.msra.mxu0 0
      %606 = vmatpush.bf16.msra.mxu0 0
      %607 = vmatpush.bf16.msra.mxu0 0
      %608 = vmatpush.bf16.msra.mxu0 %v535
      %609 = vmatpush.bf16.msra.mxu0 %v527
      %610 = vmatmul.bf16.gmra.mxu0 %v558
      %v611 = vpop.f32.mrf.mxu0
      %v612 = vadd.f32 0.0, %v611
      %v613 = vpop.f32.mrf.mxu0
      %v614 = vadd.f32 0.0, %v613
      %615 = vdwg.mxu0
      %616 = vmatpush.bf16.msra.mxu0 0
      %617 = vmatpush.bf16.msra.mxu0 0
      %618 = vmatpush.bf16.msra.mxu0 0
      %619 = vmatpush.bf16.msra.mxu0 0
      %620 = vmatpush.bf16.msra.mxu0 0
      %621 = vmatpush.bf16.msra.mxu0 0
      %622 = vmatpush.bf16.msra.mxu0 %v536
      %623 = vmatpush.bf16.msra.mxu0 %v528
      %624 = vmatmul.bf16.gmra.mxu0 %v558
      %v625 = vpop.f32.mrf.mxu0
      %v626 = vadd.f32 0.0, %v625
      %v627 = vpop.f32.mrf.mxu0
      %v628 = vadd.f32 0.0, %v627
      %629 = vdwg.mxu0
      %630 = vmatpush.bf16.msra.mxu0 0
      %631 = vmatpush.bf16.msra.mxu0 0
      %632 = vmatpush.bf16.msra.mxu0 0
      %633 = vmatpush.bf16.msra.mxu0 0
      %634 = vmatpush.bf16.msra.mxu0 0
      %635 = vmatpush.bf16.msra.mxu0 0
      %636 = vmatpush.bf16.msra.mxu0 %v537
      %637 = vmatpush.bf16.msra.mxu0 %v529
      %638 = vmatmul.bf16.gmra.mxu0 %v558
      %v639 = vpop.f32.mrf.mxu0
      %v640 = vadd.f32 0.0, %v639
      %v641 = vpop.f32.mrf.mxu0
      %v642 = vadd.f32 0.0, %v641
      %643 = vdwg.mxu0
      %644 = vmatpush.bf16.msra.mxu0 0
      %645 = vmatpush.bf16.msra.mxu0 0
      %646 = vmatpush.bf16.msra.mxu0 0
      %647 = vmatpush.bf16.msra.mxu0 0
      %648 = vmatpush.bf16.msra.mxu0 0
      %649 = vmatpush.bf16.msra.mxu0 0
      %650 = vmatpush.bf16.msra.mxu0 %v538
      %651 = vmatpush.bf16.msra.mxu0 %v530
      %652 = vmatmul.bf16.gmra.mxu0 %v558
      %v653 = vpop.f32.mrf.mxu0
      %v654 = vadd.f32 0.0, %v653
      %v655 = vpop.f32.mrf.mxu0
      %v656 = vadd.f32 0.0, %v655
      %657 = vdwg.mxu0
      %658 = vmatpush.bf16.msra.mxu0 0
      %659 = vmatpush.bf16.msra.mxu0 0
      %660 = vmatpush.bf16.msra.mxu0 0
      %661 = vmatpush.bf16.msra.mxu0 0
      %662 = vmatpush.bf16.msra.mxu0 0
      %663 = vmatpush.bf16.msra.mxu0 0
      %664 = vmatpush.bf16.msra.mxu0 %v539
      %665 = vmatpush.bf16.msra.mxu0 %v531
      %666 = vmatmul.bf16.gmra.mxu0 %v558
      %v667 = vpop.f32.mrf.mxu0
      %v668 = vadd.f32 0.0, %v667
      %v669 = vpop.f32.mrf.mxu0
      %v670 = vadd.f32 0.0, %v669
      %671 = vdwg.mxu0
      %v674 = vunpack.c.l.b16 %v403
      %v675 = vunpack.c.l.b16 %v404
      %v676 = vpack.c.b16 %v675, %v674
      %677 = vrot.lane.b32.xlu0 %v469, 33
      %v678 = vpop.permute.xlu0 %677
      %679 = vrot.lane.b32.xlu0 %v470, 33
      %v680 = vpop.permute.xlu0 %679
      %681 = vrot.lane.b32.xlu0 %v471, 33
      %v682 = vpop.permute.xlu0 %681
      %683 = vrot.lane.b32.xlu0 %v472, 33
      %v684 = vpop.permute.xlu0 %683
      %685 = vrot.lane.b32.xlu0 %v473, 33
      %v686 = vpop.permute.xlu0 %685
      %687 = vrot.lane.b32.xlu0 %v474, 33
      %v688 = vpop.permute.xlu0 %687
      %689 = vrot.lane.b32.xlu0 %v475, 33
      %v690 = vpop.permute.xlu0 %689
      %691 = vrot.lane.b32.xlu0 %v476, 33
      %v692 = vpop.permute.xlu0 %691
      %693 = vrot.lane.b32.xlu0 %v477, 33
      %v694 = vpop.permute.xlu0 %693
      %695 = vrot.lane.b32.xlu0 %v478, 33
      %v696 = vpop.permute.xlu0 %695
      %697 = vrot.lane.b32.xlu0 %v479, 33
      %v698 = vpop.permute.xlu0 %697
      %699 = vrot.lane.b32.xlu0 %v480, 33
      %v700 = vpop.permute.xlu0 %699
      %701 = vrot.lane.b32.xlu0 %v481, 33
      %v702 = vpop.permute.xlu0 %701
      %703 = vrot.lane.b32.xlu0 %v482, 33
      %v704 = vpop.permute.xlu0 %703
      %705 = vrot.lane.b32.xlu0 %v483, 33
      %v706 = vpop.permute.xlu0 %705
      %707 = vrot.lane.b32.xlu0 %v484, 33
      %v708 = vpop.permute.xlu0 %707
      %709 = vrot.lane.b32.xlu0 %v485, 33
      %v710 = vpop.permute.xlu0 %709
      %711 = vrot.lane.b32.xlu0 %v486, 33
      %v712 = vpop.permute.xlu0 %711
      %vm713 = vcmask 269312
      %v714 = vsel %vm713, %v678, %v680
      %v715 = vsel %vm713, %v680, %v682
      %v716 = vsel %vm713, %v682, %v684
      %v717 = vsel %vm713, %v684, %v686
      %v718 = vsel %vm713, %v686, %v688
      %v719 = vsel %vm713, %v688, %v690
      %v720 = vsel %vm713, %v690, %v692
      %v721 = vsel %vm713, %v692, %v694
      %v722 = vsel %vm713, %v696, %v698
      %v723 = vsel %vm713, %v698, %v700
      %v724 = vsel %vm713, %v700, %v702
      %v725 = vsel %vm713, %v702, %v704
      %v726 = vsel %vm713, %v704, %v706
      %v727 = vsel %vm713, %v706, %v708
      %v728 = vsel %vm713, %v708, %v710
      %v729 = vsel %vm713, %v710, %v712
      %v747 = vsel %vm556, %v676, 0
      %749 = vmatpush.bf16.msra.mxu0 0
      %750 = vmatpush.bf16.msra.mxu0 0
      %751 = vmatpush.bf16.msra.mxu0 0
      %752 = vmatpush.bf16.msra.mxu0 0
      %753 = vmatpush.bf16.msra.mxu0 0
      %754 = vmatpush.bf16.msra.mxu0 0
      %755 = vmatpush.bf16.msra.mxu0 %v722
      %756 = vmatpush.bf16.msra.mxu0 %v714
      %757 = vmatmul.bf16.gmra.mxu0 %v747
      %v758 = vpop.f32.mrf.mxu0
      %v759 = vadd.f32 %v570, %v758
      %v760 = vpop.f32.mrf.mxu0
      %v761 = vadd.f32 %v572, %v760
      %762 = vdwg.mxu0
      %763 = vmatpush.bf16.msra.mxu0 0
      %764 = vmatpush.bf16.msra.mxu0 0
      %765 = vmatpush.bf16.msra.mxu0 0
      %766 = vmatpush.bf16.msra.mxu0 0
      %767 = vmatpush.bf16.msra.mxu0 0
      %768 = vmatpush.bf16.msra.mxu0 0
      %769 = vmatpush.bf16.msra.mxu0 %v723
      %770 = vmatpush.bf16.msra.mxu0 %v715
      %771 = vmatmul.bf16.gmra.mxu0 %v747
      %v772 = vpop.f32.mrf.mxu0
      %v773 = vadd.f32 %v584, %v772
      %v774 = vpop.f32.mrf.mxu0
      %v775 = vadd.f32 %v586, %v774
      %776 = vdwg.mxu0
      %777 = vmatpush.bf16.msra.mxu0 0
      %778 = vmatpush.bf16.msra.mxu0 0
      %779 = vmatpush.bf16.msra.mxu0 0
      %780 = vmatpush.bf16.msra.mxu0 0
      %781 = vmatpush.bf16.msra.mxu0 0
      %782 = vmatpush.bf16.msra.mxu0 0
      %783 = vmatpush.bf16.msra.mxu0 %v724
      %784 = vmatpush.bf16.msra.mxu0 %v716
      %785 = vmatmul.bf16.gmra.mxu0 %v747
      %v786 = vpop.f32.mrf.mxu0
      %v787 = vadd.f32 %v598, %v786
      %v788 = vpop.f32.mrf.mxu0
      %v789 = vadd.f32 %v600, %v788
      %790 = vdwg.mxu0
      %791 = vmatpush.bf16.msra.mxu0 0
      %792 = vmatpush.bf16.msra.mxu0 0
      %793 = vmatpush.bf16.msra.mxu0 0
      %794 = vmatpush.bf16.msra.mxu0 0
      %795 = vmatpush.bf16.msra.mxu0 0
      %796 = vmatpush.bf16.msra.mxu0 0
      %797 = vmatpush.bf16.msra.mxu0 %v725
      %798 = vmatpush.bf16.msra.mxu0 %v717
      %799 = vmatmul.bf16.gmra.mxu0 %v747
      %v800 = vpop.f32.mrf.mxu0
      %v801 = vadd.f32 %v612, %v800
      %v802 = vpop.f32.mrf.mxu0
      %v803 = vadd.f32 %v614, %v802
      %804 = vdwg.mxu0
      %805 = vmatpush.bf16.msra.mxu0 0
      %806 = vmatpush.bf16.msra.mxu0 0
      %807 = vmatpush.bf16.msra.mxu0 0
      %808 = vmatpush.bf16.msra.mxu0 0
      %809 = vmatpush.bf16.msra.mxu0 0
      %810 = vmatpush.bf16.msra.mxu0 0
      %811 = vmatpush.bf16.msra.mxu0 %v726
      %812 = vmatpush.bf16.msra.mxu0 %v718
      %813 = vmatmul.bf16.gmra.mxu0 %v747
      %v814 = vpop.f32.mrf.mxu0
      %v815 = vadd.f32 %v626, %v814
      %v816 = vpop.f32.mrf.mxu0
      %v817 = vadd.f32 %v628, %v816
      %818 = vdwg.mxu0
      %819 = vmatpush.bf16.msra.mxu0 0
      %820 = vmatpush.bf16.msra.mxu0 0
      %821 = vmatpush.bf16.msra.mxu0 0
      %822 = vmatpush.bf16.msra.mxu0 0
      %823 = vmatpush.bf16.msra.mxu0 0
      %824 = vmatpush.bf16.msra.mxu0 0
      %825 = vmatpush.bf16.msra.mxu0 %v727
      %826 = vmatpush.bf16.msra.mxu0 %v719
      %827 = vmatmul.bf16.gmra.mxu0 %v747
      %v828 = vpop.f32.mrf.mxu0
      %v829 = vadd.f32 %v640, %v828
      %v830 = vpop.f32.mrf.mxu0
      %v831 = vadd.f32 %v642, %v830
      %832 = vdwg.mxu0
      %833 = vmatpush.bf16.msra.mxu0 0
      %834 = vmatpush.bf16.msra.mxu0 0
      %835 = vmatpush.bf16.msra.mxu0 0
      %836 = vmatpush.bf16.msra.mxu0 0
      %837 = vmatpush.bf16.msra.mxu0 0
      %838 = vmatpush.bf16.msra.mxu0 0
      %839 = vmatpush.bf16.msra.mxu0 %v728
      %840 = vmatpush.bf16.msra.mxu0 %v720
      %841 = vmatmul.bf16.gmra.mxu0 %v747
      %v842 = vpop.f32.mrf.mxu0
      %v843 = vadd.f32 %v654, %v842
      %v844 = vpop.f32.mrf.mxu0
      %v845 = vadd.f32 %v656, %v844
      %846 = vdwg.mxu0
      %847 = vmatpush.bf16.msra.mxu0 0
      %848 = vmatpush.bf16.msra.mxu0 0
      %849 = vmatpush.bf16.msra.mxu0 0
      %850 = vmatpush.bf16.msra.mxu0 0
      %851 = vmatpush.bf16.msra.mxu0 0
      %852 = vmatpush.bf16.msra.mxu0 0
      %853 = vmatpush.bf16.msra.mxu0 %v729
      %854 = vmatpush.bf16.msra.mxu0 %v721
      %855 = vmatmul.bf16.gmra.mxu0 %v747
      %v856 = vpop.f32.mrf.mxu0
      %v857 = vadd.f32 %v668, %v856
      %v858 = vpop.f32.mrf.mxu0
      %v859 = vadd.f32 %v670, %v858
      %860 = vdwg.mxu0
      %v861 = vld [vmem:[#allocation2 + $0x4] sm:$0xff]
      %v862 = vld [vmem:[#allocation2 + $0xc] sm:$0xff]
      %v863 = vld [vmem:[#allocation2 + $0x14] sm:$0xff]
      %v864 = vld [vmem:[#allocation2 + $0x1c] sm:$0xff]
      %v865 = vld [vmem:[#allocation2 + $0x24] sm:$0xf]
      %v866 = vld [vmem:[#allocation2 + $0x2c] sm:$0xff]
      %v867 = vld [vmem:[#allocation2 + $0x34] sm:$0xff]
      %v868 = vld [vmem:[#allocation2 + $0x3c] sm:$0xff]
      %v869 = vld [vmem:[#allocation2 + $0x44] sm:$0xff]
      %v870 = vld [vmem:[#allocation2 + $0x4c] sm:$0xf]
      %v871 = vld [vmem:[#allocation2 + $0x54] sm:$0xff]
      %v872 = vld [vmem:[#allocation2 + $0x5c] sm:$0xff]
      %v873 = vld [vmem:[#allocation2 + $0x64] sm:$0xff]
      %v874 = vld [vmem:[#allocation2 + $0x6c] sm:$0xff]
      %v875 = vld [vmem:[#allocation2 + $0x74] sm:$0xf]
      %v876 = vld [vmem:[#allocation2 + $0x7c] sm:$0xff]
      %v877 = vld [vmem:[#allocation2 + $0x84] sm:$0xff]
      %v878 = vld [vmem:[#allocation2 + $0x8c] sm:$0xff]
      %v879 = vld [vmem:[#allocation2 + $0x94] sm:$0xff]
      %v880 = vld [vmem:[#allocation2 + $0x9c] sm:$0xf]
      %s881 = scalar_lea.vmem %s3, 48
      %v882 = vld [vmem:[%s881] sm:$0xf]
      %v883 = vld [vmem:[%s881 + $0x4] sm:$0xf]
      %v886 = vunpack.c.l.b16 %v882
      %v887 = vunpack.c.l.b16 %v883
      %v888 = vpack.c.b16 %v887, %v886
      %v909 = vunpack.c.l.b16 %v861
      %v910 = vunpack.c.h.b16 %v861
      %v911 = vunpack.c.l.b16 %v862
      %v912 = vunpack.c.h.b16 %v862
      %v913 = vunpack.c.l.b16 %v863
      %v914 = vunpack.c.h.b16 %v863
      %v915 = vunpack.c.l.b16 %v864
      %v916 = vunpack.c.h.b16 %v864
      %v917 = vunpack.c.l.b16 %v865
      %v918 = vunpack.c.l.b16 %v866
      %v919 = vunpack.c.h.b16 %v866
      %v920 = vunpack.c.l.b16 %v867
      %v921 = vunpack.c.h.b16 %v867
      %v922 = vunpack.c.l.b16 %v868
      %v923 = vunpack.c.h.b16 %v868
      %v924 = vunpack.c.l.b16 %v869
      %v925 = vunpack.c.h.b16 %v869
      %v926 = vunpack.c.l.b16 %v870
      %v927 = vunpack.c.l.b16 %v871
      %v928 = vunpack.c.h.b16 %v871
      %v929 = vunpack.c.l.b16 %v872
      %v930 = vunpack.c.h.b16 %v872
      %v931 = vunpack.c.l.b16 %v873
      %v932 = vunpack.c.h.b16 %v873
      %v933 = vunpack.c.l.b16 %v874
      %v934 = vunpack.c.h.b16 %v874
      %v935 = vunpack.c.l.b16 %v875
      %v936 = vunpack.c.l.b16 %v876
      %v937 = vunpack.c.h.b16 %v876
      %v938 = vunpack.c.l.b16 %v877
      %v939 = vunpack.c.h.b16 %v877
      %v940 = vunpack.c.l.b16 %v878
      %v941 = vunpack.c.h.b16 %v878
      %v942 = vunpack.c.l.b16 %v879
      %v943 = vunpack.c.h.b16 %v879
      %v944 = vunpack.c.l.b16 %v880
      %v945 = vpack.c.b16 %v918, %v909
      %v946 = vpack.c.b16 %v919, %v910
      %v947 = vpack.c.b16 %v920, %v911
      %v948 = vpack.c.b16 %v921, %v912
      %v949 = vpack.c.b16 %v922, %v913
      %v950 = vpack.c.b16 %v923, %v914
      %v951 = vpack.c.b16 %v924, %v915
      %v952 = vpack.c.b16 %v925, %v916
      %v953 = vpack.c.b16 %v926, %v917
      %v954 = vpack.c.b16 %v936, %v927
      %v955 = vpack.c.b16 %v937, %v928
      %v956 = vpack.c.b16 %v938, %v929
      %v957 = vpack.c.b16 %v939, %v930
      %v958 = vpack.c.b16 %v940, %v931
      %v959 = vpack.c.b16 %v941, %v932
      %v960 = vpack.c.b16 %v942, %v933
      %v961 = vpack.c.b16 %v943, %v934
      %v962 = vpack.c.b16 %v944, %v935
      %963 = vrot.lane.b32.xlu0 %v945, 97
      %v964 = vpop.permute.xlu0 %963
      %965 = vrot.lane.b32.xlu0 %v946, 97
      %v966 = vpop.permute.xlu0 %965
      %967 = vrot.lane.b32.xlu0 %v947, 97
      %v968 = vpop.permute.xlu0 %967
      %969 = vrot.lane.b32.xlu0 %v948, 97
      %v970 = vpop.permute.xlu0 %969
      %971 = vrot.lane.b32.xlu0 %v949, 97
      %v972 = vpop.permute.xlu0 %971
      %973 = vrot.lane.b32.xlu0 %v950, 97
      %v974 = vpop.permute.xlu0 %973
      %975 = vrot.lane.b32.xlu0 %v951, 97
      %v976 = vpop.permute.xlu0 %975
      %977 = vrot.lane.b32.xlu0 %v952, 97
      %v978 = vpop.permute.xlu0 %977
      %979 = vrot.lane.b32.xlu0 %v953, 97
      %v980 = vpop.permute.xlu0 %979
      %981 = vrot.lane.b32.xlu0 %v954, 97
      %v982 = vpop.permute.xlu0 %981
      %983 = vrot.lane.b32.xlu0 %v955, 97
      %v984 = vpop.permute.xlu0 %983
      %985 = vrot.lane.b32.xlu0 %v956, 97
      %v986 = vpop.permute.xlu0 %985
      %987 = vrot.lane.b32.xlu0 %v957, 97
      %v988 = vpop.permute.xlu0 %987
      %989 = vrot.lane.b32.xlu0 %v958, 97
      %v990 = vpop.permute.xlu0 %989
      %991 = vrot.lane.b32.xlu0 %v959, 97
      %v992 = vpop.permute.xlu0 %991
      %993 = vrot.lane.b32.xlu0 %v960, 97
      %v994 = vpop.permute.xlu0 %993
      %995 = vrot.lane.b32.xlu0 %v961, 97
      %v996 = vpop.permute.xlu0 %995
      %997 = vrot.lane.b32.xlu0 %v962, 97
      %v998 = vpop.permute.xlu0 %997
      %vm999 = vcmask 793600
      %v1000 = vsel %vm999, %v964, %v966
      %v1001 = vsel %vm999, %v966, %v968
      %v1002 = vsel %vm999, %v968, %v970
      %v1003 = vsel %vm999, %v970, %v972
      %v1004 = vsel %vm999, %v972, %v974
      %v1005 = vsel %vm999, %v974, %v976
      %v1006 = vsel %vm999, %v976, %v978
      %v1007 = vsel %vm999, %v978, %v980
      %v1008 = vsel %vm999, %v982, %v984
      %v1009 = vsel %vm999, %v984, %v986
      %v1010 = vsel %vm999, %v986, %v988
      %v1011 = vsel %vm999, %v988, %v990
      %v1012 = vsel %vm999, %v990, %v992
      %v1013 = vsel %vm999, %v992, %v994
      %v1014 = vsel %vm999, %v994, %v996
      %v1015 = vsel %vm999, %v996, %v998
      %v1033 = vsel %vm556, %v888, 0
      %1035 = vmatpush.bf16.msra.mxu0 0
      %1036 = vmatpush.bf16.msra.mxu0 0
      %1037 = vmatpush.bf16.msra.mxu0 0
      %1038 = vmatpush.bf16.msra.mxu0 0
      %1039 = vmatpush.bf16.msra.mxu0 0
      %1040 = vmatpush.bf16.msra.mxu0 0
      %1041 = vmatpush.bf16.msra.mxu0 %v1008
      %1042 = vmatpush.bf16.msra.mxu0 %v1000
      %1043 = vmatmul.bf16.gmra.mxu0 %v1033
      %v1044 = vpop.f32.mrf.mxu0
      %v1045 = vadd.f32 0.0, %v1044
      %v1046 = vpop.f32.mrf.mxu0
      %v1047 = vadd.f32 0.0, %v1046
      %1048 = vdwg.mxu0
      %1049 = vmatpush.bf16.msra.mxu0 0
      %1050 = vmatpush.bf16.msra.mxu0 0
      %1051 = vmatpush.bf16.msra.mxu0 0
      %1052 = vmatpush.bf16.msra.mxu0 0
      %1053 = vmatpush.bf16.msra.mxu0 0
      %1054 = vmatpush.bf16.msra.mxu0 0
      %1055 = vmatpush.bf16.msra.mxu0 %v1009
      %1056 = vmatpush.bf16.msra.mxu0 %v1001
      %1057 = vmatmul.bf16.gmra.mxu0 %v1033
      %v1058 = vpop.f32.mrf.mxu0
      %v1059 = vadd.f32 0.0, %v1058
      %v1060 = vpop.f32.mrf.mxu0
      %v1061 = vadd.f32 0.0, %v1060
      %1062 = vdwg.mxu0
      %1063 = vmatpush.bf16.msra.mxu0 0
      %1064 = vmatpush.bf16.msra.mxu0 0
      %1065 = vmatpush.bf16.msra.mxu0 0
      %1066 = vmatpush.bf16.msra.mxu0 0
      %1067 = vmatpush.bf16.msra.mxu0 0
      %1068 = vmatpush.bf16.msra.mxu0 0
      %1069 = vmatpush.bf16.msra.mxu0 %v1010
      %1070 = vmatpush.bf16.msra.mxu0 %v1002
      %1071 = vmatmul.bf16.gmra.mxu0 %v1033
      %v1072 = vpop.f32.mrf.mxu0
      %v1073 = vadd.f32 0.0, %v1072
      %v1074 = vpop.f32.mrf.mxu0
      %v1075 = vadd.f32 0.0, %v1074
      %1076 = vdwg.mxu0
      %1077 = vmatpush.bf16.msra.mxu0 0
      %1078 = vmatpush.bf16.msra.mxu0 0
      %1079 = vmatpush.bf16.msra.mxu0 0
      %1080 = vmatpush.bf16.msra.mxu0 0
      %1081 = vmatpush.bf16.msra.mxu0 0
      %1082 = vmatpush.bf16.msra.mxu0 0
      %1083 = vmatpush.bf16.msra.mxu0 %v1011
      %1084 = vmatpush.bf16.msra.mxu0 %v1003
      %1085 = vmatmul.bf16.gmra.mxu0 %v1033
      %v1086 = vpop.f32.mrf.mxu0
      %v1087 = vadd.f32 0.0, %v1086
      %v1088 = vpop.f32.mrf.mxu0
      %v1089 = vadd.f32 0.0, %v1088
      %1090 = vdwg.mxu0
      %1091 = vmatpush.bf16.msra.mxu0 0
      %1092 = vmatpush.bf16.msra.mxu0 0
      %1093 = vmatpush.bf16.msra.mxu0 0
      %1094 = vmatpush.bf16.msra.mxu0 0
      %1095 = vmatpush.bf16.msra.mxu0 0
      %1096 = vmatpush.bf16.msra.mxu0 0
      %1097 = vmatpush.bf16.msra.mxu0 %v1012
      %1098 = vmatpush.bf16.msra.mxu0 %v1004
      %1099 = vmatmul.bf16.gmra.mxu0 %v1033
      %v1100 = vpop.f32.mrf.mxu0
      %v1101 = vadd.f32 0.0, %v1100
      %v1102 = vpop.f32.mrf.mxu0
      %v1103 = vadd.f32 0.0, %v1102
      %1104 = vdwg.mxu0
      %1105 = vmatpush.bf16.msra.mxu0 0
      %1106 = vmatpush.bf16.msra.mxu0 0
      %1107 = vmatpush.bf16.msra.mxu0 0
      %1108 = vmatpush.bf16.msra.mxu0 0
      %1109 = vmatpush.bf16.msra.mxu0 0
      %1110 = vmatpush.bf16.msra.mxu0 0
      %1111 = vmatpush.bf16.msra.mxu0 %v1013
      %1112 = vmatpush.bf16.msra.mxu0 %v1005
      %1113 = vmatmul.bf16.gmra.mxu0 %v1033
      %v1114 = vpop.f32.mrf.mxu0
      %v1115 = vadd.f32 0.0, %v1114
      %v1116 = vpop.f32.mrf.mxu0
      %v1117 = vadd.f32 0.0, %v1116
      %1118 = vdwg.mxu0
      %1119 = vmatpush.bf16.msra.mxu0 0
      %1120 = vmatpush.bf16.msra.mxu0 0
      %1121 = vmatpush.bf16.msra.mxu0 0
      %1122 = vmatpush.bf16.msra.mxu0 0
      %1123 = vmatpush.bf16.msra.mxu0 0
      %1124 = vmatpush.bf16.msra.mxu0 0
      %1125 = vmatpush.bf16.msra.mxu0 %v1014
      %1126 = vmatpush.bf16.msra.mxu0 %v1006
      %1127 = vmatmul.bf16.gmra.mxu0 %v1033
      %v1128 = vpop.f32.mrf.mxu0
      %v1129 = vadd.f32 0.0, %v1128
      %v1130 = vpop.f32.mrf.mxu0
      %v1131 = vadd.f32 0.0, %v1130
      %1132 = vdwg.mxu0
      %1133 = vmatpush.bf16.msra.mxu0 0
      %1134 = vmatpush.bf16.msra.mxu0 0
      %1135 = vmatpush.bf16.msra.mxu0 0
      %1136 = vmatpush.bf16.msra.mxu0 0
      %1137 = vmatpush.bf16.msra.mxu0 0
      %1138 = vmatpush.bf16.msra.mxu0 0
      %1139 = vmatpush.bf16.msra.mxu0 %v1015
      %1140 = vmatpush.bf16.msra.mxu0 %v1007
      %1141 = vmatmul.bf16.gmra.mxu0 %v1033
      %v1142 = vpop.f32.mrf.mxu0
      %v1143 = vadd.f32 0.0, %v1142
      %v1144 = vpop.f32.mrf.mxu0
      %v1145 = vadd.f32 0.0, %v1144
      %1146 = vdwg.mxu0
      %v1147 = vadd.f32 %v759, %v1045
      %v1148 = vadd.f32 %v773, %v1059
      %v1149 = vadd.f32 %v787, %v1073
      %v1150 = vadd.f32 %v801, %v1087
      %v1151 = vadd.f32 %v815, %v1101
      %v1152 = vadd.f32 %v829, %v1115
      %v1153 = vadd.f32 %v843, %v1129
      %v1154 = vadd.f32 %v857, %v1143
      %v1155 = vadd.f32 %v761, %v1047
      %v1156 = vadd.f32 %v775, %v1061
      %v1157 = vadd.f32 %v789, %v1075
      %v1158 = vadd.f32 %v803, %v1089
      %v1159 = vadd.f32 %v817, %v1103
      %v1160 = vadd.f32 %v831, %v1117
      %v1161 = vadd.f32 %v845, %v1131
      %v1162 = vadd.f32 %v859, %v1145
      %v1164 = vperm.slane %v368, 0
      %v1165 = vperm.slane %v368, 1
      %v1166 = vperm.slane %v368, 2
      %v1167 = vperm.slane %v368, 3
      %v1168 = vperm.slane %v368, 4
      %v1169 = vperm.slane %v368, 5
      %v1170 = vperm.slane %v368, 6
      %v1171 = vperm.slane %v368, 7
      %v1180 = vmul.f32 %v1147, %v1164
      %v1181 = vmul.f32 %v1148, %v1165
      %v1182 = vmul.f32 %v1149, %v1166
      %v1183 = vmul.f32 %v1150, %v1167
      %v1184 = vmul.f32 %v1151, %v1168
      %v1185 = vmul.f32 %v1152, %v1169
      %v1186 = vmul.f32 %v1153, %v1170
      %v1187 = vmul.f32 %v1154, %v1171
      %v1188 = vmul.f32 %v1155, %v1164
      %v1189 = vmul.f32 %v1156, %v1165
      %v1190 = vmul.f32 %v1157, %v1166
      %v1191 = vmul.f32 %v1158, %v1167
      %v1192 = vmul.f32 %v1159, %v1168
      %v1193 = vmul.f32 %v1160, %v1169
      %v1194 = vmul.f32 %v1161, %v1170
      %v1195 = vmul.f32 %v1162, %v1171
      %v1196 = vadd.f32 %v376, %v1180
      %v1197 = vadd.f32 %v376, %v1181
      %v1198 = vadd.f32 %v376, %v1182
      %v1199 = vadd.f32 %v376, %v1183
      %v1200 = vadd.f32 %v376, %v1184
      %v1201 = vadd.f32 %v376, %v1185
      %v1202 = vadd.f32 %v376, %v1186
      %v1203 = vadd.f32 %v376, %v1187
      %v1204 = vadd.f32 %v381, %v1188
      %v1205 = vadd.f32 %v381, %v1189
      %v1206 = vadd.f32 %v381, %v1190
      %v1207 = vadd.f32 %v381, %v1191
      %v1208 = vadd.f32 %v381, %v1192
      %v1209 = vadd.f32 %v381, %v1193
      %v1210 = vadd.f32 %v381, %v1194
      %v1211 = vadd.f32 %v381, %v1195
      %s1212 = scalar_lea.vmem %s3, 8
      %v1213 = vld [vmem:[%s1212] sm:$0xf]
      %v1214 = vld [vmem:[%s1212 + $0x4] sm:$0xf]
      %v1215 = vld [vmem:[#allocation2 + $0x4] sm:$0xff]
      %v1216 = vld [vmem:[#allocation2 + $0xc] sm:$0xff]
      %v1217 = vld [vmem:[#allocation2 + $0x14] sm:$0xff]
      %v1218 = vld [vmem:[#allocation2 + $0x1c] sm:$0xff]
      %v1219 = vld [vmem:[#allocation2 + $0x2c] sm:$0xff]
      %v1220 = vld [vmem:[#allocation2 + $0x34] sm:$0xff]
      %v1221 = vld [vmem:[#allocation2 + $0x3c] sm:$0xff]
      %v1222 = vld [vmem:[#allocation2 + $0x44] sm:$0xff]
      %v1223 = vld [vmem:[#allocation2 + $0x54] sm:$0xff]
      %v1224 = vld [vmem:[#allocation2 + $0x5c] sm:$0xff]
      %v1225 = vld [vmem:[#allocation2 + $0x64] sm:$0xff]
      %v1226 = vld [vmem:[#allocation2 + $0x6c] sm:$0xff]
      %v1227 = vld [vmem:[#allocation2 + $0x7c] sm:$0xff]
      %v1228 = vld [vmem:[#allocation2 + $0x84] sm:$0xff]
      %v1229 = vld [vmem:[#allocation2 + $0x8c] sm:$0xff]
      %v1230 = vld [vmem:[#allocation2 + $0x94] sm:$0xff]
      %s1231 = scalar_lea.vmem %s3, 32
      %v1232 = vld [vmem:[%s1231] sm:$0xf]
      %v1233 = vld [vmem:[%s1231 + $0x4] sm:$0xf]
      %v1236 = vunpack.c.l.b16 %v1232
      %v1237 = vunpack.c.l.b16 %v1233
      %v1238 = vpack.c.b16 %v1237, %v1236
      %v1255 = vunpack.c.l.b16 %v1215
      %v1256 = vunpack.c.h.b16 %v1215
      %v1257 = vunpack.c.l.b16 %v1216
      %v1258 = vunpack.c.h.b16 %v1216
      %v1259 = vunpack.c.l.b16 %v1217
      %v1260 = vunpack.c.h.b16 %v1217
      %v1261 = vunpack.c.l.b16 %v1218
      %v1262 = vunpack.c.h.b16 %v1218
      %v1263 = vunpack.c.l.b16 %v1219
      %v1264 = vunpack.c.h.b16 %v1219
      %v1265 = vunpack.c.l.b16 %v1220
      %v1266 = vunpack.c.h.b16 %v1220
      %v1267 = vunpack.c.l.b16 %v1221
      %v1268 = vunpack.c.h.b16 %v1221
      %v1269 = vunpack.c.l.b16 %v1222
      %v1270 = vunpack.c.h.b16 %v1222
      %v1271 = vunpack.c.l.b16 %v1223
      %v1272 = vunpack.c.h.b16 %v1223
      %v1273 = vunpack.c.l.b16 %v1224
      %v1274 = vunpack.c.h.b16 %v1224
      %v1275 = vunpack.c.l.b16 %v1225
      %v1276 = vunpack.c.h.b16 %v1225
      %v1277 = vunpack.c.l.b16 %v1226
      %v1278 = vunpack.c.h.b16 %v1226
      %v1279 = vunpack.c.l.b16 %v1227
      %v1280 = vunpack.c.h.b16 %v1227
      %v1281 = vunpack.c.l.b16 %v1228
      %v1282 = vunpack.c.h.b16 %v1228
      %v1283 = vunpack.c.l.b16 %v1229
      %v1284 = vunpack.c.h.b16 %v1229
      %v1285 = vunpack.c.l.b16 %v1230
      %v1286 = vunpack.c.h.b16 %v1230
      %v1287 = vpack.c.b16 %v1263, %v1255
      %v1288 = vpack.c.b16 %v1264, %v1256
      %v1289 = vpack.c.b16 %v1265, %v1257
      %v1290 = vpack.c.b16 %v1266, %v1258
      %v1291 = vpack.c.b16 %v1267, %v1259
      %v1292 = vpack.c.b16 %v1268, %v1260
      %v1293 = vpack.c.b16 %v1269, %v1261
      %v1294 = vpack.c.b16 %v1270, %v1262
      %v1295 = vpack.c.b16 %v1279, %v1271
      %v1296 = vpack.c.b16 %v1280, %v1272
      %v1297 = vpack.c.b16 %v1281, %v1273
      %v1298 = vpack.c.b16 %v1282, %v1274
      %v1299 = vpack.c.b16 %v1283, %v1275
      %v1300 = vpack.c.b16 %v1284, %v1276
      %v1301 = vpack.c.b16 %v1285, %v1277
      %v1302 = vpack.c.b16 %v1286, %v1278
      %v1320 = vsel %vm556, %v1238, 0
      %1322 = vmatpush.bf16.msra.mxu0 0
      %1323 = vmatpush.bf16.msra.mxu0 0
      %1324 = vmatpush.bf16.msra.mxu0 0
      %1325 = vmatpush.bf16.msra.mxu0 0
      %1326 = vmatpush.bf16.msra.mxu0 0
      %1327 = vmatpush.bf16.msra.mxu0 0
      %1328 = vmatpush.bf16.msra.mxu0 %v1295
      %1329 = vmatpush.bf16.msra.mxu0 %v1287
      %1330 = vmatmul.bf16.gmra.mxu0 %v1320
      %v1331 = vpop.f32.mrf.mxu0
      %v1332 = vadd.f32 0.0, %v1331
      %v1333 = vpop.f32.mrf.mxu0
      %v1334 = vadd.f32 0.0, %v1333
      %1335 = vdwg.mxu0
      %1336 = vmatpush.bf16.msra.mxu0 0
      %1337 = vmatpush.bf16.msra.mxu0 0
      %1338 = vmatpush.bf16.msra.mxu0 0
      %1339 = vmatpush.bf16.msra.mxu0 0
      %1340 = vmatpush.bf16.msra.mxu0 0
      %1341 = vmatpush.bf16.msra.mxu0 0
      %1342 = vmatpush.bf16.msra.mxu0 %v1296
      %1343 = vmatpush.bf16.msra.mxu0 %v1288
      %1344 = vmatmul.bf16.gmra.mxu0 %v1320
      %v1345 = vpop.f32.mrf.mxu0
      %v1346 = vadd.f32 0.0, %v1345
      %v1347 = vpop.f32.mrf.mxu0
      %v1348 = vadd.f32 0.0, %v1347
      %1349 = vdwg.mxu0
      %1350 = vmatpush.bf16.msra.mxu0 0
      %1351 = vmatpush.bf16.msra.mxu0 0
      %1352 = vmatpush.bf16.msra.mxu0 0
      %1353 = vmatpush.bf16.msra.mxu0 0
      %1354 = vmatpush.bf16.msra.mxu0 0
      %1355 = vmatpush.bf16.msra.mxu0 0
      %1356 = vmatpush.bf16.msra.mxu0 %v1297
      %1357 = vmatpush.bf16.msra.mxu0 %v1289
      %1358 = vmatmul.bf16.gmra.mxu0 %v1320
      %v1359 = vpop.f32.mrf.mxu0
      %v1360 = vadd.f32 0.0, %v1359
      %v1361 = vpop.f32.mrf.mxu0
      %v1362 = vadd.f32 0.0, %v1361
      %1363 = vdwg.mxu0
      %1364 = vmatpush.bf16.msra.mxu0 0
      %1365 = vmatpush.bf16.msra.mxu0 0
      %1366 = vmatpush.bf16.msra.mxu0 0
      %1367 = vmatpush.bf16.msra.mxu0 0
      %1368 = vmatpush.bf16.msra.mxu0 0
      %1369 = vmatpush.bf16.msra.mxu0 0
      %1370 = vmatpush.bf16.msra.mxu0 %v1298
      %1371 = vmatpush.bf16.msra.mxu0 %v1290
      %1372 = vmatmul.bf16.gmra.mxu0 %v1320
      %v1373 = vpop.f32.mrf.mxu0
      %v1374 = vadd.f32 0.0, %v1373
      %v1375 = vpop.f32.mrf.mxu0
      %v1376 = vadd.f32 0.0, %v1375
      %1377 = vdwg.mxu0
      %1378 = vmatpush.bf16.msra.mxu0 0
      %1379 = vmatpush.bf16.msra.mxu0 0
      %1380 = vmatpush.bf16.msra.mxu0 0
      %1381 = vmatpush.bf16.msra.mxu0 0
      %1382 = vmatpush.bf16.msra.mxu0 0
      %1383 = vmatpush.bf16.msra.mxu0 0
      %1384 = vmatpush.bf16.msra.mxu0 %v1299
      %1385 = vmatpush.bf16.msra.mxu0 %v1291
      %1386 = vmatmul.bf16.gmra.mxu0 %v1320
      %v1387 = vpop.f32.mrf.mxu0
      %v1388 = vadd.f32 0.0, %v1387
      %v1389 = vpop.f32.mrf.mxu0
      %v1390 = vadd.f32 0.0, %v1389
      %1391 = vdwg.mxu0
      %1392 = vmatpush.bf16.msra.mxu0 0
      %1393 = vmatpush.bf16.msra.mxu0 0
      %1394 = vmatpush.bf16.msra.mxu0 0
      %1395 = vmatpush.bf16.msra.mxu0 0
      %1396 = vmatpush.bf16.msra.mxu0 0
      %1397 = vmatpush.bf16.msra.mxu0 0
      %1398 = vmatpush.bf16.msra.mxu0 %v1300
      %1399 = vmatpush.bf16.msra.mxu0 %v1292
      %1400 = vmatmul.bf16.gmra.mxu0 %v1320
      %v1401 = vpop.f32.mrf.mxu0
      %v1402 = vadd.f32 0.0, %v1401
      %v1403 = vpop.f32.mrf.mxu0
      %v1404 = vadd.f32 0.0, %v1403
      %1405 = vdwg.mxu0
      %1406 = vmatpush.bf16.msra.mxu0 0
      %1407 = vmatpush.bf16.msra.mxu0 0
      %1408 = vmatpush.bf16.msra.mxu0 0
      %1409 = vmatpush.bf16.msra.mxu0 0
      %1410 = vmatpush.bf16.msra.mxu0 0
      %1411 = vmatpush.bf16.msra.mxu0 0
      %1412 = vmatpush.bf16.msra.mxu0 %v1301
      %1413 = vmatpush.bf16.msra.mxu0 %v1293
      %1414 = vmatmul.bf16.gmra.mxu0 %v1320
      %v1415 = vpop.f32.mrf.mxu0
      %v1416 = vadd.f32 0.0, %v1415
      %v1417 = vpop.f32.mrf.mxu0
      %v1418 = vadd.f32 0.0, %v1417
      %1419 = vdwg.mxu0
      %1420 = vmatpush.bf16.msra.mxu0 0
      %1421 = vmatpush.bf16.msra.mxu0 0
      %1422 = vmatpush.bf16.msra.mxu0 0
      %1423 = vmatpush.bf16.msra.mxu0 0
      %1424 = vmatpush.bf16.msra.mxu0 0
      %1425 = vmatpush.bf16.msra.mxu0 0
      %1426 = vmatpush.bf16.msra.mxu0 %v1302
      %1427 = vmatpush.bf16.msra.mxu0 %v1294
      %1428 = vmatmul.bf16.gmra.mxu0 %v1320
      %v1429 = vpop.f32.mrf.mxu0
      %v1430 = vadd.f32 0.0, %v1429
      %v1431 = vpop.f32.mrf.mxu0
      %v1432 = vadd.f32 0.0, %v1431
      %1433 = vdwg.mxu0
      %v1436 = vunpack.c.l.b16 %v1213
      %v1437 = vunpack.c.l.b16 %v1214
      %v1438 = vpack.c.b16 %v1437, %v1436
      %1439 = vrot.lane.b32.xlu0 %v469, 32
      %v1440 = vpop.permute.xlu0 %1439
      %1441 = vrot.lane.b32.xlu0 %v470, 32
      %v1442 = vpop.permute.xlu0 %1441
      %1443 = vrot.lane.b32.xlu0 %v471, 32
      %v1444 = vpop.permute.xlu0 %1443
      %1445 = vrot.lane.b32.xlu0 %v472, 32
      %v1446 = vpop.permute.xlu0 %1445
      %1447 = vrot.lane.b32.xlu0 %v473, 32
      %v1448 = vpop.permute.xlu0 %1447
      %1449 = vrot.lane.b32.xlu0 %v474, 32
      %v1450 = vpop.permute.xlu0 %1449
      %1451 = vrot.lane.b32.xlu0 %v475, 32
      %v1452 = vpop.permute.xlu0 %1451
      %1453 = vrot.lane.b32.xlu0 %v476, 32
      %v1454 = vpop.permute.xlu0 %1453
      %1455 = vrot.lane.b32.xlu0 %v477, 32
      %v1456 = vpop.permute.xlu0 %1455
      %1457 = vrot.lane.b32.xlu0 %v478, 32
      %v1458 = vpop.permute.xlu0 %1457
      %1459 = vrot.lane.b32.xlu0 %v479, 32
      %v1460 = vpop.permute.xlu0 %1459
      %1461 = vrot.lane.b32.xlu0 %v480, 32
      %v1462 = vpop.permute.xlu0 %1461
      %1463 = vrot.lane.b32.xlu0 %v481, 32
      %v1464 = vpop.permute.xlu0 %1463
      %1465 = vrot.lane.b32.xlu0 %v482, 32
      %v1466 = vpop.permute.xlu0 %1465
      %1467 = vrot.lane.b32.xlu0 %v483, 32
      %v1468 = vpop.permute.xlu0 %1467
      %1469 = vrot.lane.b32.xlu0 %v484, 32
      %v1470 = vpop.permute.xlu0 %1469
      %1471 = vrot.lane.b32.xlu0 %v485, 32
      %v1472 = vpop.permute.xlu0 %1471
      %1473 = vrot.lane.b32.xlu0 %v486, 32
      %v1474 = vpop.permute.xlu0 %1473
      %vm1475 = vcmask 261120
      %v1476 = vsel %vm1475, %v1440, %v1442
      %v1477 = vsel %vm1475, %v1442, %v1444
      %v1478 = vsel %vm1475, %v1444, %v1446
      %v1479 = vsel %vm1475, %v1446, %v1448
      %v1480 = vsel %vm1475, %v1448, %v1450
      %v1481 = vsel %vm1475, %v1450, %v1452
      %v1482 = vsel %vm1475, %v1452, %v1454
      %v1483 = vsel %vm1475, %v1454, %v1456
      %v1484 = vsel %vm1475, %v1458, %v1460
      %v1485 = vsel %vm1475, %v1460, %v1462
      %v1486 = vsel %vm1475, %v1462, %v1464
      %v1487 = vsel %vm1475, %v1464, %v1466
      %v1488 = vsel %vm1475, %v1466, %v1468
      %v1489 = vsel %vm1475, %v1468, %v1470
      %v1490 = vsel %vm1475, %v1470, %v1472
      %v1491 = vsel %vm1475, %v1472, %v1474
      %v1509 = vsel %vm556, %v1438, 0
      %1511 = vmatpush.bf16.msra.mxu0 0
      %1512 = vmatpush.bf16.msra.mxu0 0
      %1513 = vmatpush.bf16.msra.mxu0 0
      %1514 = vmatpush.bf16.msra.mxu0 0
      %1515 = vmatpush.bf16.msra.mxu0 0
      %1516 = vmatpush.bf16.msra.mxu0 0
      %1517 = vmatpush.bf16.msra.mxu0 %v1484
      %1518 = vmatpush.bf16.msra.mxu0 %v1476
      %1519 = vmatmul.bf16.gmra.mxu0 %v1509
      %v1520 = vpop.f32.mrf.mxu0
      %v1521 = vadd.f32 %v1332, %v1520
      %v1522 = vpop.f32.mrf.mxu0
      %v1523 = vadd.f32 %v1334, %v1522
      %1524 = vdwg.mxu0
      %1525 = vmatpush.bf16.msra.mxu0 0
      %1526 = vmatpush.bf16.msra.mxu0 0
      %1527 = vmatpush.bf16.msra.mxu0 0
      %1528 = vmatpush.bf16.msra.mxu0 0
      %1529 = vmatpush.bf16.msra.mxu0 0
      %1530 = vmatpush.bf16.msra.mxu0 0
      %1531 = vmatpush.bf16.msra.mxu0 %v1485
      %1532 = vmatpush.bf16.msra.mxu0 %v1477
      %1533 = vmatmul.bf16.gmra.mxu0 %v1509
      %v1534 = vpop.f32.mrf.mxu0
      %v1535 = vadd.f32 %v1346, %v1534
      %v1536 = vpop.f32.mrf.mxu0
      %v1537 = vadd.f32 %v1348, %v1536
      %1538 = vdwg.mxu0
      %1539 = vmatpush.bf16.msra.mxu0 0
      %1540 = vmatpush.bf16.msra.mxu0 0
      %1541 = vmatpush.bf16.msra.mxu0 0
      %1542 = vmatpush.bf16.msra.mxu0 0
      %1543 = vmatpush.bf16.msra.mxu0 0
      %1544 = vmatpush.bf16.msra.mxu0 0
      %1545 = vmatpush.bf16.msra.mxu0 %v1486
      %1546 = vmatpush.bf16.msra.mxu0 %v1478
      %1547 = vmatmul.bf16.gmra.mxu0 %v1509
      %v1548 = vpop.f32.mrf.mxu0
      %v1549 = vadd.f32 %v1360, %v1548
      %v1550 = vpop.f32.mrf.mxu0
      %v1551 = vadd.f32 %v1362, %v1550
      %1552 = vdwg.mxu0
      %1553 = vmatpush.bf16.msra.mxu0 0
      %1554 = vmatpush.bf16.msra.mxu0 0
      %1555 = vmatpush.bf16.msra.mxu0 0
      %1556 = vmatpush.bf16.msra.mxu0 0
      %1557 = vmatpush.bf16.msra.mxu0 0
      %1558 = vmatpush.bf16.msra.mxu0 0
      %1559 = vmatpush.bf16.msra.mxu0 %v1487
      %1560 = vmatpush.bf16.msra.mxu0 %v1479
      %1561 = vmatmul.bf16.gmra.mxu0 %v1509
      %v1562 = vpop.f32.mrf.mxu0
      %v1563 = vadd.f32 %v1374, %v1562
      %v1564 = vpop.f32.mrf.mxu0
      %v1565 = vadd.f32 %v1376, %v1564
      %1566 = vdwg.mxu0
      %1567 = vmatpush.bf16.msra.mxu0 0
      %1568 = vmatpush.bf16.msra.mxu0 0
      %1569 = vmatpush.bf16.msra.mxu0 0
      %1570 = vmatpush.bf16.msra.mxu0 0
      %1571 = vmatpush.bf16.msra.mxu0 0
      %1572 = vmatpush.bf16.msra.mxu0 0
      %1573 = vmatpush.bf16.msra.mxu0 %v1488
      %1574 = vmatpush.bf16.msra.mxu0 %v1480
      %1575 = vmatmul.bf16.gmra.mxu0 %v1509
      %v1576 = vpop.f32.mrf.mxu0
      %v1577 = vadd.f32 %v1388, %v1576
      %v1578 = vpop.f32.mrf.mxu0
      %v1579 = vadd.f32 %v1390, %v1578
      %1580 = vdwg.mxu0
      %1581 = vmatpush.bf16.msra.mxu0 0
      %1582 = vmatpush.bf16.msra.mxu0 0
      %1583 = vmatpush.bf16.msra.mxu0 0
      %1584 = vmatpush.bf16.msra.mxu0 0
      %1585 = vmatpush.bf16.msra.mxu0 0
      %1586 = vmatpush.bf16.msra.mxu0 0
      %1587 = vmatpush.bf16.msra.mxu0 %v1489
      %1588 = vmatpush.bf16.msra.mxu0 %v1481
      %1589 = vmatmul.bf16.gmra.mxu0 %v1509
      %v1590 = vpop.f32.mrf.mxu0
      %v1591 = vadd.f32 %v1402, %v1590
      %v1592 = vpop.f32.mrf.mxu0
      %v1593 = vadd.f32 %v1404, %v1592
      %1594 = vdwg.mxu0
      %1595 = vmatpush.bf16.msra.mxu0 0
      %1596 = vmatpush.bf16.msra.mxu0 0
      %1597 = vmatpush.bf16.msra.mxu0 0
      %1598 = vmatpush.bf16.msra.mxu0 0
      %1599 = vmatpush.bf16.msra.mxu0 0
      %1600 = vmatpush.bf16.msra.mxu0 0
      %1601 = vmatpush.bf16.msra.mxu0 %v1490
      %1602 = vmatpush.bf16.msra.mxu0 %v1482
      %1603 = vmatmul.bf16.gmra.mxu0 %v1509
      %v1604 = vpop.f32.mrf.mxu0
      %v1605 = vadd.f32 %v1416, %v1604
      %v1606 = vpop.f32.mrf.mxu0
      %v1607 = vadd.f32 %v1418, %v1606
      %1608 = vdwg.mxu0
      %1609 = vmatpush.bf16.msra.mxu0 0
      %1610 = vmatpush.bf16.msra.mxu0 0
      %1611 = vmatpush.bf16.msra.mxu0 0
      %1612 = vmatpush.bf16.msra.mxu0 0
      %1613 = vmatpush.bf16.msra.mxu0 0
      %1614 = vmatpush.bf16.msra.mxu0 0
      %1615 = vmatpush.bf16.msra.mxu0 %v1491
      %1616 = vmatpush.bf16.msra.mxu0 %v1483
      %1617 = vmatmul.bf16.gmra.mxu0 %v1509
      %v1618 = vpop.f32.mrf.mxu0
      %v1619 = vadd.f32 %v1430, %v1618
      %v1620 = vpop.f32.mrf.mxu0
      %v1621 = vadd.f32 %v1432, %v1620
      %1622 = vdwg.mxu0
      %s1623 = scalar_lea.vmem %s3, 56
      %v1624 = vld [vmem:[%s1623] sm:$0xf]
      %v1625 = vld [vmem:[%s1623 + $0x4] sm:$0xf]
      %v1628 = vunpack.c.l.b16 %v1624
      %v1629 = vunpack.c.l.b16 %v1625
      %v1630 = vpack.c.b16 %v1629, %v1628
      %1631 = vrot.lane.b32.xlu0 %v945, 96
      %v1632 = vpop.permute.xlu0 %1631
      %1633 = vrot.lane.b32.xlu0 %v946, 96
      %v1634 = vpop.permute.xlu0 %1633
      %1635 = vrot.lane.b32.xlu0 %v947, 96
      %v1636 = vpop.permute.xlu0 %1635
      %1637 = vrot.lane.b32.xlu0 %v948, 96
      %v1638 = vpop.permute.xlu0 %1637
      %1639 = vrot.lane.b32.xlu0 %v949, 96
      %v1640 = vpop.permute.xlu0 %1639
      %1641 = vrot.lane.b32.xlu0 %v950, 96
      %v1642 = vpop.permute.xlu0 %1641
      %1643 = vrot.lane.b32.xlu0 %v951, 96
      %v1644 = vpop.permute.xlu0 %1643
      %1645 = vrot.lane.b32.xlu0 %v952, 96
      %v1646 = vpop.permute.xlu0 %1645
      %1647 = vrot.lane.b32.xlu0 %v953, 96
      %v1648 = vpop.permute.xlu0 %1647
      %1649 = vrot.lane.b32.xlu0 %v954, 96
      %v1650 = vpop.permute.xlu0 %1649
      %1651 = vrot.lane.b32.xlu0 %v955, 96
      %v1652 = vpop.permute.xlu0 %1651
      %1653 = vrot.lane.b32.xlu0 %v956, 96
      %v1654 = vpop.permute.xlu0 %1653
      %1655 = vrot.lane.b32.xlu0 %v957, 96
      %v1656 = vpop.permute.xlu0 %1655
      %1657 = vrot.lane.b32.xlu0 %v958, 96
      %v1658 = vpop.permute.xlu0 %1657
      %1659 = vrot.lane.b32.xlu0 %v959, 96
      %v1660 = vpop.permute.xlu0 %1659
      %1661 = vrot.lane.b32.xlu0 %v960, 96
      %v1662 = vpop.permute.xlu0 %1661
      %1663 = vrot.lane.b32.xlu0 %v961, 96
      %v1664 = vpop.permute.xlu0 %1663
      %1665 = vrot.lane.b32.xlu0 %v962, 96
      %v1666 = vpop.permute.xlu0 %1665
      %vm1667 = vcmask 785408
      %v1668 = vsel %vm1667, %v1632, %v1634
      %v1669 = vsel %vm1667, %v1634, %v1636
      %v1670 = vsel %vm1667, %v1636, %v1638
      %v1671 = vsel %vm1667, %v1638, %v1640
      %v1672 = vsel %vm1667, %v1640, %v1642
      %v1673 = vsel %vm1667, %v1642, %v1644
      %v1674 = vsel %vm1667, %v1644, %v1646
      %v1675 = vsel %vm1667, %v1646, %v1648
      %v1676 = vsel %vm1667, %v1650, %v1652
      %v1677 = vsel %vm1667, %v1652, %v1654
      %v1678 = vsel %vm1667, %v1654, %v1656
      %v1679 = vsel %vm1667, %v1656, %v1658
      %v1680 = vsel %vm1667, %v1658, %v1660
      %v1681 = vsel %vm1667, %v1660, %v1662
      %v1682 = vsel %vm1667, %v1662, %v1664
      %v1683 = vsel %vm1667, %v1664, %v1666
      %v1701 = vsel %vm556, %v1630, 0
      %1703 = vmatpush.bf16.msra.mxu0 0
      %1704 = vmatpush.bf16.msra.mxu0 0
      %1705 = vmatpush.bf16.msra.mxu0 0
      %1706 = vmatpush.bf16.msra.mxu0 0
      %1707 = vmatpush.bf16.msra.mxu0 0
      %1708 = vmatpush.bf16.msra.mxu0 0
      %1709 = vmatpush.bf16.msra.mxu0 %v1676
      %1710 = vmatpush.bf16.msra.mxu0 %v1668
      %1711 = vmatmul.bf16.gmra.mxu0 %v1701
      %v1712 = vpop.f32.mrf.mxu0
      %v1713 = vadd.f32 0.0, %v1712
      %v1714 = vpop.f32.mrf.mxu0
      %v1715 = vadd.f32 0.0, %v1714
      %1716 = vdwg.mxu0
      %1717 = vmatpush.bf16.msra.mxu0 0
      %1718 = vmatpush.bf16.msra.mxu0 0
      %1719 = vmatpush.bf16.msra.mxu0 0
      %1720 = vmatpush.bf16.msra.mxu0 0
      %1721 = vmatpush.bf16.msra.mxu0 0
      %1722 = vmatpush.bf16.msra.mxu0 0
      %1723 = vmatpush.bf16.msra.mxu0 %v1677
      %1724 = vmatpush.bf16.msra.mxu0 %v1669
      %1725 = vmatmul.bf16.gmra.mxu0 %v1701
      %v1726 = vpop.f32.mrf.mxu0
      %v1727 = vadd.f32 0.0, %v1726
      %v1728 = vpop.f32.mrf.mxu0
      %v1729 = vadd.f32 0.0, %v1728
      %1730 = vdwg.mxu0
      %1731 = vmatpush.bf16.msra.mxu0 0
      %1732 = vmatpush.bf16.msra.mxu0 0
      %1733 = vmatpush.bf16.msra.mxu0 0
      %1734 = vmatpush.bf16.msra.mxu0 0
      %1735 = vmatpush.bf16.msra.mxu0 0
      %1736 = vmatpush.bf16.msra.mxu0 0
      %1737 = vmatpush.bf16.msra.mxu0 %v1678
      %1738 = vmatpush.bf16.msra.mxu0 %v1670
      %1739 = vmatmul.bf16.gmra.mxu0 %v1701
      %v1740 = vpop.f32.mrf.mxu0
      %v1741 = vadd.f32 0.0, %v1740
      %v1742 = vpop.f32.mrf.mxu0
      %v1743 = vadd.f32 0.0, %v1742
      %1744 = vdwg.mxu0
      %1745 = vmatpush.bf16.msra.mxu0 0
      %1746 = vmatpush.bf16.msra.mxu0 0
      %1747 = vmatpush.bf16.msra.mxu0 0
      %1748 = vmatpush.bf16.msra.mxu0 0
      %1749 = vmatpush.bf16.msra.mxu0 0
      %1750 = vmatpush.bf16.msra.mxu0 0
      %1751 = vmatpush.bf16.msra.mxu0 %v1679
      %1752 = vmatpush.bf16.msra.mxu0 %v1671
      %1753 = vmatmul.bf16.gmra.mxu0 %v1701
      %v1754 = vpop.f32.mrf.mxu0
      %v1755 = vadd.f32 0.0, %v1754
      %v1756 = vpop.f32.mrf.mxu0
      %v1757 = vadd.f32 0.0, %v1756
      %1758 = vdwg.mxu0
      %1759 = vmatpush.bf16.msra.mxu0 0
      %1760 = vmatpush.bf16.msra.mxu0 0
      %1761 = vmatpush.bf16.msra.mxu0 0
      %1762 = vmatpush.bf16.msra.mxu0 0
      %1763 = vmatpush.bf16.msra.mxu0 0
      %1764 = vmatpush.bf16.msra.mxu0 0
      %1765 = vmatpush.bf16.msra.mxu0 %v1680
      %1766 = vmatpush.bf16.msra.mxu0 %v1672
      %1767 = vmatmul.bf16.gmra.mxu0 %v1701
      %v1768 = vpop.f32.mrf.mxu0
      %v1769 = vadd.f32 0.0, %v1768
      %v1770 = vpop.f32.mrf.mxu0
      %v1771 = vadd.f32 0.0, %v1770
      %1772 = vdwg.mxu0
      %1773 = vmatpush.bf16.msra.mxu0 0
      %1774 = vmatpush.bf16.msra.mxu0 0
      %1775 = vmatpush.bf16.msra.mxu0 0
      %1776 = vmatpush.bf16.msra.mxu0 0
      %1777 = vmatpush.bf16.msra.mxu0 0
      %1778 = vmatpush.bf16.msra.mxu0 0
      %1779 = vmatpush.bf16.msra.mxu0 %v1681
      %1780 = vmatpush.bf16.msra.mxu0 %v1673
      %1781 = vmatmul.bf16.gmra.mxu0 %v1701
      %v1782 = vpop.f32.mrf.mxu0
      %v1783 = vadd.f32 0.0, %v1782
      %v1784 = vpop.f32.mrf.mxu0
      %v1785 = vadd.f32 0.0, %v1784
      %1786 = vdwg.mxu0
      %1787 = vmatpush.bf16.msra.mxu0 0
      %1788 = vmatpush.bf16.msra.mxu0 0
      %1789 = vmatpush.bf16.msra.mxu0 0
      %1790 = vmatpush.bf16.msra.mxu0 0
      %1791 = vmatpush.bf16.msra.mxu0 0
      %1792 = vmatpush.bf16.msra.mxu0 0
      %1793 = vmatpush.bf16.msra.mxu0 %v1682
      %1794 = vmatpush.bf16.msra.mxu0 %v1674
      %1795 = vmatmul.bf16.gmra.mxu0 %v1701
      %v1796 = vpop.f32.mrf.mxu0
      %v1797 = vadd.f32 0.0, %v1796
      %v1798 = vpop.f32.mrf.mxu0
      %v1799 = vadd.f32 0.0, %v1798
      %1800 = vdwg.mxu0
      %1801 = vmatpush.bf16.msra.mxu0 0
      %1802 = vmatpush.bf16.msra.mxu0 0
      %1803 = vmatpush.bf16.msra.mxu0 0
      %1804 = vmatpush.bf16.msra.mxu0 0
      %1805 = vmatpush.bf16.msra.mxu0 0
      %1806 = vmatpush.bf16.msra.mxu0 0
      %1807 = vmatpush.bf16.msra.mxu0 %v1683
      %1808 = vmatpush.bf16.msra.mxu0 %v1675
      %1809 = vmatmul.bf16.gmra.mxu0 %v1701
      %v1810 = vpop.f32.mrf.mxu0
      %v1811 = vadd.f32 0.0, %v1810
      %v1812 = vpop.f32.mrf.mxu0
      %v1813 = vadd.f32 0.0, %v1812
      %1814 = vdwg.mxu0
      %v1815 = vadd.f32 %v1521, %v1713
      %v1816 = vadd.f32 %v1535, %v1727
      %v1817 = vadd.f32 %v1549, %v1741
      %v1818 = vadd.f32 %v1563, %v1755
      %v1819 = vadd.f32 %v1577, %v1769
      %v1820 = vadd.f32 %v1591, %v1783
      %v1821 = vadd.f32 %v1605, %v1797
      %v1822 = vadd.f32 %v1619, %v1811
      %v1823 = vadd.f32 %v1523, %v1715
      %v1824 = vadd.f32 %v1537, %v1729
      %v1825 = vadd.f32 %v1551, %v1743
      %v1826 = vadd.f32 %v1565, %v1757
      %v1827 = vadd.f32 %v1579, %v1771
      %v1828 = vadd.f32 %v1593, %v1785
      %v1829 = vadd.f32 %v1607, %v1799
      %v1830 = vadd.f32 %v1621, %v1813
      %v1831 = vadd.f32 %v1196, %v1815
      %v1832 = vadd.f32 %v1197, %v1816
      %v1833 = vadd.f32 %v1198, %v1817
      %v1834 = vadd.f32 %v1199, %v1818
      %v1835 = vadd.f32 %v1200, %v1819
      %v1836 = vadd.f32 %v1201, %v1820
      %v1837 = vadd.f32 %v1202, %v1821
      %v1838 = vadd.f32 %v1203, %v1822
      %v1839 = vadd.f32 %v1204, %v1823
      %v1840 = vadd.f32 %v1205, %v1824
      %v1841 = vadd.f32 %v1206, %v1825
      %v1842 = vadd.f32 %v1207, %v1826
      %v1843 = vadd.f32 %v1208, %v1827
      %v1844 = vadd.f32 %v1209, %v1828
      %v1845 = vadd.f32 %v1210, %v1829
      %v1846 = vadd.f32 %v1211, %v1830
      %s1847 = scalar_lea.vmem %s3, 16
      %v1848 = vld [vmem:[%s1847] sm:$0xf]
      %v1849 = vld [vmem:[%s1847 + $0x4] sm:$0xf]
      %s1850 = scalar_lea.vmem %s3, 40
      %v1851 = vld [vmem:[%s1850] sm:$0xf]
      %v1852 = vld [vmem:[%s1850 + $0x4] sm:$0xf]
      %v1855 = vunpack.c.l.b16 %v1851
      %v1856 = vunpack.c.l.b16 %v1852
      %v1857 = vpack.c.b16 %v1856, %v1855
      %1858 = vrot.lane.b32.xlu0 %v945, 127
      %v1859 = vpop.permute.xlu0 %1858
      %1860 = vrot.lane.b32.xlu0 %v946, 127
      %v1861 = vpop.permute.xlu0 %1860
      %1862 = vrot.lane.b32.xlu0 %v947, 127
      %v1863 = vpop.permute.xlu0 %1862
      %1864 = vrot.lane.b32.xlu0 %v948, 127
      %v1865 = vpop.permute.xlu0 %1864
      %1866 = vrot.lane.b32.xlu0 %v949, 127
      %v1867 = vpop.permute.xlu0 %1866
      %1868 = vrot.lane.b32.xlu0 %v950, 127
      %v1869 = vpop.permute.xlu0 %1868
      %1870 = vrot.lane.b32.xlu0 %v951, 127
      %v1871 = vpop.permute.xlu0 %1870
      %1872 = vrot.lane.b32.xlu0 %v952, 127
      %v1873 = vpop.permute.xlu0 %1872
      %1874 = vrot.lane.b32.xlu0 %v953, 127
      %v1875 = vpop.permute.xlu0 %1874
      %1876 = vrot.lane.b32.xlu0 %v954, 127
      %v1877 = vpop.permute.xlu0 %1876
      %1878 = vrot.lane.b32.xlu0 %v955, 127
      %v1879 = vpop.permute.xlu0 %1878
      %1880 = vrot.lane.b32.xlu0 %v956, 127
      %v1881 = vpop.permute.xlu0 %1880
      %1882 = vrot.lane.b32.xlu0 %v957, 127
      %v1883 = vpop.permute.xlu0 %1882
      %1884 = vrot.lane.b32.xlu0 %v958, 127
      %v1885 = vpop.permute.xlu0 %1884
      %1886 = vrot.lane.b32.xlu0 %v959, 127
      %v1887 = vpop.permute.xlu0 %1886
      %1888 = vrot.lane.b32.xlu0 %v960, 127
      %v1889 = vpop.permute.xlu0 %1888
      %1890 = vrot.lane.b32.xlu0 %v961, 127
      %v1891 = vpop.permute.xlu0 %1890
      %1892 = vrot.lane.b32.xlu0 %v962, 127
      %v1893 = vpop.permute.xlu0 %1892
      %vm1894 = vcmask 1039360
      %v1895 = vsel %vm1894, %v1859, %v1861
      %v1896 = vsel %vm1894, %v1861, %v1863
      %v1897 = vsel %vm1894, %v1863, %v1865
      %v1898 = vsel %vm1894, %v1865, %v1867
      %v1899 = vsel %vm1894, %v1867, %v1869
      %v1900 = vsel %vm1894, %v1869, %v1871
      %v1901 = vsel %vm1894, %v1871, %v1873
      %v1902 = vsel %vm1894, %v1873, %v1875
      %v1903 = vsel %vm1894, %v1877, %v1879
      %v1904 = vsel %vm1894, %v1879, %v1881
      %v1905 = vsel %vm1894, %v1881, %v1883
      %v1906 = vsel %vm1894, %v1883, %v1885
      %v1907 = vsel %vm1894, %v1885, %v1887
      %v1908 = vsel %vm1894, %v1887, %v1889
      %v1909 = vsel %vm1894, %v1889, %v1891
      %v1910 = vsel %vm1894, %v1891, %v1893
      %v1928 = vsel %vm556, %v1857, 0
      %1930 = vmatpush.bf16.msra.mxu0 0
      %1931 = vmatpush.bf16.msra.mxu0 0
      %1932 = vmatpush.bf16.msra.mxu0 0
      %1933 = vmatpush.bf16.msra.mxu0 0
      %1934 = vmatpush.bf16.msra.mxu0 0
      %1935 = vmatpush.bf16.msra.mxu0 0
      %1936 = vmatpush.bf16.msra.mxu0 %v1903
      %1937 = vmatpush.bf16.msra.mxu0 %v1895
      %1938 = vmatmul.bf16.gmra.mxu0 %v1928
      %v1939 = vpop.f32.mrf.mxu0
      %v1940 = vadd.f32 0.0, %v1939
      %v1941 = vpop.f32.mrf.mxu0
      %v1942 = vadd.f32 0.0, %v1941
      %1943 = vdwg.mxu0
      %1944 = vmatpush.bf16.msra.mxu0 0
      %1945 = vmatpush.bf16.msra.mxu0 0
      %1946 = vmatpush.bf16.msra.mxu0 0
      %1947 = vmatpush.bf16.msra.mxu0 0
      %1948 = vmatpush.bf16.msra.mxu0 0
      %1949 = vmatpush.bf16.msra.mxu0 0
      %1950 = vmatpush.bf16.msra.mxu0 %v1904
      %1951 = vmatpush.bf16.msra.mxu0 %v1896
      %1952 = vmatmul.bf16.gmra.mxu0 %v1928
      %v1953 = vpop.f32.mrf.mxu0
      %v1954 = vadd.f32 0.0, %v1953
      %v1955 = vpop.f32.mrf.mxu0
      %v1956 = vadd.f32 0.0, %v1955
      %1957 = vdwg.mxu0
      %1958 = vmatpush.bf16.msra.mxu0 0
      %1959 = vmatpush.bf16.msra.mxu0 0
      %1960 = vmatpush.bf16.msra.mxu0 0
      %1961 = vmatpush.bf16.msra.mxu0 0
      %1962 = vmatpush.bf16.msra.mxu0 0
      %1963 = vmatpush.bf16.msra.mxu0 0
      %1964 = vmatpush.bf16.msra.mxu0 %v1905
      %1965 = vmatpush.bf16.msra.mxu0 %v1897
      %1966 = vmatmul.bf16.gmra.mxu0 %v1928
      %v1967 = vpop.f32.mrf.mxu0
      %v1968 = vadd.f32 0.0, %v1967
      %v1969 = vpop.f32.mrf.mxu0
      %v1970 = vadd.f32 0.0, %v1969
      %1971 = vdwg.mxu0
      %1972 = vmatpush.bf16.msra.mxu0 0
      %1973 = vmatpush.bf16.msra.mxu0 0
      %1974 = vmatpush.bf16.msra.mxu0 0
      %1975 = vmatpush.bf16.msra.mxu0 0
      %1976 = vmatpush.bf16.msra.mxu0 0
      %1977 = vmatpush.bf16.msra.mxu0 0
      %1978 = vmatpush.bf16.msra.mxu0 %v1906
      %1979 = vmatpush.bf16.msra.mxu0 %v1898
      %1980 = vmatmul.bf16.gmra.mxu0 %v1928
      %v1981 = vpop.f32.mrf.mxu0
      %v1982 = vadd.f32 0.0, %v1981
      %v1983 = vpop.f32.mrf.mxu0
      %v1984 = vadd.f32 0.0, %v1983
      %1985 = vdwg.mxu0
      %1986 = vmatpush.bf16.msra.mxu0 0
      %1987 = vmatpush.bf16.msra.mxu0 0
      %1988 = vmatpush.bf16.msra.mxu0 0
      %1989 = vmatpush.bf16.msra.mxu0 0
      %1990 = vmatpush.bf16.msra.mxu0 0
      %1991 = vmatpush.bf16.msra.mxu0 0
      %1992 = vmatpush.bf16.msra.mxu0 %v1907
      %1993 = vmatpush.bf16.msra.mxu0 %v1899
      %1994 = vmatmul.bf16.gmra.mxu0 %v1928
      %v1995 = vpop.f32.mrf.mxu0
      %v1996 = vadd.f32 0.0, %v1995
      %v1997 = vpop.f32.mrf.mxu0
      %v1998 = vadd.f32 0.0, %v1997
      %1999 = vdwg.mxu0
      %2000 = vmatpush.bf16.msra.mxu0 0
      %2001 = vmatpush.bf16.msra.mxu0 0
      %2002 = vmatpush.bf16.msra.mxu0 0
      %2003 = vmatpush.bf16.msra.mxu0 0
      %2004 = vmatpush.bf16.msra.mxu0 0
      %2005 = vmatpush.bf16.msra.mxu0 0
      %2006 = vmatpush.bf16.msra.mxu0 %v1908
      %2007 = vmatpush.bf16.msra.mxu0 %v1900
      %2008 = vmatmul.bf16.gmra.mxu0 %v1928
      %v2009 = vpop.f32.mrf.mxu0
      %v2010 = vadd.f32 0.0, %v2009
      %v2011 = vpop.f32.mrf.mxu0
      %v2012 = vadd.f32 0.0, %v2011
      %2013 = vdwg.mxu0
      %2014 = vmatpush.bf16.msra.mxu0 0
      %2015 = vmatpush.bf16.msra.mxu0 0
      %2016 = vmatpush.bf16.msra.mxu0 0
      %2017 = vmatpush.bf16.msra.mxu0 0
      %2018 = vmatpush.bf16.msra.mxu0 0
      %2019 = vmatpush.bf16.msra.mxu0 0
      %2020 = vmatpush.bf16.msra.mxu0 %v1909
      %2021 = vmatpush.bf16.msra.mxu0 %v1901
      %2022 = vmatmul.bf16.gmra.mxu0 %v1928
      %v2023 = vpop.f32.mrf.mxu0
      %v2024 = vadd.f32 0.0, %v2023
      %v2025 = vpop.f32.mrf.mxu0
      %v2026 = vadd.f32 0.0, %v2025
      %2027 = vdwg.mxu0
      %2028 = vmatpush.bf16.msra.mxu0 0
      %2029 = vmatpush.bf16.msra.mxu0 0
      %2030 = vmatpush.bf16.msra.mxu0 0
      %2031 = vmatpush.bf16.msra.mxu0 0
      %2032 = vmatpush.bf16.msra.mxu0 0
      %2033 = vmatpush.bf16.msra.mxu0 0
      %2034 = vmatpush.bf16.msra.mxu0 %v1910
      %2035 = vmatpush.bf16.msra.mxu0 %v1902
      %2036 = vmatmul.bf16.gmra.mxu0 %v1928
      %v2037 = vpop.f32.mrf.mxu0
      %v2038 = vadd.f32 0.0, %v2037
      %v2039 = vpop.f32.mrf.mxu0
      %v2040 = vadd.f32 0.0, %v2039
      %2041 = vdwg.mxu0
      %v2044 = vunpack.c.l.b16 %v1848
      %v2045 = vunpack.c.l.b16 %v1849
      %v2046 = vpack.c.b16 %v2045, %v2044
      %2047 = vrot.lane.b32.xlu0 %v469, 31
      %v2048 = vpop.permute.xlu0 %2047
      %2049 = vrot.lane.b32.xlu0 %v470, 31
      %v2050 = vpop.permute.xlu0 %2049
      %2051 = vrot.lane.b32.xlu0 %v471, 31
      %v2052 = vpop.permute.xlu0 %2051
      %2053 = vrot.lane.b32.xlu0 %v472, 31
      %v2054 = vpop.permute.xlu0 %2053
      %2055 = vrot.lane.b32.xlu0 %v473, 31
      %v2056 = vpop.permute.xlu0 %2055
      %2057 = vrot.lane.b32.xlu0 %v474, 31
      %v2058 = vpop.permute.xlu0 %2057
      %2059 = vrot.lane.b32.xlu0 %v475, 31
      %v2060 = vpop.permute.xlu0 %2059
      %2061 = vrot.lane.b32.xlu0 %v476, 31
      %v2062 = vpop.permute.xlu0 %2061
      %2063 = vrot.lane.b32.xlu0 %v477, 31
      %v2064 = vpop.permute.xlu0 %2063
      %2065 = vrot.lane.b32.xlu0 %v478, 31
      %v2066 = vpop.permute.xlu0 %2065
      %2067 = vrot.lane.b32.xlu0 %v479, 31
      %v2068 = vpop.permute.xlu0 %2067
      %2069 = vrot.lane.b32.xlu0 %v480, 31
      %v2070 = vpop.permute.xlu0 %2069
      %2071 = vrot.lane.b32.xlu0 %v481, 31
      %v2072 = vpop.permute.xlu0 %2071
      %2073 = vrot.lane.b32.xlu0 %v482, 31
      %v2074 = vpop.permute.xlu0 %2073
      %2075 = vrot.lane.b32.xlu0 %v483, 31
      %v2076 = vpop.permute.xlu0 %2075
      %2077 = vrot.lane.b32.xlu0 %v484, 31
      %v2078 = vpop.permute.xlu0 %2077
      %2079 = vrot.lane.b32.xlu0 %v485, 31
      %v2080 = vpop.permute.xlu0 %2079
      %2081 = vrot.lane.b32.xlu0 %v486, 31
      %v2082 = vpop.permute.xlu0 %2081
      %vm2083 = vcmask 252928
      %v2084 = vsel %vm2083, %v2048, %v2050
      %v2085 = vsel %vm2083, %v2050, %v2052
      %v2086 = vsel %vm2083, %v2052, %v2054
      %v2087 = vsel %vm2083, %v2054, %v2056
      %v2088 = vsel %vm2083, %v2056, %v2058
      %v2089 = vsel %vm2083, %v2058, %v2060
      %v2090 = vsel %vm2083, %v2060, %v2062
      %v2091 = vsel %vm2083, %v2062, %v2064
      %v2092 = vsel %vm2083, %v2066, %v2068
      %v2093 = vsel %vm2083, %v2068, %v2070
      %v2094 = vsel %vm2083, %v2070, %v2072
      %v2095 = vsel %vm2083, %v2072, %v2074
      %v2096 = vsel %vm2083, %v2074, %v2076
      %v2097 = vsel %vm2083, %v2076, %v2078
      %v2098 = vsel %vm2083, %v2078, %v2080
      %v2099 = vsel %vm2083, %v2080, %v2082
      %v2117 = vsel %vm556, %v2046, 0
      %2119 = vmatpush.bf16.msra.mxu0 0
      %2120 = vmatpush.bf16.msra.mxu0 0
      %2121 = vmatpush.bf16.msra.mxu0 0
      %2122 = vmatpush.bf16.msra.mxu0 0
      %2123 = vmatpush.bf16.msra.mxu0 0
      %2124 = vmatpush.bf16.msra.mxu0 0
      %2125 = vmatpush.bf16.msra.mxu0 %v2092
      %2126 = vmatpush.bf16.msra.mxu0 %v2084
      %2127 = vmatmul.bf16.gmra.mxu0 %v2117
      %v2128 = vpop.f32.mrf.mxu0
      %v2129 = vadd.f32 %v1940, %v2128
      %v2130 = vpop.f32.mrf.mxu0
      %v2131 = vadd.f32 %v1942, %v2130
      %2132 = vdwg.mxu0
      %2133 = vmatpush.bf16.msra.mxu0 0
      %2134 = vmatpush.bf16.msra.mxu0 0
      %2135 = vmatpush.bf16.msra.mxu0 0
      %2136 = vmatpush.bf16.msra.mxu0 0
      %2137 = vmatpush.bf16.msra.mxu0 0
      %2138 = vmatpush.bf16.msra.mxu0 0
      %2139 = vmatpush.bf16.msra.mxu0 %v2093
      %2140 = vmatpush.bf16.msra.mxu0 %v2085
      %2141 = vmatmul.bf16.gmra.mxu0 %v2117
      %v2142 = vpop.f32.mrf.mxu0
      %v2143 = vadd.f32 %v1954, %v2142
      %v2144 = vpop.f32.mrf.mxu0
      %v2145 = vadd.f32 %v1956, %v2144
      %2146 = vdwg.mxu0
      %2147 = vmatpush.bf16.msra.mxu0 0
      %2148 = vmatpush.bf16.msra.mxu0 0
      %2149 = vmatpush.bf16.msra.mxu0 0
      %2150 = vmatpush.bf16.msra.mxu0 0
      %2151 = vmatpush.bf16.msra.mxu0 0
      %2152 = vmatpush.bf16.msra.mxu0 0
      %2153 = vmatpush.bf16.msra.mxu0 %v2094
      %2154 = vmatpush.bf16.msra.mxu0 %v2086
      %2155 = vmatmul.bf16.gmra.mxu0 %v2117
      %v2156 = vpop.f32.mrf.mxu0
      %v2157 = vadd.f32 %v1968, %v2156
      %v2158 = vpop.f32.mrf.mxu0
      %v2159 = vadd.f32 %v1970, %v2158
      %2160 = vdwg.mxu0
      %2161 = vmatpush.bf16.msra.mxu0 0
      %2162 = vmatpush.bf16.msra.mxu0 0
      %2163 = vmatpush.bf16.msra.mxu0 0
      %2164 = vmatpush.bf16.msra.mxu0 0
      %2165 = vmatpush.bf16.msra.mxu0 0
      %2166 = vmatpush.bf16.msra.mxu0 0
      %2167 = vmatpush.bf16.msra.mxu0 %v2095
      %2168 = vmatpush.bf16.msra.mxu0 %v2087
      %2169 = vmatmul.bf16.gmra.mxu0 %v2117
      %v2170 = vpop.f32.mrf.mxu0
      %v2171 = vadd.f32 %v1982, %v2170
      %v2172 = vpop.f32.mrf.mxu0
      %v2173 = vadd.f32 %v1984, %v2172
      %2174 = vdwg.mxu0
      %2175 = vmatpush.bf16.msra.mxu0 0
      %2176 = vmatpush.bf16.msra.mxu0 0
      %2177 = vmatpush.bf16.msra.mxu0 0
      %2178 = vmatpush.bf16.msra.mxu0 0
      %2179 = vmatpush.bf16.msra.mxu0 0
      %2180 = vmatpush.bf16.msra.mxu0 0
      %2181 = vmatpush.bf16.msra.mxu0 %v2096
      %2182 = vmatpush.bf16.msra.mxu0 %v2088
      %2183 = vmatmul.bf16.gmra.mxu0 %v2117
      %v2184 = vpop.f32.mrf.mxu0
      %v2185 = vadd.f32 %v1996, %v2184
      %v2186 = vpop.f32.mrf.mxu0
      %v2187 = vadd.f32 %v1998, %v2186
      %2188 = vdwg.mxu0
      %2189 = vmatpush.bf16.msra.mxu0 0
      %2190 = vmatpush.bf16.msra.mxu0 0
      %2191 = vmatpush.bf16.msra.mxu0 0
      %2192 = vmatpush.bf16.msra.mxu0 0
      %2193 = vmatpush.bf16.msra.mxu0 0
      %2194 = vmatpush.bf16.msra.mxu0 0
      %2195 = vmatpush.bf16.msra.mxu0 %v2097
      %2196 = vmatpush.bf16.msra.mxu0 %v2089
      %2197 = vmatmul.bf16.gmra.mxu0 %v2117
      %v2198 = vpop.f32.mrf.mxu0
      %v2199 = vadd.f32 %v2010, %v2198
      %v2200 = vpop.f32.mrf.mxu0
      %v2201 = vadd.f32 %v2012, %v2200
      %2202 = vdwg.mxu0
      %2203 = vmatpush.bf16.msra.mxu0 0
      %2204 = vmatpush.bf16.msra.mxu0 0
      %2205 = vmatpush.bf16.msra.mxu0 0
      %2206 = vmatpush.bf16.msra.mxu0 0
      %2207 = vmatpush.bf16.msra.mxu0 0
      %2208 = vmatpush.bf16.msra.mxu0 0
      %2209 = vmatpush.bf16.msra.mxu0 %v2098
      %2210 = vmatpush.bf16.msra.mxu0 %v2090
      %2211 = vmatmul.bf16.gmra.mxu0 %v2117
      %v2212 = vpop.f32.mrf.mxu0
      %v2213 = vadd.f32 %v2024, %v2212
      %v2214 = vpop.f32.mrf.mxu0
      %v2215 = vadd.f32 %v2026, %v2214
      %2216 = vdwg.mxu0
      %2217 = vmatpush.bf16.msra.mxu0 0
      %2218 = vmatpush.bf16.msra.mxu0 0
      %2219 = vmatpush.bf16.msra.mxu0 0
      %2220 = vmatpush.bf16.msra.mxu0 0
      %2221 = vmatpush.bf16.msra.mxu0 0
      %2222 = vmatpush.bf16.msra.mxu0 0
      %2223 = vmatpush.bf16.msra.mxu0 %v2099
      %2224 = vmatpush.bf16.msra.mxu0 %v2091
      %2225 = vmatmul.bf16.gmra.mxu0 %v2117
      %v2226 = vpop.f32.mrf.mxu0
      %v2227 = vadd.f32 %v2038, %v2226
      %v2228 = vpop.f32.mrf.mxu0
      %v2229 = vadd.f32 %v2040, %v2228
      %2230 = vdwg.mxu0
      %s2231 = scalar_lea.vmem %s3, 64
      %v2232 = vld [vmem:[%s2231] sm:$0xf]
      %v2233 = vld [vmem:[%s2231 + $0x4] sm:$0xf]
      %v2236 = vunpack.c.l.b16 %v2232
      %v2237 = vunpack.c.l.b16 %v2233
      %v2238 = vpack.c.b16 %v2237, %v2236
      %2239 = vrot.lane.b32.xlu0 %v945, 95
      %v2240 = vpop.permute.xlu0 %2239
      %2241 = vrot.lane.b32.xlu0 %v946, 95
      %v2242 = vpop.permute.xlu0 %2241
      %2243 = vrot.lane.b32.xlu0 %v947, 95
      %v2244 = vpop.permute.xlu0 %2243
      %2245 = vrot.lane.b32.xlu0 %v948, 95
      %v2246 = vpop.permute.xlu0 %2245
      %2247 = vrot.lane.b32.xlu0 %v949, 95
      %v2248 = vpop.permute.xlu0 %2247
      %2249 = vrot.lane.b32.xlu0 %v950, 95
      %v2250 = vpop.permute.xlu0 %2249
      %2251 = vrot.lane.b32.xlu0 %v951, 95
      %v2252 = vpop.permute.xlu0 %2251
      %2253 = vrot.lane.b32.xlu0 %v952, 95
      %v2254 = vpop.permute.xlu0 %2253
      %2255 = vrot.lane.b32.xlu0 %v953, 95
      %v2256 = vpop.permute.xlu0 %2255
      %2257 = vrot.lane.b32.xlu0 %v954, 95
      %v2258 = vpop.permute.xlu0 %2257
      %2259 = vrot.lane.b32.xlu0 %v955, 95
      %v2260 = vpop.permute.xlu0 %2259
      %2261 = vrot.lane.b32.xlu0 %v956, 95
      %v2262 = vpop.permute.xlu0 %2261
      %2263 = vrot.lane.b32.xlu0 %v957, 95
      %v2264 = vpop.permute.xlu0 %2263
      %2265 = vrot.lane.b32.xlu0 %v958, 95
      %v2266 = vpop.permute.xlu0 %2265
      %2267 = vrot.lane.b32.xlu0 %v959, 95
      %v2268 = vpop.permute.xlu0 %2267
      %2269 = vrot.lane.b32.xlu0 %v960, 95
      %v2270 = vpop.permute.xlu0 %2269
      %2271 = vrot.lane.b32.xlu0 %v961, 95
      %v2272 = vpop.permute.xlu0 %2271
      %2273 = vrot.lane.b32.xlu0 %v962, 95
      %v2274 = vpop.permute.xlu0 %2273
      %vm2275 = vcmask 777216
      %v2276 = vsel %vm2275, %v2240, %v2242
      %v2277 = vsel %vm2275, %v2242, %v2244
      %v2278 = vsel %vm2275, %v2244, %v2246
      %v2279 = vsel %vm2275, %v2246, %v2248
      %v2280 = vsel %vm2275, %v2248, %v2250
      %v2281 = vsel %vm2275, %v2250, %v2252
      %v2282 = vsel %vm2275, %v2252, %v2254
      %v2283 = vsel %vm2275, %v2254, %v2256
      %v2284 = vsel %vm2275, %v2258, %v2260
      %v2285 = vsel %vm2275, %v2260, %v2262
      %v2286 = vsel %vm2275, %v2262, %v2264
      %v2287 = vsel %vm2275, %v2264, %v2266
      %v2288 = vsel %vm2275, %v2266, %v2268
      %v2289 = vsel %vm2275, %v2268, %v2270
      %v2290 = vsel %vm2275, %v2270, %v2272
      %v2291 = vsel %vm2275, %v2272, %v2274
      %v2309 = vsel %vm556, %v2238, 0
      %2311 = vmatpush.bf16.msra.mxu0 0
      %2312 = vmatpush.bf16.msra.mxu0 0
      %2313 = vmatpush.bf16.msra.mxu0 0
      %2314 = vmatpush.bf16.msra.mxu0 0
      %2315 = vmatpush.bf16.msra.mxu0 0
      %2316 = vmatpush.bf16.msra.mxu0 0
      %2317 = vmatpush.bf16.msra.mxu0 %v2284
      %2318 = vmatpush.bf16.msra.mxu0 %v2276
      %2319 = vmatmul.bf16.gmra.mxu0 %v2309
      %v2320 = vpop.f32.mrf.mxu0
      %v2321 = vadd.f32 0.0, %v2320
      %v2322 = vpop.f32.mrf.mxu0
      %v2323 = vadd.f32 0.0, %v2322
      %2324 = vdwg.mxu0
      %2325 = vmatpush.bf16.msra.mxu0 0
      %2326 = vmatpush.bf16.msra.mxu0 0
      %2327 = vmatpush.bf16.msra.mxu0 0
      %2328 = vmatpush.bf16.msra.mxu0 0
      %2329 = vmatpush.bf16.msra.mxu0 0
      %2330 = vmatpush.bf16.msra.mxu0 0
      %2331 = vmatpush.bf16.msra.mxu0 %v2285
      %2332 = vmatpush.bf16.msra.mxu0 %v2277
      %2333 = vmatmul.bf16.gmra.mxu0 %v2309
      %v2334 = vpop.f32.mrf.mxu0
      %v2335 = vadd.f32 0.0, %v2334
      %v2336 = vpop.f32.mrf.mxu0
      %v2337 = vadd.f32 0.0, %v2336
      %2338 = vdwg.mxu0
      %2339 = vmatpush.bf16.msra.mxu0 0
      %2340 = vmatpush.bf16.msra.mxu0 0
      %2341 = vmatpush.bf16.msra.mxu0 0
      %2342 = vmatpush.bf16.msra.mxu0 0
      %2343 = vmatpush.bf16.msra.mxu0 0
      %2344 = vmatpush.bf16.msra.mxu0 0
      %2345 = vmatpush.bf16.msra.mxu0 %v2286
      %2346 = vmatpush.bf16.msra.mxu0 %v2278
      %2347 = vmatmul.bf16.gmra.mxu0 %v2309
      %v2348 = vpop.f32.mrf.mxu0
      %v2349 = vadd.f32 0.0, %v2348
      %v2350 = vpop.f32.mrf.mxu0
      %v2351 = vadd.f32 0.0, %v2350
      %2352 = vdwg.mxu0
      %2353 = vmatpush.bf16.msra.mxu0 0
      %2354 = vmatpush.bf16.msra.mxu0 0
      %2355 = vmatpush.bf16.msra.mxu0 0
      %2356 = vmatpush.bf16.msra.mxu0 0
      %2357 = vmatpush.bf16.msra.mxu0 0
      %2358 = vmatpush.bf16.msra.mxu0 0
      %2359 = vmatpush.bf16.msra.mxu0 %v2287
      %2360 = vmatpush.bf16.msra.mxu0 %v2279
      %2361 = vmatmul.bf16.gmra.mxu0 %v2309
      %v2362 = vpop.f32.mrf.mxu0
      %v2363 = vadd.f32 0.0, %v2362
      %v2364 = vpop.f32.mrf.mxu0
      %v2365 = vadd.f32 0.0, %v2364
      %2366 = vdwg.mxu0
      %2367 = vmatpush.bf16.msra.mxu0 0
      %2368 = vmatpush.bf16.msra.mxu0 0
      %2369 = vmatpush.bf16.msra.mxu0 0
      %2370 = vmatpush.bf16.msra.mxu0 0
      %2371 = vmatpush.bf16.msra.mxu0 0
      %2372 = vmatpush.bf16.msra.mxu0 0
      %2373 = vmatpush.bf16.msra.mxu0 %v2288
      %2374 = vmatpush.bf16.msra.mxu0 %v2280
      %2375 = vmatmul.bf16.gmra.mxu0 %v2309
      %v2376 = vpop.f32.mrf.mxu0
      %v2377 = vadd.f32 0.0, %v2376
      %v2378 = vpop.f32.mrf.mxu0
      %v2379 = vadd.f32 0.0, %v2378
      %2380 = vdwg.mxu0
      %2381 = vmatpush.bf16.msra.mxu0 0
      %2382 = vmatpush.bf16.msra.mxu0 0
      %2383 = vmatpush.bf16.msra.mxu0 0
      %2384 = vmatpush.bf16.msra.mxu0 0
      %2385 = vmatpush.bf16.msra.mxu0 0
      %2386 = vmatpush.bf16.msra.mxu0 0
      %2387 = vmatpush.bf16.msra.mxu0 %v2289
      %2388 = vmatpush.bf16.msra.mxu0 %v2281
      %2389 = vmatmul.bf16.gmra.mxu0 %v2309
      %v2390 = vpop.f32.mrf.mxu0
      %v2391 = vadd.f32 0.0, %v2390
      %v2392 = vpop.f32.mrf.mxu0
      %v2393 = vadd.f32 0.0, %v2392
      %2394 = vdwg.mxu0
      %2395 = vmatpush.bf16.msra.mxu0 0
      %2396 = vmatpush.bf16.msra.mxu0 0
      %2397 = vmatpush.bf16.msra.mxu0 0
      %2398 = vmatpush.bf16.msra.mxu0 0
      %2399 = vmatpush.bf16.msra.mxu0 0
      %2400 = vmatpush.bf16.msra.mxu0 0
      %2401 = vmatpush.bf16.msra.mxu0 %v2290
      %2402 = vmatpush.bf16.msra.mxu0 %v2282
      %2403 = vmatmul.bf16.gmra.mxu0 %v2309
      %v2404 = vpop.f32.mrf.mxu0
      %v2405 = vadd.f32 0.0, %v2404
      %v2406 = vpop.f32.mrf.mxu0
      %v2407 = vadd.f32 0.0, %v2406
      %2408 = vdwg.mxu0
      %2409 = vmatpush.bf16.msra.mxu0 0
      %2410 = vmatpush.bf16.msra.mxu0 0
      %2411 = vmatpush.bf16.msra.mxu0 0
      %2412 = vmatpush.bf16.msra.mxu0 0
      %2413 = vmatpush.bf16.msra.mxu0 0
      %2414 = vmatpush.bf16.msra.mxu0 0
      %2415 = vmatpush.bf16.msra.mxu0 %v2291
      %2416 = vmatpush.bf16.msra.mxu0 %v2283
      %2417 = vmatmul.bf16.gmra.mxu0 %v2309
      %v2418 = vpop.f32.mrf.mxu0
      %v2419 = vadd.f32 0.0, %v2418
      %v2420 = vpop.f32.mrf.mxu0
      %v2421 = vadd.f32 0.0, %v2420
      %2422 = vdwg.mxu0
      %v2423 = vadd.f32 %v2129, %v2321
      %v2424 = vadd.f32 %v2143, %v2335
      %v2425 = vadd.f32 %v2157, %v2349
      %v2426 = vadd.f32 %v2171, %v2363
      %v2427 = vadd.f32 %v2185, %v2377
      %v2428 = vadd.f32 %v2199, %v2391
      %v2429 = vadd.f32 %v2213, %v2405
      %v2430 = vadd.f32 %v2227, %v2419
      %v2431 = vadd.f32 %v2131, %v2323
      %v2432 = vadd.f32 %v2145, %v2337
      %v2433 = vadd.f32 %v2159, %v2351
      %v2434 = vadd.f32 %v2173, %v2365
      %v2435 = vadd.f32 %v2187, %v2379
      %v2436 = vadd.f32 %v2201, %v2393
      %v2437 = vadd.f32 %v2215, %v2407
      %v2438 = vadd.f32 %v2229, %v2421
      %v2440 = vperm.slane %v370, 0
      %v2441 = vperm.slane %v370, 1
      %v2442 = vperm.slane %v370, 2
      %v2443 = vperm.slane %v370, 3
      %v2444 = vperm.slane %v370, 4
      %v2445 = vperm.slane %v370, 5
      %v2446 = vperm.slane %v370, 6
      %v2447 = vperm.slane %v370, 7
      %v2456 = vmul.f32 %v2423, %v2440
      %v2457 = vmul.f32 %v2424, %v2441
      %v2458 = vmul.f32 %v2425, %v2442
      %v2459 = vmul.f32 %v2426, %v2443
      %v2460 = vmul.f32 %v2427, %v2444
      %v2461 = vmul.f32 %v2428, %v2445
      %v2462 = vmul.f32 %v2429, %v2446
      %v2463 = vmul.f32 %v2430, %v2447
      %v2464 = vmul.f32 %v2431, %v2440
      %v2465 = vmul.f32 %v2432, %v2441
      %v2466 = vmul.f32 %v2433, %v2442
      %v2467 = vmul.f32 %v2434, %v2443
      %v2468 = vmul.f32 %v2435, %v2444
      %v2469 = vmul.f32 %v2436, %v2445
      %v2470 = vmul.f32 %v2437, %v2446
      %v2471 = vmul.f32 %v2438, %v2447
      %v2472 = vadd.f32 %v1831, %v2456
      %v2473 = vadd.f32 %v1832, %v2457
      %v2474 = vadd.f32 %v1833, %v2458
      %v2475 = vadd.f32 %v1834, %v2459
      %v2476 = vadd.f32 %v1835, %v2460
      %v2477 = vadd.f32 %v1836, %v2461
      %v2478 = vadd.f32 %v1837, %v2462
      %v2479 = vadd.f32 %v1838, %v2463
      %v2480 = vadd.f32 %v1839, %v2464
      %v2481 = vadd.f32 %v1840, %v2465
      %v2482 = vadd.f32 %v1841, %v2466
      %v2483 = vadd.f32 %v1842, %v2467
      %v2484 = vadd.f32 %v1843, %v2468
      %v2485 = vadd.f32 %v1844, %v2469
      %v2486 = vadd.f32 %v1845, %v2470
      %v2487 = vadd.f32 %v1846, %v2471
      %v2488 = vmax.f32 %v2472, 0.0
      %v2489 = vmax.f32 %v2473, 0.0
      %v2490 = vmax.f32 %v2474, 0.0
      %v2491 = vmax.f32 %v2475, 0.0
      %v2492 = vmax.f32 %v2476, 0.0
      %v2493 = vmax.f32 %v2477, 0.0
      %v2494 = vmax.f32 %v2478, 0.0
      %v2495 = vmax.f32 %v2479, 0.0
      %v2496 = vmax.f32 %v2480, 0.0
      %v2497 = vmax.f32 %v2481, 0.0
      %v2498 = vmax.f32 %v2482, 0.0
      %v2499 = vmax.f32 %v2483, 0.0
      %v2500 = vmax.f32 %v2484, 0.0
      %v2501 = vmax.f32 %v2485, 0.0
      %v2502 = vmax.f32 %v2486, 0.0
      %v2503 = vmax.f32 %v2487, 0.0
      %2504 = vst [vmem:[#allocation3] sm:$0xff] 0
      %2505 = vst [vmem:[#allocation3 + $0x8] sm:$0xff] 0
      %2506 = vst [vmem:[#allocation3 + $0x10] sm:$0xff] 0
      %2507 = vst [vmem:[#allocation3 + $0x18] sm:$0xff] 0
      %2508 = vst [vmem:[#allocation3 + $0x20] sm:$0xff] 0
      %2509 = vst [vmem:[#allocation3 + $0x28] sm:$0xff] 0
      %2510 = vst [vmem:[#allocation3 + $0x30] sm:$0xff] 0
      %2511 = vst [vmem:[#allocation3 + $0x38] sm:$0xff] 0
      %2512 = vst [vmem:[#allocation3 + $0x40] sm:$0xff] 0
      %2513 = vst [vmem:[#allocation3 + $0x48] sm:$0xff] 0
      %v2514 = vpack.c.bf16 %v2489, %v2488
      %v2515 = vpack.c.bf16 %v2491, %v2490
      %v2516 = vpack.c.bf16 %v2493, %v2492
      %v2517 = vpack.c.bf16 %v2495, %v2494
      %v2518 = vpack.c.bf16 %v2497, %v2496
      %v2519 = vpack.c.bf16 %v2499, %v2498
      %v2520 = vpack.c.bf16 %v2501, %v2500
      %v2521 = vpack.c.bf16 %v2503, %v2502
      %2522 = vst [vmem:[#allocation3 + $0x4] sm:$0xff] %v2514
      %2523 = vst [vmem:[#allocation3 + $0xc] sm:$0xff] %v2515
      %2524 = vst [vmem:[#allocation3 + $0x14] sm:$0xff] %v2516
      %2525 = vst [vmem:[#allocation3 + $0x1c] sm:$0xff] %v2517
      %2526 = vst [vmem:[#allocation3 + $0x2c] sm:$0xff] %v2518
      %2527 = vst [vmem:[#allocation3 + $0x34] sm:$0xff] %v2519
      %2528 = vst [vmem:[#allocation3 + $0x3c] sm:$0xff] %v2520
      %2529 = vst [vmem:[#allocation3 + $0x44] sm:$0xff] %v2521
      %v2530 = vld [vmem:[%s6] sm:$0xff]
      %v2531 = vld [vmem:[%s6 + $0x8] sm:$0xff]
      %2533 = vset.pattern.permute.xlu0 0
      %2534 = vperm.xlu0 %2533, %v2530
      %v2535 = vpop.permute.xlu0 %2534
      %2538 = vset.pattern.permute.xlu0 0
      %2539 = vperm.xlu0 %2538, %v2531
      %v2540 = vpop.permute.xlu0 %2539
      %v2542 = vld [vmem:[#allocation3] sm:$0xff]
      %v2543 = vld [vmem:[#allocation3 + $0x8] sm:$0xff]
      %v2544 = vld [vmem:[#allocation3 + $0x10] sm:$0xff]
      %v2545 = vld [vmem:[#allocation3 + $0x18] sm:$0xff]
      %v2546 = vld [vmem:[#allocation3 + $0x20] sm:$0xf]
      %v2547 = vld [vmem:[#allocation3 + $0x28] sm:$0xff]
      %v2548 = vld [vmem:[#allocation3 + $0x30] sm:$0xff]
      %v2549 = vld [vmem:[#allocation3 + $0x38] sm:$0xff]
      %v2550 = vld [vmem:[#allocation3 + $0x40] sm:$0xff]
      %v2551 = vld [vmem:[#allocation3 + $0x48] sm:$0xf]
      %v2552 = vld [vmem:[%s5] sm:$0xf]
      %v2553 = vld [vmem:[%s5 + $0x4] sm:$0xf]
      %s2554 = scalar_lea.vmem %s5, 24
      %v2555 = vld [vmem:[%s2554] sm:$0xf]
      %v2556 = vld [vmem:[%s2554 + $0x4] sm:$0xf]
      %v2559 = vunpack.c.l.b16 %v2555
      %v2560 = vunpack.c.l.b16 %v2556
      %v2561 = vpack.c.b16 %v2560, %v2559
      %v2572 = vunpack.c.l.b16 %v2542
      %v2573 = vunpack.c.h.b16 %v2542
      %v2574 = vunpack.c.l.b16 %v2543
      %v2575 = vunpack.c.h.b16 %v2543
      %v2576 = vunpack.c.l.b16 %v2544
      %v2577 = vunpack.c.h.b16 %v2544
      %v2578 = vunpack.c.l.b16 %v2545
      %v2579 = vunpack.c.h.b16 %v2545
      %v2580 = vunpack.c.l.b16 %v2546
      %v2581 = vunpack.c.l.b16 %v2547
      %v2582 = vunpack.c.h.b16 %v2547
      %v2583 = vunpack.c.l.b16 %v2548
      %v2584 = vunpack.c.h.b16 %v2548
      %v2585 = vunpack.c.l.b16 %v2549
      %v2586 = vunpack.c.h.b16 %v2549
      %v2587 = vunpack.c.l.b16 %v2550
      %v2588 = vunpack.c.h.b16 %v2550
      %v2589 = vunpack.c.l.b16 %v2551
      %v2590 = vpack.c.b16 %v2581, %v2572
      %v2591 = vpack.c.b16 %v2582, %v2573
      %v2592 = vpack.c.b16 %v2583, %v2574
      %v2593 = vpack.c.b16 %v2584, %v2575
      %v2594 = vpack.c.b16 %v2585, %v2576
      %v2595 = vpack.c.b16 %v2586, %v2577
      %v2596 = vpack.c.b16 %v2587, %v2578
      %v2597 = vpack.c.b16 %v2588, %v2579
      %v2598 = vpack.c.b16 %v2589, %v2580
      %2599 = vrot.lane.b32.xlu0 %v2590, 1
      %v2600 = vpop.permute.xlu0 %2599
      %2601 = vrot.lane.b32.xlu0 %v2591, 1
      %v2602 = vpop.permute.xlu0 %2601
      %2603 = vrot.lane.b32.xlu0 %v2592, 1
      %v2604 = vpop.permute.xlu0 %2603
      %2605 = vrot.lane.b32.xlu0 %v2593, 1
      %v2606 = vpop.permute.xlu0 %2605
      %2607 = vrot.lane.b32.xlu0 %v2594, 1
      %v2608 = vpop.permute.xlu0 %2607
      %2609 = vrot.lane.b32.xlu0 %v2595, 1
      %v2610 = vpop.permute.xlu0 %2609
      %2611 = vrot.lane.b32.xlu0 %v2596, 1
      %v2612 = vpop.permute.xlu0 %2611
      %2613 = vrot.lane.b32.xlu0 %v2597, 1
      %v2614 = vpop.permute.xlu0 %2613
      %2615 = vrot.lane.b32.xlu0 %v2598, 1
      %v2616 = vpop.permute.xlu0 %2615
      %v2617 = vsel %vm523, %v2600, %v2602
      %v2618 = vsel %vm523, %v2602, %v2604
      %v2619 = vsel %vm523, %v2604, %v2606
      %v2620 = vsel %vm523, %v2606, %v2608
      %v2621 = vsel %vm523, %v2608, %v2610
      %v2622 = vsel %vm523, %v2610, %v2612
      %v2623 = vsel %vm523, %v2612, %v2614
      %v2624 = vsel %vm523, %v2614, %v2616
      %vm2633 = vcmask 130048
      %v2635 = vsel %vm2633, %v2561, 0
      %2637 = vmatpush.bf16.msra.mxu0 0
      %2638 = vmatpush.bf16.msra.mxu0 0
      %2639 = vmatpush.bf16.msra.mxu0 0
      %2640 = vmatpush.bf16.msra.mxu0 0
      %2641 = vmatpush.bf16.msra.mxu0 0
      %2642 = vmatpush.bf16.msra.mxu0 0
      %2643 = vmatpush.bf16.msra.mxu0 0
      %2644 = vmatpush.bf16.msra.mxu0 %v2617
      %2645 = vmatmul.bf16.gmra.mxu0 %v2635
      %v2646 = vpop.f32.mrf.mxu0
      %v2647 = vadd.f32 0.0, %v2646
      %v2648 = vpop.f32.mrf.mxu0
      %v2649 = vadd.f32 0.0, %v2648
      %2650 = vdwg.mxu0
      %2651 = vmatpush.bf16.msra.mxu0 0
      %2652 = vmatpush.bf16.msra.mxu0 0
      %2653 = vmatpush.bf16.msra.mxu0 0
      %2654 = vmatpush.bf16.msra.mxu0 0
      %2655 = vmatpush.bf16.msra.mxu0 0
      %2656 = vmatpush.bf16.msra.mxu0 0
      %2657 = vmatpush.bf16.msra.mxu0 0
      %2658 = vmatpush.bf16.msra.mxu0 %v2618
      %2659 = vmatmul.bf16.gmra.mxu0 %v2635
      %v2660 = vpop.f32.mrf.mxu0
      %v2661 = vadd.f32 0.0, %v2660
      %v2662 = vpop.f32.mrf.mxu0
      %v2663 = vadd.f32 0.0, %v2662
      %2664 = vdwg.mxu0
      %2665 = vmatpush.bf16.msra.mxu0 0
      %2666 = vmatpush.bf16.msra.mxu0 0
      %2667 = vmatpush.bf16.msra.mxu0 0
      %2668 = vmatpush.bf16.msra.mxu0 0
      %2669 = vmatpush.bf16.msra.mxu0 0
      %2670 = vmatpush.bf16.msra.mxu0 0
      %2671 = vmatpush.bf16.msra.mxu0 0
      %2672 = vmatpush.bf16.msra.mxu0 %v2619
      %2673 = vmatmul.bf16.gmra.mxu0 %v2635
      %v2674 = vpop.f32.mrf.mxu0
      %v2675 = vadd.f32 0.0, %v2674
      %v2676 = vpop.f32.mrf.mxu0
      %v2677 = vadd.f32 0.0, %v2676
      %2678 = vdwg.mxu0
      %2679 = vmatpush.bf16.msra.mxu0 0
      %2680 = vmatpush.bf16.msra.mxu0 0
      %2681 = vmatpush.bf16.msra.mxu0 0
      %2682 = vmatpush.bf16.msra.mxu0 0
      %2683 = vmatpush.bf16.msra.mxu0 0
      %2684 = vmatpush.bf16.msra.mxu0 0
      %2685 = vmatpush.bf16.msra.mxu0 0
      %2686 = vmatpush.bf16.msra.mxu0 %v2620
      %2687 = vmatmul.bf16.gmra.mxu0 %v2635
      %v2688 = vpop.f32.mrf.mxu0
      %v2689 = vadd.f32 0.0, %v2688
      %v2690 = vpop.f32.mrf.mxu0
      %v2691 = vadd.f32 0.0, %v2690
      %2692 = vdwg.mxu0
      %2693 = vmatpush.bf16.msra.mxu0 0
      %2694 = vmatpush.bf16.msra.mxu0 0
      %2695 = vmatpush.bf16.msra.mxu0 0
      %2696 = vmatpush.bf16.msra.mxu0 0
      %2697 = vmatpush.bf16.msra.mxu0 0
      %2698 = vmatpush.bf16.msra.mxu0 0
      %2699 = vmatpush.bf16.msra.mxu0 0
      %2700 = vmatpush.bf16.msra.mxu0 %v2621
      %2701 = vmatmul.bf16.gmra.mxu0 %v2635
      %v2702 = vpop.f32.mrf.mxu0
      %v2703 = vadd.f32 0.0, %v2702
      %v2704 = vpop.f32.mrf.mxu0
      %v2705 = vadd.f32 0.0, %v2704
      %2706 = vdwg.mxu0
      %2707 = vmatpush.bf16.msra.mxu0 0
      %2708 = vmatpush.bf16.msra.mxu0 0
      %2709 = vmatpush.bf16.msra.mxu0 0
      %2710 = vmatpush.bf16.msra.mxu0 0
      %2711 = vmatpush.bf16.msra.mxu0 0
      %2712 = vmatpush.bf16.msra.mxu0 0
      %2713 = vmatpush.bf16.msra.mxu0 0
      %2714 = vmatpush.bf16.msra.mxu0 %v2622
      %2715 = vmatmul.bf16.gmra.mxu0 %v2635
      %v2716 = vpop.f32.mrf.mxu0
      %v2717 = vadd.f32 0.0, %v2716
      %v2718 = vpop.f32.mrf.mxu0
      %v2719 = vadd.f32 0.0, %v2718
      %2720 = vdwg.mxu0
      %2721 = vmatpush.bf16.msra.mxu0 0
      %2722 = vmatpush.bf16.msra.mxu0 0
      %2723 = vmatpush.bf16.msra.mxu0 0
      %2724 = vmatpush.bf16.msra.mxu0 0
      %2725 = vmatpush.bf16.msra.mxu0 0
      %2726 = vmatpush.bf16.msra.mxu0 0
      %2727 = vmatpush.bf16.msra.mxu0 0
      %2728 = vmatpush.bf16.msra.mxu0 %v2623
      %2729 = vmatmul.bf16.gmra.mxu0 %v2635
      %v2730 = vpop.f32.mrf.mxu0
      %v2731 = vadd.f32 0.0, %v2730
      %v2732 = vpop.f32.mrf.mxu0
      %v2733 = vadd.f32 0.0, %v2732
      %2734 = vdwg.mxu0
      %2735 = vmatpush.bf16.msra.mxu0 0
      %2736 = vmatpush.bf16.msra.mxu0 0
      %2737 = vmatpush.bf16.msra.mxu0 0
      %2738 = vmatpush.bf16.msra.mxu0 0
      %2739 = vmatpush.bf16.msra.mxu0 0
      %2740 = vmatpush.bf16.msra.mxu0 0
      %2741 = vmatpush.bf16.msra.mxu0 0
      %2742 = vmatpush.bf16.msra.mxu0 %v2624
      %2743 = vmatmul.bf16.gmra.mxu0 %v2635
      %v2744 = vpop.f32.mrf.mxu0
      %v2745 = vadd.f32 0.0, %v2744
      %v2746 = vpop.f32.mrf.mxu0
      %v2747 = vadd.f32 0.0, %v2746
      %2748 = vdwg.mxu0
      %v2751 = vunpack.c.l.b16 %v2552
      %v2752 = vunpack.c.l.b16 %v2553
      %v2753 = vpack.c.b16 %v2752, %v2751
      %2754 = vrot.lane.b32.xlu0 %v2590, 33
      %v2755 = vpop.permute.xlu0 %2754
      %2756 = vrot.lane.b32.xlu0 %v2591, 33
      %v2757 = vpop.permute.xlu0 %2756
      %2758 = vrot.lane.b32.xlu0 %v2592, 33
      %v2759 = vpop.permute.xlu0 %2758
      %2760 = vrot.lane.b32.xlu0 %v2593, 33
      %v2761 = vpop.permute.xlu0 %2760
      %2762 = vrot.lane.b32.xlu0 %v2594, 33
      %v2763 = vpop.permute.xlu0 %2762
      %2764 = vrot.lane.b32.xlu0 %v2595, 33
      %v2765 = vpop.permute.xlu0 %2764
      %2766 = vrot.lane.b32.xlu0 %v2596, 33
      %v2767 = vpop.permute.xlu0 %2766
      %2768 = vrot.lane.b32.xlu0 %v2597, 33
      %v2769 = vpop.permute.xlu0 %2768
      %2770 = vrot.lane.b32.xlu0 %v2598, 33
      %v2771 = vpop.permute.xlu0 %2770
      %v2772 = vsel %vm713, %v2755, %v2757
      %v2773 = vsel %vm713, %v2757, %v2759
      %v2774 = vsel %vm713, %v2759, %v2761
      %v2775 = vsel %vm713, %v2761, %v2763
      %v2776 = vsel %vm713, %v2763, %v2765
      %v2777 = vsel %vm713, %v2765, %v2767
      %v2778 = vsel %vm713, %v2767, %v2769
      %v2779 = vsel %vm713, %v2769, %v2771
      %v2789 = vsel %vm2633, %v2753, 0
      %2791 = vmatpush.bf16.msra.mxu0 0
      %2792 = vmatpush.bf16.msra.mxu0 0
      %2793 = vmatpush.bf16.msra.mxu0 0
      %2794 = vmatpush.bf16.msra.mxu0 0
      %2795 = vmatpush.bf16.msra.mxu0 0
      %2796 = vmatpush.bf16.msra.mxu0 0
      %2797 = vmatpush.bf16.msra.mxu0 0
      %2798 = vmatpush.bf16.msra.mxu0 %v2772
      %2799 = vmatmul.bf16.gmra.mxu0 %v2789
      %v2800 = vpop.f32.mrf.mxu0
      %v2801 = vadd.f32 %v2647, %v2800
      %v2802 = vpop.f32.mrf.mxu0
      %v2803 = vadd.f32 %v2649, %v2802
      %2804 = vdwg.mxu0
      %2805 = vmatpush.bf16.msra.mxu0 0
      %2806 = vmatpush.bf16.msra.mxu0 0
      %2807 = vmatpush.bf16.msra.mxu0 0
      %2808 = vmatpush.bf16.msra.mxu0 0
      %2809 = vmatpush.bf16.msra.mxu0 0
      %2810 = vmatpush.bf16.msra.mxu0 0
      %2811 = vmatpush.bf16.msra.mxu0 0
      %2812 = vmatpush.bf16.msra.mxu0 %v2773
      %2813 = vmatmul.bf16.gmra.mxu0 %v2789
      %v2814 = vpop.f32.mrf.mxu0
      %v2815 = vadd.f32 %v2661, %v2814
      %v2816 = vpop.f32.mrf.mxu0
      %v2817 = vadd.f32 %v2663, %v2816
      %2818 = vdwg.mxu0
      %2819 = vmatpush.bf16.msra.mxu0 0
      %2820 = vmatpush.bf16.msra.mxu0 0
      %2821 = vmatpush.bf16.msra.mxu0 0
      %2822 = vmatpush.bf16.msra.mxu0 0
      %2823 = vmatpush.bf16.msra.mxu0 0
      %2824 = vmatpush.bf16.msra.mxu0 0
      %2825 = vmatpush.bf16.msra.mxu0 0
      %2826 = vmatpush.bf16.msra.mxu0 %v2774
      %2827 = vmatmul.bf16.gmra.mxu0 %v2789
      %v2828 = vpop.f32.mrf.mxu0
      %v2829 = vadd.f32 %v2675, %v2828
      %v2830 = vpop.f32.mrf.mxu0
      %v2831 = vadd.f32 %v2677, %v2830
      %2832 = vdwg.mxu0
      %2833 = vmatpush.bf16.msra.mxu0 0
      %2834 = vmatpush.bf16.msra.mxu0 0
      %2835 = vmatpush.bf16.msra.mxu0 0
      %2836 = vmatpush.bf16.msra.mxu0 0
      %2837 = vmatpush.bf16.msra.mxu0 0
      %2838 = vmatpush.bf16.msra.mxu0 0
      %2839 = vmatpush.bf16.msra.mxu0 0
      %2840 = vmatpush.bf16.msra.mxu0 %v2775
      %2841 = vmatmul.bf16.gmra.mxu0 %v2789
      %v2842 = vpop.f32.mrf.mxu0
      %v2843 = vadd.f32 %v2689, %v2842
      %v2844 = vpop.f32.mrf.mxu0
      %v2845 = vadd.f32 %v2691, %v2844
      %2846 = vdwg.mxu0
      %2847 = vmatpush.bf16.msra.mxu0 0
      %2848 = vmatpush.bf16.msra.mxu0 0
      %2849 = vmatpush.bf16.msra.mxu0 0
      %2850 = vmatpush.bf16.msra.mxu0 0
      %2851 = vmatpush.bf16.msra.mxu0 0
      %2852 = vmatpush.bf16.msra.mxu0 0
      %2853 = vmatpush.bf16.msra.mxu0 0
      %2854 = vmatpush.bf16.msra.mxu0 %v2776
      %2855 = vmatmul.bf16.gmra.mxu0 %v2789
      %v2856 = vpop.f32.mrf.mxu0
      %v2857 = vadd.f32 %v2703, %v2856
      %v2858 = vpop.f32.mrf.mxu0
      %v2859 = vadd.f32 %v2705, %v2858
      %2860 = vdwg.mxu0
      %2861 = vmatpush.bf16.msra.mxu0 0
      %2862 = vmatpush.bf16.msra.mxu0 0
      %2863 = vmatpush.bf16.msra.mxu0 0
      %2864 = vmatpush.bf16.msra.mxu0 0
      %2865 = vmatpush.bf16.msra.mxu0 0
      %2866 = vmatpush.bf16.msra.mxu0 0
      %2867 = vmatpush.bf16.msra.mxu0 0
      %2868 = vmatpush.bf16.msra.mxu0 %v2777
      %2869 = vmatmul.bf16.gmra.mxu0 %v2789
      %v2870 = vpop.f32.mrf.mxu0
      %v2871 = vadd.f32 %v2717, %v2870
      %v2872 = vpop.f32.mrf.mxu0
      %v2873 = vadd.f32 %v2719, %v2872
      %2874 = vdwg.mxu0
      %2875 = vmatpush.bf16.msra.mxu0 0
      %2876 = vmatpush.bf16.msra.mxu0 0
      %2877 = vmatpush.bf16.msra.mxu0 0
      %2878 = vmatpush.bf16.msra.mxu0 0
      %2879 = vmatpush.bf16.msra.mxu0 0
      %2880 = vmatpush.bf16.msra.mxu0 0
      %2881 = vmatpush.bf16.msra.mxu0 0
      %2882 = vmatpush.bf16.msra.mxu0 %v2778
      %2883 = vmatmul.bf16.gmra.mxu0 %v2789
      %v2884 = vpop.f32.mrf.mxu0
      %v2885 = vadd.f32 %v2731, %v2884
      %v2886 = vpop.f32.mrf.mxu0
      %v2887 = vadd.f32 %v2733, %v2886
      %2888 = vdwg.mxu0
      %2889 = vmatpush.bf16.msra.mxu0 0
      %2890 = vmatpush.bf16.msra.mxu0 0
      %2891 = vmatpush.bf16.msra.mxu0 0
      %2892 = vmatpush.bf16.msra.mxu0 0
      %2893 = vmatpush.bf16.msra.mxu0 0
      %2894 = vmatpush.bf16.msra.mxu0 0
      %2895 = vmatpush.bf16.msra.mxu0 0
      %2896 = vmatpush.bf16.msra.mxu0 %v2779
      %2897 = vmatmul.bf16.gmra.mxu0 %v2789
      %v2898 = vpop.f32.mrf.mxu0
      %v2899 = vadd.f32 %v2745, %v2898
      %v2900 = vpop.f32.mrf.mxu0
      %v2901 = vadd.f32 %v2747, %v2900
      %2902 = vdwg.mxu0
      %v2903 = vld [vmem:[#allocation3 + $0x4] sm:$0xff]
      %v2904 = vld [vmem:[#allocation3 + $0xc] sm:$0xff]
      %v2905 = vld [vmem:[#allocation3 + $0x14] sm:$0xff]
      %v2906 = vld [vmem:[#allocation3 + $0x1c] sm:$0xff]
      %v2907 = vld [vmem:[#allocation3 + $0x24] sm:$0xf]
      %v2908 = vld [vmem:[#allocation3 + $0x2c] sm:$0xff]
      %v2909 = vld [vmem:[#allocation3 + $0x34] sm:$0xff]
      %v2910 = vld [vmem:[#allocation3 + $0x3c] sm:$0xff]
      %v2911 = vld [vmem:[#allocation3 + $0x44] sm:$0xff]
      %v2912 = vld [vmem:[#allocation3 + $0x4c] sm:$0xf]
      %s2913 = scalar_lea.vmem %s5, 48
      %v2914 = vld [vmem:[%s2913] sm:$0xf]
      %v2915 = vld [vmem:[%s2913 + $0x4] sm:$0xf]
      %v2918 = vunpack.c.l.b16 %v2914
      %v2919 = vunpack.c.l.b16 %v2915
      %v2920 = vpack.c.b16 %v2919, %v2918
      %v2931 = vunpack.c.l.b16 %v2903
      %v2932 = vunpack.c.h.b16 %v2903
      %v2933 = vunpack.c.l.b16 %v2904
      %v2934 = vunpack.c.h.b16 %v2904
      %v2935 = vunpack.c.l.b16 %v2905
      %v2936 = vunpack.c.h.b16 %v2905
      %v2937 = vunpack.c.l.b16 %v2906
      %v2938 = vunpack.c.h.b16 %v2906
      %v2939 = vunpack.c.l.b16 %v2907
      %v2940 = vunpack.c.l.b16 %v2908
      %v2941 = vunpack.c.h.b16 %v2908
      %v2942 = vunpack.c.l.b16 %v2909
      %v2943 = vunpack.c.h.b16 %v2909
      %v2944 = vunpack.c.l.b16 %v2910
      %v2945 = vunpack.c.h.b16 %v2910
      %v2946 = vunpack.c.l.b16 %v2911
      %v2947 = vunpack.c.h.b16 %v2911
      %v2948 = vunpack.c.l.b16 %v2912
      %v2949 = vpack.c.b16 %v2940, %v2931
      %v2950 = vpack.c.b16 %v2941, %v2932
      %v2951 = vpack.c.b16 %v2942, %v2933
      %v2952 = vpack.c.b16 %v2943, %v2934
      %v2953 = vpack.c.b16 %v2944, %v2935
      %v2954 = vpack.c.b16 %v2945, %v2936
      %v2955 = vpack.c.b16 %v2946, %v2937
      %v2956 = vpack.c.b16 %v2947, %v2938
      %v2957 = vpack.c.b16 %v2948, %v2939
      %2958 = vrot.lane.b32.xlu0 %v2949, 97
      %v2959 = vpop.permute.xlu0 %2958
      %2960 = vrot.lane.b32.xlu0 %v2950, 97
      %v2961 = vpop.permute.xlu0 %2960
      %2962 = vrot.lane.b32.xlu0 %v2951, 97
      %v2963 = vpop.permute.xlu0 %2962
      %2964 = vrot.lane.b32.xlu0 %v2952, 97
      %v2965 = vpop.permute.xlu0 %2964
      %2966 = vrot.lane.b32.xlu0 %v2953, 97
      %v2967 = vpop.permute.xlu0 %2966
      %2968 = vrot.lane.b32.xlu0 %v2954, 97
      %v2969 = vpop.permute.xlu0 %2968
      %2970 = vrot.lane.b32.xlu0 %v2955, 97
      %v2971 = vpop.permute.xlu0 %2970
      %2972 = vrot.lane.b32.xlu0 %v2956, 97
      %v2973 = vpop.permute.xlu0 %2972
      %2974 = vrot.lane.b32.xlu0 %v2957, 97
      %v2975 = vpop.permute.xlu0 %2974
      %v2976 = vsel %vm999, %v2959, %v2961
      %v2977 = vsel %vm999, %v2961, %v2963
      %v2978 = vsel %vm999, %v2963, %v2965
      %v2979 = vsel %vm999, %v2965, %v2967
      %v2980 = vsel %vm999, %v2967, %v2969
      %v2981 = vsel %vm999, %v2969, %v2971
      %v2982 = vsel %vm999, %v2971, %v2973
      %v2983 = vsel %vm999, %v2973, %v2975
      %v2993 = vsel %vm2633, %v2920, 0
      %2995 = vmatpush.bf16.msra.mxu0 0
      %2996 = vmatpush.bf16.msra.mxu0 0
      %2997 = vmatpush.bf16.msra.mxu0 0
      %2998 = vmatpush.bf16.msra.mxu0 0
      %2999 = vmatpush.bf16.msra.mxu0 0
      %3000 = vmatpush.bf16.msra.mxu0 0
      %3001 = vmatpush.bf16.msra.mxu0 0
      %3002 = vmatpush.bf16.msra.mxu0 %v2976
      %3003 = vmatmul.bf16.gmra.mxu0 %v2993
      %v3004 = vpop.f32.mrf.mxu0
      %v3005 = vadd.f32 0.0, %v3004
      %v3006 = vpop.f32.mrf.mxu0
      %v3007 = vadd.f32 0.0, %v3006
      %3008 = vdwg.mxu0
      %3009 = vmatpush.bf16.msra.mxu0 0
      %3010 = vmatpush.bf16.msra.mxu0 0
      %3011 = vmatpush.bf16.msra.mxu0 0
      %3012 = vmatpush.bf16.msra.mxu0 0
      %3013 = vmatpush.bf16.msra.mxu0 0
      %3014 = vmatpush.bf16.msra.mxu0 0
      %3015 = vmatpush.bf16.msra.mxu0 0
      %3016 = vmatpush.bf16.msra.mxu0 %v2977
      %3017 = vmatmul.bf16.gmra.mxu0 %v2993
      %v3018 = vpop.f32.mrf.mxu0
      %v3019 = vadd.f32 0.0, %v3018
      %v3020 = vpop.f32.mrf.mxu0
      %v3021 = vadd.f32 0.0, %v3020
      %3022 = vdwg.mxu0
      %3023 = vmatpush.bf16.msra.mxu0 0
      %3024 = vmatpush.bf16.msra.mxu0 0
      %3025 = vmatpush.bf16.msra.mxu0 0
      %3026 = vmatpush.bf16.msra.mxu0 0
      %3027 = vmatpush.bf16.msra.mxu0 0
      %3028 = vmatpush.bf16.msra.mxu0 0
      %3029 = vmatpush.bf16.msra.mxu0 0
      %3030 = vmatpush.bf16.msra.mxu0 %v2978
      %3031 = vmatmul.bf16.gmra.mxu0 %v2993
      %v3032 = vpop.f32.mrf.mxu0
      %v3033 = vadd.f32 0.0, %v3032
      %v3034 = vpop.f32.mrf.mxu0
      %v3035 = vadd.f32 0.0, %v3034
      %3036 = vdwg.mxu0
      %3037 = vmatpush.bf16.msra.mxu0 0
      %3038 = vmatpush.bf16.msra.mxu0 0
      %3039 = vmatpush.bf16.msra.mxu0 0
      %3040 = vmatpush.bf16.msra.mxu0 0
      %3041 = vmatpush.bf16.msra.mxu0 0
      %3042 = vmatpush.bf16.msra.mxu0 0
      %3043 = vmatpush.bf16.msra.mxu0 0
      %3044 = vmatpush.bf16.msra.mxu0 %v2979
      %3045 = vmatmul.bf16.gmra.mxu0 %v2993
      %v3046 = vpop.f32.mrf.mxu0
      %v3047 = vadd.f32 0.0, %v3046
      %v3048 = vpop.f32.mrf.mxu0
      %v3049 = vadd.f32 0.0, %v3048
      %3050 = vdwg.mxu0
      %3051 = vmatpush.bf16.msra.mxu0 0
      %3052 = vmatpush.bf16.msra.mxu0 0
      %3053 = vmatpush.bf16.msra.mxu0 0
      %3054 = vmatpush.bf16.msra.mxu0 0
      %3055 = vmatpush.bf16.msra.mxu0 0
      %3056 = vmatpush.bf16.msra.mxu0 0
      %3057 = vmatpush.bf16.msra.mxu0 0
      %3058 = vmatpush.bf16.msra.mxu0 %v2980
      %3059 = vmatmul.bf16.gmra.mxu0 %v2993
      %v3060 = vpop.f32.mrf.mxu0
      %v3061 = vadd.f32 0.0, %v3060
      %v3062 = vpop.f32.mrf.mxu0
      %v3063 = vadd.f32 0.0, %v3062
      %3064 = vdwg.mxu0
      %3065 = vmatpush.bf16.msra.mxu0 0
      %3066 = vmatpush.bf16.msra.mxu0 0
      %3067 = vmatpush.bf16.msra.mxu0 0
      %3068 = vmatpush.bf16.msra.mxu0 0
      %3069 = vmatpush.bf16.msra.mxu0 0
      %3070 = vmatpush.bf16.msra.mxu0 0
      %3071 = vmatpush.bf16.msra.mxu0 0
      %3072 = vmatpush.bf16.msra.mxu0 %v2981
      %3073 = vmatmul.bf16.gmra.mxu0 %v2993
      %v3074 = vpop.f32.mrf.mxu0
      %v3075 = vadd.f32 0.0, %v3074
      %v3076 = vpop.f32.mrf.mxu0
      %v3077 = vadd.f32 0.0, %v3076
      %3078 = vdwg.mxu0
      %3079 = vmatpush.bf16.msra.mxu0 0
      %3080 = vmatpush.bf16.msra.mxu0 0
      %3081 = vmatpush.bf16.msra.mxu0 0
      %3082 = vmatpush.bf16.msra.mxu0 0
      %3083 = vmatpush.bf16.msra.mxu0 0
      %3084 = vmatpush.bf16.msra.mxu0 0
      %3085 = vmatpush.bf16.msra.mxu0 0
      %3086 = vmatpush.bf16.msra.mxu0 %v2982
      %3087 = vmatmul.bf16.gmra.mxu0 %v2993
      %v3088 = vpop.f32.mrf.mxu0
      %v3089 = vadd.f32 0.0, %v3088
      %v3090 = vpop.f32.mrf.mxu0
      %v3091 = vadd.f32 0.0, %v3090
      %3092 = vdwg.mxu0
      %3093 = vmatpush.bf16.msra.mxu0 0
      %3094 = vmatpush.bf16.msra.mxu0 0
      %3095 = vmatpush.bf16.msra.mxu0 0
      %3096 = vmatpush.bf16.msra.mxu0 0
      %3097 = vmatpush.bf16.msra.mxu0 0
      %3098 = vmatpush.bf16.msra.mxu0 0
      %3099 = vmatpush.bf16.msra.mxu0 0
      %3100 = vmatpush.bf16.msra.mxu0 %v2983
      %3101 = vmatmul.bf16.gmra.mxu0 %v2993
      %v3102 = vpop.f32.mrf.mxu0
      %v3103 = vadd.f32 0.0, %v3102
      %v3104 = vpop.f32.mrf.mxu0
      %v3105 = vadd.f32 0.0, %v3104
      %3106 = vdwg.mxu0
      %v3107 = vadd.f32 %v2801, %v3005
      %v3108 = vadd.f32 %v2815, %v3019
      %v3109 = vadd.f32 %v2829, %v3033
      %v3110 = vadd.f32 %v2843, %v3047
      %v3111 = vadd.f32 %v2857, %v3061
      %v3112 = vadd.f32 %v2871, %v3075
      %v3113 = vadd.f32 %v2885, %v3089
      %v3114 = vadd.f32 %v2899, %v3103
      %v3115 = vadd.f32 %v2803, %v3007
      %v3116 = vadd.f32 %v2817, %v3021
      %v3117 = vadd.f32 %v2831, %v3035
      %v3118 = vadd.f32 %v2845, %v3049
      %v3119 = vadd.f32 %v2859, %v3063
      %v3120 = vadd.f32 %v2873, %v3077
      %v3121 = vadd.f32 %v2887, %v3091
      %v3122 = vadd.f32 %v2901, %v3105
      %v3123 = vmul.f32 %v3107, %v1164
      %v3124 = vmul.f32 %v3108, %v1165
      %v3125 = vmul.f32 %v3109, %v1166
      %v3126 = vmul.f32 %v3110, %v1167
      %v3127 = vmul.f32 %v3111, %v1168
      %v3128 = vmul.f32 %v3112, %v1169
      %v3129 = vmul.f32 %v3113, %v1170
      %v3130 = vmul.f32 %v3114, %v1171
      %v3131 = vmul.f32 %v3115, %v1164
      %v3132 = vmul.f32 %v3116, %v1165
      %v3133 = vmul.f32 %v3117, %v1166
      %v3134 = vmul.f32 %v3118, %v1167
      %v3135 = vmul.f32 %v3119, %v1168
      %v3136 = vmul.f32 %v3120, %v1169
      %v3137 = vmul.f32 %v3121, %v1170
      %v3138 = vmul.f32 %v3122, %v1171
      %v3139 = vadd.f32 %v2535, %v3123
      %v3140 = vadd.f32 %v2535, %v3124
      %v3141 = vadd.f32 %v2535, %v3125
      %v3142 = vadd.f32 %v2535, %v3126
      %v3143 = vadd.f32 %v2535, %v3127
      %v3144 = vadd.f32 %v2535, %v3128
      %v3145 = vadd.f32 %v2535, %v3129
      %v3146 = vadd.f32 %v2535, %v3130
      %v3147 = vadd.f32 %v2540, %v3131
      %v3148 = vadd.f32 %v2540, %v3132
      %v3149 = vadd.f32 %v2540, %v3133
      %v3150 = vadd.f32 %v2540, %v3134
      %v3151 = vadd.f32 %v2540, %v3135
      %v3152 = vadd.f32 %v2540, %v3136
      %v3153 = vadd.f32 %v2540, %v3137
      %v3154 = vadd.f32 %v2540, %v3138
      %s3155 = scalar_lea.vmem %s5, 8
      %v3156 = vld [vmem:[%s3155] sm:$0xf]
      %v3157 = vld [vmem:[%s3155 + $0x4] sm:$0xf]
      %v3158 = vld [vmem:[#allocation3 + $0x4] sm:$0xff]
      %v3159 = vld [vmem:[#allocation3 + $0xc] sm:$0xff]
      %v3160 = vld [vmem:[#allocation3 + $0x14] sm:$0xff]
      %v3161 = vld [vmem:[#allocation3 + $0x1c] sm:$0xff]
      %v3162 = vld [vmem:[#allocation3 + $0x2c] sm:$0xff]
      %v3163 = vld [vmem:[#allocation3 + $0x34] sm:$0xff]
      %v3164 = vld [vmem:[#allocation3 + $0x3c] sm:$0xff]
      %v3165 = vld [vmem:[#allocation3 + $0x44] sm:$0xff]
      %s3166 = scalar_lea.vmem %s5, 32
      %v3167 = vld [vmem:[%s3166] sm:$0xf]
      %v3168 = vld [vmem:[%s3166 + $0x4] sm:$0xf]
      %v3171 = vunpack.c.l.b16 %v3167
      %v3172 = vunpack.c.l.b16 %v3168
      %v3173 = vpack.c.b16 %v3172, %v3171
      %v3182 = vunpack.c.l.b16 %v3158
      %v3183 = vunpack.c.h.b16 %v3158
      %v3184 = vunpack.c.l.b16 %v3159
      %v3185 = vunpack.c.h.b16 %v3159
      %v3186 = vunpack.c.l.b16 %v3160
      %v3187 = vunpack.c.h.b16 %v3160
      %v3188 = vunpack.c.l.b16 %v3161
      %v3189 = vunpack.c.h.b16 %v3161
      %v3190 = vunpack.c.l.b16 %v3162
      %v3191 = vunpack.c.h.b16 %v3162
      %v3192 = vunpack.c.l.b16 %v3163
      %v3193 = vunpack.c.h.b16 %v3163
      %v3194 = vunpack.c.l.b16 %v3164
      %v3195 = vunpack.c.h.b16 %v3164
      %v3196 = vunpack.c.l.b16 %v3165
      %v3197 = vunpack.c.h.b16 %v3165
      %v3198 = vpack.c.b16 %v3190, %v3182
      %v3199 = vpack.c.b16 %v3191, %v3183
      %v3200 = vpack.c.b16 %v3192, %v3184
      %v3201 = vpack.c.b16 %v3193, %v3185
      %v3202 = vpack.c.b16 %v3194, %v3186
      %v3203 = vpack.c.b16 %v3195, %v3187
      %v3204 = vpack.c.b16 %v3196, %v3188
      %v3205 = vpack.c.b16 %v3197, %v3189
      %v3215 = vsel %vm2633, %v3173, 0
      %3217 = vmatpush.bf16.msra.mxu0 0
      %3218 = vmatpush.bf16.msra.mxu0 0
      %3219 = vmatpush.bf16.msra.mxu0 0
      %3220 = vmatpush.bf16.msra.mxu0 0
      %3221 = vmatpush.bf16.msra.mxu0 0
      %3222 = vmatpush.bf16.msra.mxu0 0
      %3223 = vmatpush.bf16.msra.mxu0 0
      %3224 = vmatpush.bf16.msra.mxu0 %v3198
      %3225 = vmatmul.bf16.gmra.mxu0 %v3215
      %v3226 = vpop.f32.mrf.mxu0
      %v3227 = vadd.f32 0.0, %v3226
      %v3228 = vpop.f32.mrf.mxu0
      %v3229 = vadd.f32 0.0, %v3228
      %3230 = vdwg.mxu0
      %3231 = vmatpush.bf16.msra.mxu0 0
      %3232 = vmatpush.bf16.msra.mxu0 0
      %3233 = vmatpush.bf16.msra.mxu0 0
      %3234 = vmatpush.bf16.msra.mxu0 0
      %3235 = vmatpush.bf16.msra.mxu0 0
      %3236 = vmatpush.bf16.msra.mxu0 0
      %3237 = vmatpush.bf16.msra.mxu0 0
      %3238 = vmatpush.bf16.msra.mxu0 %v3199
      %3239 = vmatmul.bf16.gmra.mxu0 %v3215
      %v3240 = vpop.f32.mrf.mxu0
      %v3241 = vadd.f32 0.0, %v3240
      %v3242 = vpop.f32.mrf.mxu0
      %v3243 = vadd.f32 0.0, %v3242
      %3244 = vdwg.mxu0
      %3245 = vmatpush.bf16.msra.mxu0 0
      %3246 = vmatpush.bf16.msra.mxu0 0
      %3247 = vmatpush.bf16.msra.mxu0 0
      %3248 = vmatpush.bf16.msra.mxu0 0
      %3249 = vmatpush.bf16.msra.mxu0 0
      %3250 = vmatpush.bf16.msra.mxu0 0
      %3251 = vmatpush.bf16.msra.mxu0 0
      %3252 = vmatpush.bf16.msra.mxu0 %v3200
      %3253 = vmatmul.bf16.gmra.mxu0 %v3215
      %v3254 = vpop.f32.mrf.mxu0
      %v3255 = vadd.f32 0.0, %v3254
      %v3256 = vpop.f32.mrf.mxu0
      %v3257 = vadd.f32 0.0, %v3256
      %3258 = vdwg.mxu0
      %3259 = vmatpush.bf16.msra.mxu0 0
      %3260 = vmatpush.bf16.msra.mxu0 0
      %3261 = vmatpush.bf16.msra.mxu0 0
      %3262 = vmatpush.bf16.msra.mxu0 0
      %3263 = vmatpush.bf16.msra.mxu0 0
      %3264 = vmatpush.bf16.msra.mxu0 0
      %3265 = vmatpush.bf16.msra.mxu0 0
      %3266 = vmatpush.bf16.msra.mxu0 %v3201
      %3267 = vmatmul.bf16.gmra.mxu0 %v3215
      %v3268 = vpop.f32.mrf.mxu0
      %v3269 = vadd.f32 0.0, %v3268
      %v3270 = vpop.f32.mrf.mxu0
      %v3271 = vadd.f32 0.0, %v3270
      %3272 = vdwg.mxu0
      %3273 = vmatpush.bf16.msra.mxu0 0
      %3274 = vmatpush.bf16.msra.mxu0 0
      %3275 = vmatpush.bf16.msra.mxu0 0
      %3276 = vmatpush.bf16.msra.mxu0 0
      %3277 = vmatpush.bf16.msra.mxu0 0
      %3278 = vmatpush.bf16.msra.mxu0 0
      %3279 = vmatpush.bf16.msra.mxu0 0
      %3280 = vmatpush.bf16.msra.mxu0 %v3202
      %3281 = vmatmul.bf16.gmra.mxu0 %v3215
      %v3282 = vpop.f32.mrf.mxu0
      %v3283 = vadd.f32 0.0, %v3282
      %v3284 = vpop.f32.mrf.mxu0
      %v3285 = vadd.f32 0.0, %v3284
      %3286 = vdwg.mxu0
      %3287 = vmatpush.bf16.msra.mxu0 0
      %3288 = vmatpush.bf16.msra.mxu0 0
      %3289 = vmatpush.bf16.msra.mxu0 0
      %3290 = vmatpush.bf16.msra.mxu0 0
      %3291 = vmatpush.bf16.msra.mxu0 0
      %3292 = vmatpush.bf16.msra.mxu0 0
      %3293 = vmatpush.bf16.msra.mxu0 0
      %3294 = vmatpush.bf16.msra.mxu0 %v3203
      %3295 = vmatmul.bf16.gmra.mxu0 %v3215
      %v3296 = vpop.f32.mrf.mxu0
      %v3297 = vadd.f32 0.0, %v3296
      %v3298 = vpop.f32.mrf.mxu0
      %v3299 = vadd.f32 0.0, %v3298
      %3300 = vdwg.mxu0
      %3301 = vmatpush.bf16.msra.mxu0 0
      %3302 = vmatpush.bf16.msra.mxu0 0
      %3303 = vmatpush.bf16.msra.mxu0 0
      %3304 = vmatpush.bf16.msra.mxu0 0
      %3305 = vmatpush.bf16.msra.mxu0 0
      %3306 = vmatpush.bf16.msra.mxu0 0
      %3307 = vmatpush.bf16.msra.mxu0 0
      %3308 = vmatpush.bf16.msra.mxu0 %v3204
      %3309 = vmatmul.bf16.gmra.mxu0 %v3215
      %v3310 = vpop.f32.mrf.mxu0
      %v3311 = vadd.f32 0.0, %v3310
      %v3312 = vpop.f32.mrf.mxu0
      %v3313 = vadd.f32 0.0, %v3312
      %3314 = vdwg.mxu0
      %3315 = vmatpush.bf16.msra.mxu0 0
      %3316 = vmatpush.bf16.msra.mxu0 0
      %3317 = vmatpush.bf16.msra.mxu0 0
      %3318 = vmatpush.bf16.msra.mxu0 0
      %3319 = vmatpush.bf16.msra.mxu0 0
      %3320 = vmatpush.bf16.msra.mxu0 0
      %3321 = vmatpush.bf16.msra.mxu0 0
      %3322 = vmatpush.bf16.msra.mxu0 %v3205
      %3323 = vmatmul.bf16.gmra.mxu0 %v3215
      %v3324 = vpop.f32.mrf.mxu0
      %v3325 = vadd.f32 0.0, %v3324
      %v3326 = vpop.f32.mrf.mxu0
      %v3327 = vadd.f32 0.0, %v3326
      %3328 = vdwg.mxu0
      %v3331 = vunpack.c.l.b16 %v3156
      %v3332 = vunpack.c.l.b16 %v3157
      %v3333 = vpack.c.b16 %v3332, %v3331
      %3334 = vrot.lane.b32.xlu0 %v2590, 32
      %v3335 = vpop.permute.xlu0 %3334
      %3336 = vrot.lane.b32.xlu0 %v2591, 32
      %v3337 = vpop.permute.xlu0 %3336
      %3338 = vrot.lane.b32.xlu0 %v2592, 32
      %v3339 = vpop.permute.xlu0 %3338
      %3340 = vrot.lane.b32.xlu0 %v2593, 32
      %v3341 = vpop.permute.xlu0 %3340
      %3342 = vrot.lane.b32.xlu0 %v2594, 32
      %v3343 = vpop.permute.xlu0 %3342
      %3344 = vrot.lane.b32.xlu0 %v2595, 32
      %v3345 = vpop.permute.xlu0 %3344
      %3346 = vrot.lane.b32.xlu0 %v2596, 32
      %v3347 = vpop.permute.xlu0 %3346
      %3348 = vrot.lane.b32.xlu0 %v2597, 32
      %v3349 = vpop.permute.xlu0 %3348
      %3350 = vrot.lane.b32.xlu0 %v2598, 32
      %v3351 = vpop.permute.xlu0 %3350
      %v3352 = vsel %vm1475, %v3335, %v3337
      %v3353 = vsel %vm1475, %v3337, %v3339
      %v3354 = vsel %vm1475, %v3339, %v3341
      %v3355 = vsel %vm1475, %v3341, %v3343
      %v3356 = vsel %vm1475, %v3343, %v3345
      %v3357 = vsel %vm1475, %v3345, %v3347
      %v3358 = vsel %vm1475, %v3347, %v3349
      %v3359 = vsel %vm1475, %v3349, %v3351
      %v3369 = vsel %vm2633, %v3333, 0
      %3371 = vmatpush.bf16.msra.mxu0 0
      %3372 = vmatpush.bf16.msra.mxu0 0
      %3373 = vmatpush.bf16.msra.mxu0 0
      %3374 = vmatpush.bf16.msra.mxu0 0
      %3375 = vmatpush.bf16.msra.mxu0 0
      %3376 = vmatpush.bf16.msra.mxu0 0
      %3377 = vmatpush.bf16.msra.mxu0 0
      %3378 = vmatpush.bf16.msra.mxu0 %v3352
      %3379 = vmatmul.bf16.gmra.mxu0 %v3369
      %v3380 = vpop.f32.mrf.mxu0
      %v3381 = vadd.f32 %v3227, %v3380
      %v3382 = vpop.f32.mrf.mxu0
      %v3383 = vadd.f32 %v3229, %v3382
      %3384 = vdwg.mxu0
      %3385 = vmatpush.bf16.msra.mxu0 0
      %3386 = vmatpush.bf16.msra.mxu0 0
      %3387 = vmatpush.bf16.msra.mxu0 0
      %3388 = vmatpush.bf16.msra.mxu0 0
      %3389 = vmatpush.bf16.msra.mxu0 0
      %3390 = vmatpush.bf16.msra.mxu0 0
      %3391 = vmatpush.bf16.msra.mxu0 0
      %3392 = vmatpush.bf16.msra.mxu0 %v3353
      %3393 = vmatmul.bf16.gmra.mxu0 %v3369
      %v3394 = vpop.f32.mrf.mxu0
      %v3395 = vadd.f32 %v3241, %v3394
      %v3396 = vpop.f32.mrf.mxu0
      %v3397 = vadd.f32 %v3243, %v3396
      %3398 = vdwg.mxu0
      %3399 = vmatpush.bf16.msra.mxu0 0
      %3400 = vmatpush.bf16.msra.mxu0 0
      %3401 = vmatpush.bf16.msra.mxu0 0
      %3402 = vmatpush.bf16.msra.mxu0 0
      %3403 = vmatpush.bf16.msra.mxu0 0
      %3404 = vmatpush.bf16.msra.mxu0 0
      %3405 = vmatpush.bf16.msra.mxu0 0
      %3406 = vmatpush.bf16.msra.mxu0 %v3354
      %3407 = vmatmul.bf16.gmra.mxu0 %v3369
      %v3408 = vpop.f32.mrf.mxu0
      %v3409 = vadd.f32 %v3255, %v3408
      %v3410 = vpop.f32.mrf.mxu0
      %v3411 = vadd.f32 %v3257, %v3410
      %3412 = vdwg.mxu0
      %3413 = vmatpush.bf16.msra.mxu0 0
      %3414 = vmatpush.bf16.msra.mxu0 0
      %3415 = vmatpush.bf16.msra.mxu0 0
      %3416 = vmatpush.bf16.msra.mxu0 0
      %3417 = vmatpush.bf16.msra.mxu0 0
      %3418 = vmatpush.bf16.msra.mxu0 0
      %3419 = vmatpush.bf16.msra.mxu0 0
      %3420 = vmatpush.bf16.msra.mxu0 %v3355
      %3421 = vmatmul.bf16.gmra.mxu0 %v3369
      %v3422 = vpop.f32.mrf.mxu0
      %v3423 = vadd.f32 %v3269, %v3422
      %v3424 = vpop.f32.mrf.mxu0
      %v3425 = vadd.f32 %v3271, %v3424
      %3426 = vdwg.mxu0
      %3427 = vmatpush.bf16.msra.mxu0 0
      %3428 = vmatpush.bf16.msra.mxu0 0
      %3429 = vmatpush.bf16.msra.mxu0 0
      %3430 = vmatpush.bf16.msra.mxu0 0
      %3431 = vmatpush.bf16.msra.mxu0 0
      %3432 = vmatpush.bf16.msra.mxu0 0
      %3433 = vmatpush.bf16.msra.mxu0 0
      %3434 = vmatpush.bf16.msra.mxu0 %v3356
      %3435 = vmatmul.bf16.gmra.mxu0 %v3369
      %v3436 = vpop.f32.mrf.mxu0
      %v3437 = vadd.f32 %v3283, %v3436
      %v3438 = vpop.f32.mrf.mxu0
      %v3439 = vadd.f32 %v3285, %v3438
      %3440 = vdwg.mxu0
      %3441 = vmatpush.bf16.msra.mxu0 0
      %3442 = vmatpush.bf16.msra.mxu0 0
      %3443 = vmatpush.bf16.msra.mxu0 0
      %3444 = vmatpush.bf16.msra.mxu0 0
      %3445 = vmatpush.bf16.msra.mxu0 0
      %3446 = vmatpush.bf16.msra.mxu0 0
      %3447 = vmatpush.bf16.msra.mxu0 0
      %3448 = vmatpush.bf16.msra.mxu0 %v3357
      %3449 = vmatmul.bf16.gmra.mxu0 %v3369
      %v3450 = vpop.f32.mrf.mxu0
      %v3451 = vadd.f32 %v3297, %v3450
      %v3452 = vpop.f32.mrf.mxu0
      %v3453 = vadd.f32 %v3299, %v3452
      %3454 = vdwg.mxu0
      %3455 = vmatpush.bf16.msra.mxu0 0
      %3456 = vmatpush.bf16.msra.mxu0 0
      %3457 = vmatpush.bf16.msra.mxu0 0
      %3458 = vmatpush.bf16.msra.mxu0 0
      %3459 = vmatpush.bf16.msra.mxu0 0
      %3460 = vmatpush.bf16.msra.mxu0 0
      %3461 = vmatpush.bf16.msra.mxu0 0
      %3462 = vmatpush.bf16.msra.mxu0 %v3358
      %3463 = vmatmul.bf16.gmra.mxu0 %v3369
      %v3464 = vpop.f32.mrf.mxu0
      %v3465 = vadd.f32 %v3311, %v3464
      %v3466 = vpop.f32.mrf.mxu0
      %v3467 = vadd.f32 %v3313, %v3466
      %3468 = vdwg.mxu0
      %3469 = vmatpush.bf16.msra.mxu0 0
      %3470 = vmatpush.bf16.msra.mxu0 0
      %3471 = vmatpush.bf16.msra.mxu0 0
      %3472 = vmatpush.bf16.msra.mxu0 0
      %3473 = vmatpush.bf16.msra.mxu0 0
      %3474 = vmatpush.bf16.msra.mxu0 0
      %3475 = vmatpush.bf16.msra.mxu0 0
      %3476 = vmatpush.bf16.msra.mxu0 %v3359
      %3477 = vmatmul.bf16.gmra.mxu0 %v3369
      %v3478 = vpop.f32.mrf.mxu0
      %v3479 = vadd.f32 %v3325, %v3478
      %v3480 = vpop.f32.mrf.mxu0
      %v3481 = vadd.f32 %v3327, %v3480
      %3482 = vdwg.mxu0
      %s3483 = scalar_lea.vmem %s5, 56
      %v3484 = vld [vmem:[%s3483] sm:$0xf]
      %v3485 = vld [vmem:[%s3483 + $0x4] sm:$0xf]
      %v3488 = vunpack.c.l.b16 %v3484
      %v3489 = vunpack.c.l.b16 %v3485
      %v3490 = vpack.c.b16 %v3489, %v3488
      %3491 = vrot.lane.b32.xlu0 %v2949, 96
      %v3492 = vpop.permute.xlu0 %3491
      %3493 = vrot.lane.b32.xlu0 %v2950, 96
      %v3494 = vpop.permute.xlu0 %3493
      %3495 = vrot.lane.b32.xlu0 %v2951, 96
      %v3496 = vpop.permute.xlu0 %3495
      %3497 = vrot.lane.b32.xlu0 %v2952, 96
      %v3498 = vpop.permute.xlu0 %3497
      %3499 = vrot.lane.b32.xlu0 %v2953, 96
      %v3500 = vpop.permute.xlu0 %3499
      %3501 = vrot.lane.b32.xlu0 %v2954, 96
      %v3502 = vpop.permute.xlu0 %3501
      %3503 = vrot.lane.b32.xlu0 %v2955, 96
      %v3504 = vpop.permute.xlu0 %3503
      %3505 = vrot.lane.b32.xlu0 %v2956, 96
      %v3506 = vpop.permute.xlu0 %3505
      %3507 = vrot.lane.b32.xlu0 %v2957, 96
      %v3508 = vpop.permute.xlu0 %3507
      %v3509 = vsel %vm1667, %v3492, %v3494
      %v3510 = vsel %vm1667, %v3494, %v3496
      %v3511 = vsel %vm1667, %v3496, %v3498
      %v3512 = vsel %vm1667, %v3498, %v3500
      %v3513 = vsel %vm1667, %v3500, %v3502
      %v3514 = vsel %vm1667, %v3502, %v3504
      %v3515 = vsel %vm1667, %v3504, %v3506
      %v3516 = vsel %vm1667, %v3506, %v3508
      %v3526 = vsel %vm2633, %v3490, 0
      %3528 = vmatpush.bf16.msra.mxu0 0
      %3529 = vmatpush.bf16.msra.mxu0 0
      %3530 = vmatpush.bf16.msra.mxu0 0
      %3531 = vmatpush.bf16.msra.mxu0 0
      %3532 = vmatpush.bf16.msra.mxu0 0
      %3533 = vmatpush.bf16.msra.mxu0 0
      %3534 = vmatpush.bf16.msra.mxu0 0
      %3535 = vmatpush.bf16.msra.mxu0 %v3509
      %3536 = vmatmul.bf16.gmra.mxu0 %v3526
      %v3537 = vpop.f32.mrf.mxu0
      %v3538 = vadd.f32 0.0, %v3537
      %v3539 = vpop.f32.mrf.mxu0
      %v3540 = vadd.f32 0.0, %v3539
      %3541 = vdwg.mxu0
      %3542 = vmatpush.bf16.msra.mxu0 0
      %3543 = vmatpush.bf16.msra.mxu0 0
      %3544 = vmatpush.bf16.msra.mxu0 0
      %3545 = vmatpush.bf16.msra.mxu0 0
      %3546 = vmatpush.bf16.msra.mxu0 0
      %3547 = vmatpush.bf16.msra.mxu0 0
      %3548 = vmatpush.bf16.msra.mxu0 0
      %3549 = vmatpush.bf16.msra.mxu0 %v3510
      %3550 = vmatmul.bf16.gmra.mxu0 %v3526
      %v3551 = vpop.f32.mrf.mxu0
      %v3552 = vadd.f32 0.0, %v3551
      %v3553 = vpop.f32.mrf.mxu0
      %v3554 = vadd.f32 0.0, %v3553
      %3555 = vdwg.mxu0
      %3556 = vmatpush.bf16.msra.mxu0 0
      %3557 = vmatpush.bf16.msra.mxu0 0
      %3558 = vmatpush.bf16.msra.mxu0 0
      %3559 = vmatpush.bf16.msra.mxu0 0
      %3560 = vmatpush.bf16.msra.mxu0 0
      %3561 = vmatpush.bf16.msra.mxu0 0
      %3562 = vmatpush.bf16.msra.mxu0 0
      %3563 = vmatpush.bf16.msra.mxu0 %v3511
      %3564 = vmatmul.bf16.gmra.mxu0 %v3526
      %v3565 = vpop.f32.mrf.mxu0
      %v3566 = vadd.f32 0.0, %v3565
      %v3567 = vpop.f32.mrf.mxu0
      %v3568 = vadd.f32 0.0, %v3567
      %3569 = vdwg.mxu0
      %3570 = vmatpush.bf16.msra.mxu0 0
      %3571 = vmatpush.bf16.msra.mxu0 0
      %3572 = vmatpush.bf16.msra.mxu0 0
      %3573 = vmatpush.bf16.msra.mxu0 0
      %3574 = vmatpush.bf16.msra.mxu0 0
      %3575 = vmatpush.bf16.msra.mxu0 0
      %3576 = vmatpush.bf16.msra.mxu0 0
      %3577 = vmatpush.bf16.msra.mxu0 %v3512
      %3578 = vmatmul.bf16.gmra.mxu0 %v3526
      %v3579 = vpop.f32.mrf.mxu0
      %v3580 = vadd.f32 0.0, %v3579
      %v3581 = vpop.f32.mrf.mxu0
      %v3582 = vadd.f32 0.0, %v3581
      %3583 = vdwg.mxu0
      %3584 = vmatpush.bf16.msra.mxu0 0
      %3585 = vmatpush.bf16.msra.mxu0 0
      %3586 = vmatpush.bf16.msra.mxu0 0
      %3587 = vmatpush.bf16.msra.mxu0 0
      %3588 = vmatpush.bf16.msra.mxu0 0
      %3589 = vmatpush.bf16.msra.mxu0 0
      %3590 = vmatpush.bf16.msra.mxu0 0
      %3591 = vmatpush.bf16.msra.mxu0 %v3513
      %3592 = vmatmul.bf16.gmra.mxu0 %v3526
      %v3593 = vpop.f32.mrf.mxu0
      %v3594 = vadd.f32 0.0, %v3593
      %v3595 = vpop.f32.mrf.mxu0
      %v3596 = vadd.f32 0.0, %v3595
      %3597 = vdwg.mxu0
      %3598 = vmatpush.bf16.msra.mxu0 0
      %3599 = vmatpush.bf16.msra.mxu0 0
      %3600 = vmatpush.bf16.msra.mxu0 0
      %3601 = vmatpush.bf16.msra.mxu0 0
      %3602 = vmatpush.bf16.msra.mxu0 0
      %3603 = vmatpush.bf16.msra.mxu0 0
      %3604 = vmatpush.bf16.msra.mxu0 0
      %3605 = vmatpush.bf16.msra.mxu0 %v3514
      %3606 = vmatmul.bf16.gmra.mxu0 %v3526
      %v3607 = vpop.f32.mrf.mxu0
      %v3608 = vadd.f32 0.0, %v3607
      %v3609 = vpop.f32.mrf.mxu0
      %v3610 = vadd.f32 0.0, %v3609
      %3611 = vdwg.mxu0
      %3612 = vmatpush.bf16.msra.mxu0 0
      %3613 = vmatpush.bf16.msra.mxu0 0
      %3614 = vmatpush.bf16.msra.mxu0 0
      %3615 = vmatpush.bf16.msra.mxu0 0
      %3616 = vmatpush.bf16.msra.mxu0 0
      %3617 = vmatpush.bf16.msra.mxu0 0
      %3618 = vmatpush.bf16.msra.mxu0 0
      %3619 = vmatpush.bf16.msra.mxu0 %v3515
      %3620 = vmatmul.bf16.gmra.mxu0 %v3526
      %v3621 = vpop.f32.mrf.mxu0
      %v3622 = vadd.f32 0.0, %v3621
      %v3623 = vpop.f32.mrf.mxu0
      %v3624 = vadd.f32 0.0, %v3623
      %3625 = vdwg.mxu0
      %3626 = vmatpush.bf16.msra.mxu0 0
      %3627 = vmatpush.bf16.msra.mxu0 0
      %3628 = vmatpush.bf16.msra.mxu0 0
      %3629 = vmatpush.bf16.msra.mxu0 0
      %3630 = vmatpush.bf16.msra.mxu0 0
      %3631 = vmatpush.bf16.msra.mxu0 0
      %3632 = vmatpush.bf16.msra.mxu0 0
      %3633 = vmatpush.bf16.msra.mxu0 %v3516
      %3634 = vmatmul.bf16.gmra.mxu0 %v3526
      %v3635 = vpop.f32.mrf.mxu0
      %v3636 = vadd.f32 0.0, %v3635
      %v3637 = vpop.f32.mrf.mxu0
      %v3638 = vadd.f32 0.0, %v3637
      %3639 = vdwg.mxu0
      %v3640 = vadd.f32 %v3381, %v3538
      %v3641 = vadd.f32 %v3395, %v3552
      %v3642 = vadd.f32 %v3409, %v3566
      %v3643 = vadd.f32 %v3423, %v3580
      %v3644 = vadd.f32 %v3437, %v3594
      %v3645 = vadd.f32 %v3451, %v3608
      %v3646 = vadd.f32 %v3465, %v3622
      %v3647 = vadd.f32 %v3479, %v3636
      %v3648 = vadd.f32 %v3383, %v3540
      %v3649 = vadd.f32 %v3397, %v3554
      %v3650 = vadd.f32 %v3411, %v3568
      %v3651 = vadd.f32 %v3425, %v3582
      %v3652 = vadd.f32 %v3439, %v3596
      %v3653 = vadd.f32 %v3453, %v3610
      %v3654 = vadd.f32 %v3467, %v3624
      %v3655 = vadd.f32 %v3481, %v3638
      %v3656 = vadd.f32 %v3139, %v3640
      %v3657 = vadd.f32 %v3140, %v3641
      %v3658 = vadd.f32 %v3141, %v3642
      %v3659 = vadd.f32 %v3142, %v3643
      %v3660 = vadd.f32 %v3143, %v3644
      %v3661 = vadd.f32 %v3144, %v3645
      %v3662 = vadd.f32 %v3145, %v3646
      %v3663 = vadd.f32 %v3146, %v3647
      %v3664 = vadd.f32 %v3147, %v3648
      %v3665 = vadd.f32 %v3148, %v3649
      %v3666 = vadd.f32 %v3149, %v3650
      %v3667 = vadd.f32 %v3150, %v3651
      %v3668 = vadd.f32 %v3151, %v3652
      %v3669 = vadd.f32 %v3152, %v3653
      %v3670 = vadd.f32 %v3153, %v3654
      %v3671 = vadd.f32 %v3154, %v3655
      %s3672 = scalar_lea.vmem %s5, 16
      %v3673 = vld [vmem:[%s3672] sm:$0xf]
      %v3674 = vld [vmem:[%s3672 + $0x4] sm:$0xf]
      %s3675 = scalar_lea.vmem %s5, 40
      %v3676 = vld [vmem:[%s3675] sm:$0xf]
      %v3677 = vld [vmem:[%s3675 + $0x4] sm:$0xf]
      %v3680 = vunpack.c.l.b16 %v3676
      %v3681 = vunpack.c.l.b16 %v3677
      %v3682 = vpack.c.b16 %v3681, %v3680
      %3683 = vrot.lane.b32.xlu0 %v2949, 127
      %v3684 = vpop.permute.xlu0 %3683
      %3685 = vrot.lane.b32.xlu0 %v2950, 127
      %v3686 = vpop.permute.xlu0 %3685
      %3687 = vrot.lane.b32.xlu0 %v2951, 127
      %v3688 = vpop.permute.xlu0 %3687
      %3689 = vrot.lane.b32.xlu0 %v2952, 127
      %v3690 = vpop.permute.xlu0 %3689
      %3691 = vrot.lane.b32.xlu0 %v2953, 127
      %v3692 = vpop.permute.xlu0 %3691
      %3693 = vrot.lane.b32.xlu0 %v2954, 127
      %v3694 = vpop.permute.xlu0 %3693
      %3695 = vrot.lane.b32.xlu0 %v2955, 127
      %v3696 = vpop.permute.xlu0 %3695
      %3697 = vrot.lane.b32.xlu0 %v2956, 127
      %v3698 = vpop.permute.xlu0 %3697
      %3699 = vrot.lane.b32.xlu0 %v2957, 127
      %v3700 = vpop.permute.xlu0 %3699
      %v3701 = vsel %vm1894, %v3684, %v3686
      %v3702 = vsel %vm1894, %v3686, %v3688
      %v3703 = vsel %vm1894, %v3688, %v3690
      %v3704 = vsel %vm1894, %v3690, %v3692
      %v3705 = vsel %vm1894, %v3692, %v3694
      %v3706 = vsel %vm1894, %v3694, %v3696
      %v3707 = vsel %vm1894, %v3696, %v3698
      %v3708 = vsel %vm1894, %v3698, %v3700
      %v3718 = vsel %vm2633, %v3682, 0
      %3720 = vmatpush.bf16.msra.mxu0 0
      %3721 = vmatpush.bf16.msra.mxu0 0
      %3722 = vmatpush.bf16.msra.mxu0 0
      %3723 = vmatpush.bf16.msra.mxu0 0
      %3724 = vmatpush.bf16.msra.mxu0 0
      %3725 = vmatpush.bf16.msra.mxu0 0
      %3726 = vmatpush.bf16.msra.mxu0 0
      %3727 = vmatpush.bf16.msra.mxu0 %v3701
      %3728 = vmatmul.bf16.gmra.mxu0 %v3718
      %v3729 = vpop.f32.mrf.mxu0
      %v3730 = vadd.f32 0.0, %v3729
      %v3731 = vpop.f32.mrf.mxu0
      %v3732 = vadd.f32 0.0, %v3731
      %3733 = vdwg.mxu0
      %3734 = vmatpush.bf16.msra.mxu0 0
      %3735 = vmatpush.bf16.msra.mxu0 0
      %3736 = vmatpush.bf16.msra.mxu0 0
      %3737 = vmatpush.bf16.msra.mxu0 0
      %3738 = vmatpush.bf16.msra.mxu0 0
      %3739 = vmatpush.bf16.msra.mxu0 0
      %3740 = vmatpush.bf16.msra.mxu0 0
      %3741 = vmatpush.bf16.msra.mxu0 %v3702
      %3742 = vmatmul.bf16.gmra.mxu0 %v3718
      %v3743 = vpop.f32.mrf.mxu0
      %v3744 = vadd.f32 0.0, %v3743
      %v3745 = vpop.f32.mrf.mxu0
      %v3746 = vadd.f32 0.0, %v3745
      %3747 = vdwg.mxu0
      %3748 = vmatpush.bf16.msra.mxu0 0
      %3749 = vmatpush.bf16.msra.mxu0 0
      %3750 = vmatpush.bf16.msra.mxu0 0
      %3751 = vmatpush.bf16.msra.mxu0 0
      %3752 = vmatpush.bf16.msra.mxu0 0
      %3753 = vmatpush.bf16.msra.mxu0 0
      %3754 = vmatpush.bf16.msra.mxu0 0
      %3755 = vmatpush.bf16.msra.mxu0 %v3703
      %3756 = vmatmul.bf16.gmra.mxu0 %v3718
      %v3757 = vpop.f32.mrf.mxu0
      %v3758 = vadd.f32 0.0, %v3757
      %v3759 = vpop.f32.mrf.mxu0
      %v3760 = vadd.f32 0.0, %v3759
      %3761 = vdwg.mxu0
      %3762 = vmatpush.bf16.msra.mxu0 0
      %3763 = vmatpush.bf16.msra.mxu0 0
      %3764 = vmatpush.bf16.msra.mxu0 0
      %3765 = vmatpush.bf16.msra.mxu0 0
      %3766 = vmatpush.bf16.msra.mxu0 0
      %3767 = vmatpush.bf16.msra.mxu0 0
      %3768 = vmatpush.bf16.msra.mxu0 0
      %3769 = vmatpush.bf16.msra.mxu0 %v3704
      %3770 = vmatmul.bf16.gmra.mxu0 %v3718
      %v3771 = vpop.f32.mrf.mxu0
      %v3772 = vadd.f32 0.0, %v3771
      %v3773 = vpop.f32.mrf.mxu0
      %v3774 = vadd.f32 0.0, %v3773
      %3775 = vdwg.mxu0
      %3776 = vmatpush.bf16.msra.mxu0 0
      %3777 = vmatpush.bf16.msra.mxu0 0
      %3778 = vmatpush.bf16.msra.mxu0 0
      %3779 = vmatpush.bf16.msra.mxu0 0
      %3780 = vmatpush.bf16.msra.mxu0 0
      %3781 = vmatpush.bf16.msra.mxu0 0
      %3782 = vmatpush.bf16.msra.mxu0 0
      %3783 = vmatpush.bf16.msra.mxu0 %v3705
      %3784 = vmatmul.bf16.gmra.mxu0 %v3718
      %v3785 = vpop.f32.mrf.mxu0
      %v3786 = vadd.f32 0.0, %v3785
      %v3787 = vpop.f32.mrf.mxu0
      %v3788 = vadd.f32 0.0, %v3787
      %3789 = vdwg.mxu0
      %3790 = vmatpush.bf16.msra.mxu0 0
      %3791 = vmatpush.bf16.msra.mxu0 0
      %3792 = vmatpush.bf16.msra.mxu0 0
      %3793 = vmatpush.bf16.msra.mxu0 0
      %3794 = vmatpush.bf16.msra.mxu0 0
      %3795 = vmatpush.bf16.msra.mxu0 0
      %3796 = vmatpush.bf16.msra.mxu0 0
      %3797 = vmatpush.bf16.msra.mxu0 %v3706
      %3798 = vmatmul.bf16.gmra.mxu0 %v3718
      %v3799 = vpop.f32.mrf.mxu0
      %v3800 = vadd.f32 0.0, %v3799
      %v3801 = vpop.f32.mrf.mxu0
      %v3802 = vadd.f32 0.0, %v3801
      %3803 = vdwg.mxu0
      %3804 = vmatpush.bf16.msra.mxu0 0
      %3805 = vmatpush.bf16.msra.mxu0 0
      %3806 = vmatpush.bf16.msra.mxu0 0
      %3807 = vmatpush.bf16.msra.mxu0 0
      %3808 = vmatpush.bf16.msra.mxu0 0
      %3809 = vmatpush.bf16.msra.mxu0 0
      %3810 = vmatpush.bf16.msra.mxu0 0
      %3811 = vmatpush.bf16.msra.mxu0 %v3707
      %3812 = vmatmul.bf16.gmra.mxu0 %v3718
      %v3813 = vpop.f32.mrf.mxu0
      %v3814 = vadd.f32 0.0, %v3813
      %v3815 = vpop.f32.mrf.mxu0
      %v3816 = vadd.f32 0.0, %v3815
      %3817 = vdwg.mxu0
      %3818 = vmatpush.bf16.msra.mxu0 0
      %3819 = vmatpush.bf16.msra.mxu0 0
      %3820 = vmatpush.bf16.msra.mxu0 0
      %3821 = vmatpush.bf16.msra.mxu0 0
      %3822 = vmatpush.bf16.msra.mxu0 0
      %3823 = vmatpush.bf16.msra.mxu0 0
      %3824 = vmatpush.bf16.msra.mxu0 0
      %3825 = vmatpush.bf16.msra.mxu0 %v3708
      %3826 = vmatmul.bf16.gmra.mxu0 %v3718
      %v3827 = vpop.f32.mrf.mxu0
      %v3828 = vadd.f32 0.0, %v3827
      %v3829 = vpop.f32.mrf.mxu0
      %v3830 = vadd.f32 0.0, %v3829
      %3831 = vdwg.mxu0
      %v3834 = vunpack.c.l.b16 %v3673
      %v3835 = vunpack.c.l.b16 %v3674
      %v3836 = vpack.c.b16 %v3835, %v3834
      %3837 = vrot.lane.b32.xlu0 %v2590, 31
      %v3838 = vpop.permute.xlu0 %3837
      %3839 = vrot.lane.b32.xlu0 %v2591, 31
      %v3840 = vpop.permute.xlu0 %3839
      %3841 = vrot.lane.b32.xlu0 %v2592, 31
      %v3842 = vpop.permute.xlu0 %3841
      %3843 = vrot.lane.b32.xlu0 %v2593, 31
      %v3844 = vpop.permute.xlu0 %3843
      %3845 = vrot.lane.b32.xlu0 %v2594, 31
      %v3846 = vpop.permute.xlu0 %3845
      %3847 = vrot.lane.b32.xlu0 %v2595, 31
      %v3848 = vpop.permute.xlu0 %3847
      %3849 = vrot.lane.b32.xlu0 %v2596, 31
      %v3850 = vpop.permute.xlu0 %3849
      %3851 = vrot.lane.b32.xlu0 %v2597, 31
      %v3852 = vpop.permute.xlu0 %3851
      %3853 = vrot.lane.b32.xlu0 %v2598, 31
      %v3854 = vpop.permute.xlu0 %3853
      %v3855 = vsel %vm2083, %v3838, %v3840
      %v3856 = vsel %vm2083, %v3840, %v3842
      %v3857 = vsel %vm2083, %v3842, %v3844
      %v3858 = vsel %vm2083, %v3844, %v3846
      %v3859 = vsel %vm2083, %v3846, %v3848
      %v3860 = vsel %vm2083, %v3848, %v3850
      %v3861 = vsel %vm2083, %v3850, %v3852
      %v3862 = vsel %vm2083, %v3852, %v3854
      %v3872 = vsel %vm2633, %v3836, 0
      %3874 = vmatpush.bf16.msra.mxu0 0
      %3875 = vmatpush.bf16.msra.mxu0 0
      %3876 = vmatpush.bf16.msra.mxu0 0
      %3877 = vmatpush.bf16.msra.mxu0 0
      %3878 = vmatpush.bf16.msra.mxu0 0
      %3879 = vmatpush.bf16.msra.mxu0 0
      %3880 = vmatpush.bf16.msra.mxu0 0
      %3881 = vmatpush.bf16.msra.mxu0 %v3855
      %3882 = vmatmul.bf16.gmra.mxu0 %v3872
      %v3883 = vpop.f32.mrf.mxu0
      %v3884 = vadd.f32 %v3730, %v3883
      %v3885 = vpop.f32.mrf.mxu0
      %v3886 = vadd.f32 %v3732, %v3885
      %3887 = vdwg.mxu0
      %3888 = vmatpush.bf16.msra.mxu0 0
      %3889 = vmatpush.bf16.msra.mxu0 0
      %3890 = vmatpush.bf16.msra.mxu0 0
      %3891 = vmatpush.bf16.msra.mxu0 0
      %3892 = vmatpush.bf16.msra.mxu0 0
      %3893 = vmatpush.bf16.msra.mxu0 0
      %3894 = vmatpush.bf16.msra.mxu0 0
      %3895 = vmatpush.bf16.msra.mxu0 %v3856
      %3896 = vmatmul.bf16.gmra.mxu0 %v3872
      %v3897 = vpop.f32.mrf.mxu0
      %v3898 = vadd.f32 %v3744, %v3897
      %v3899 = vpop.f32.mrf.mxu0
      %v3900 = vadd.f32 %v3746, %v3899
      %3901 = vdwg.mxu0
      %3902 = vmatpush.bf16.msra.mxu0 0
      %3903 = vmatpush.bf16.msra.mxu0 0
      %3904 = vmatpush.bf16.msra.mxu0 0
      %3905 = vmatpush.bf16.msra.mxu0 0
      %3906 = vmatpush.bf16.msra.mxu0 0
      %3907 = vmatpush.bf16.msra.mxu0 0
      %3908 = vmatpush.bf16.msra.mxu0 0
      %3909 = vmatpush.bf16.msra.mxu0 %v3857
      %3910 = vmatmul.bf16.gmra.mxu0 %v3872
      %v3911 = vpop.f32.mrf.mxu0
      %v3912 = vadd.f32 %v3758, %v3911
      %v3913 = vpop.f32.mrf.mxu0
      %v3914 = vadd.f32 %v3760, %v3913
      %3915 = vdwg.mxu0
      %3916 = vmatpush.bf16.msra.mxu0 0
      %3917 = vmatpush.bf16.msra.mxu0 0
      %3918 = vmatpush.bf16.msra.mxu0 0
      %3919 = vmatpush.bf16.msra.mxu0 0
      %3920 = vmatpush.bf16.msra.mxu0 0
      %3921 = vmatpush.bf16.msra.mxu0 0
      %3922 = vmatpush.bf16.msra.mxu0 0
      %3923 = vmatpush.bf16.msra.mxu0 %v3858
      %3924 = vmatmul.bf16.gmra.mxu0 %v3872
      %v3925 = vpop.f32.mrf.mxu0
      %v3926 = vadd.f32 %v3772, %v3925
      %v3927 = vpop.f32.mrf.mxu0
      %v3928 = vadd.f32 %v3774, %v3927
      %3929 = vdwg.mxu0
      %3930 = vmatpush.bf16.msra.mxu0 0
      %3931 = vmatpush.bf16.msra.mxu0 0
      %3932 = vmatpush.bf16.msra.mxu0 0
      %3933 = vmatpush.bf16.msra.mxu0 0
      %3934 = vmatpush.bf16.msra.mxu0 0
      %3935 = vmatpush.bf16.msra.mxu0 0
      %3936 = vmatpush.bf16.msra.mxu0 0
      %3937 = vmatpush.bf16.msra.mxu0 %v3859
      %3938 = vmatmul.bf16.gmra.mxu0 %v3872
      %v3939 = vpop.f32.mrf.mxu0
      %v3940 = vadd.f32 %v3786, %v3939
      %v3941 = vpop.f32.mrf.mxu0
      %v3942 = vadd.f32 %v3788, %v3941
      %3943 = vdwg.mxu0
      %3944 = vmatpush.bf16.msra.mxu0 0
      %3945 = vmatpush.bf16.msra.mxu0 0
      %3946 = vmatpush.bf16.msra.mxu0 0
      %3947 = vmatpush.bf16.msra.mxu0 0
      %3948 = vmatpush.bf16.msra.mxu0 0
      %3949 = vmatpush.bf16.msra.mxu0 0
      %3950 = vmatpush.bf16.msra.mxu0 0
      %3951 = vmatpush.bf16.msra.mxu0 %v3860
      %3952 = vmatmul.bf16.gmra.mxu0 %v3872
      %v3953 = vpop.f32.mrf.mxu0
      %v3954 = vadd.f32 %v3800, %v3953
      %v3955 = vpop.f32.mrf.mxu0
      %v3956 = vadd.f32 %v3802, %v3955
      %3957 = vdwg.mxu0
      %3958 = vmatpush.bf16.msra.mxu0 0
      %3959 = vmatpush.bf16.msra.mxu0 0
      %3960 = vmatpush.bf16.msra.mxu0 0
      %3961 = vmatpush.bf16.msra.mxu0 0
      %3962 = vmatpush.bf16.msra.mxu0 0
      %3963 = vmatpush.bf16.msra.mxu0 0
      %3964 = vmatpush.bf16.msra.mxu0 0
      %3965 = vmatpush.bf16.msra.mxu0 %v3861
      %3966 = vmatmul.bf16.gmra.mxu0 %v3872
      %v3967 = vpop.f32.mrf.mxu0
      %v3968 = vadd.f32 %v3814, %v3967
      %v3969 = vpop.f32.mrf.mxu0
      %v3970 = vadd.f32 %v3816, %v3969
      %3971 = vdwg.mxu0
      %3972 = vmatpush.bf16.msra.mxu0 0
      %3973 = vmatpush.bf16.msra.mxu0 0
      %3974 = vmatpush.bf16.msra.mxu0 0
      %3975 = vmatpush.bf16.msra.mxu0 0
      %3976 = vmatpush.bf16.msra.mxu0 0
      %3977 = vmatpush.bf16.msra.mxu0 0
      %3978 = vmatpush.bf16.msra.mxu0 0
      %3979 = vmatpush.bf16.msra.mxu0 %v3862
      %3980 = vmatmul.bf16.gmra.mxu0 %v3872
      %v3981 = vpop.f32.mrf.mxu0
      %v3982 = vadd.f32 %v3828, %v3981
      %v3983 = vpop.f32.mrf.mxu0
      %v3984 = vadd.f32 %v3830, %v3983
      %3985 = vdwg.mxu0
      %s3986 = scalar_lea.vmem %s5, 64
      %v3987 = vld [vmem:[%s3986] sm:$0xf]
      %v3988 = vld [vmem:[%s3986 + $0x4] sm:$0xf]
      %v3991 = vunpack.c.l.b16 %v3987
      %v3992 = vunpack.c.l.b16 %v3988
      %v3993 = vpack.c.b16 %v3992, %v3991
      %3994 = vrot.lane.b32.xlu0 %v2949, 95
      %v3995 = vpop.permute.xlu0 %3994
      %3996 = vrot.lane.b32.xlu0 %v2950, 95
      %v3997 = vpop.permute.xlu0 %3996
      %3998 = vrot.lane.b32.xlu0 %v2951, 95
      %v3999 = vpop.permute.xlu0 %3998
      %4000 = vrot.lane.b32.xlu0 %v2952, 95
      %v4001 = vpop.permute.xlu0 %4000
      %4002 = vrot.lane.b32.xlu0 %v2953, 95
      %v4003 = vpop.permute.xlu0 %4002
      %4004 = vrot.lane.b32.xlu0 %v2954, 95
      %v4005 = vpop.permute.xlu0 %4004
      %4006 = vrot.lane.b32.xlu0 %v2955, 95
      %v4007 = vpop.permute.xlu0 %4006
      %4008 = vrot.lane.b32.xlu0 %v2956, 95
      %v4009 = vpop.permute.xlu0 %4008
      %4010 = vrot.lane.b32.xlu0 %v2957, 95
      %v4011 = vpop.permute.xlu0 %4010
      %v4012 = vsel %vm2275, %v3995, %v3997
      %v4013 = vsel %vm2275, %v3997, %v3999
      %v4014 = vsel %vm2275, %v3999, %v4001
      %v4015 = vsel %vm2275, %v4001, %v4003
      %v4016 = vsel %vm2275, %v4003, %v4005
      %v4017 = vsel %vm2275, %v4005, %v4007
      %v4018 = vsel %vm2275, %v4007, %v4009
      %v4019 = vsel %vm2275, %v4009, %v4011
      %v4029 = vsel %vm2633, %v3993, 0
      %4031 = vmatpush.bf16.msra.mxu0 0
      %4032 = vmatpush.bf16.msra.mxu0 0
      %4033 = vmatpush.bf16.msra.mxu0 0
      %4034 = vmatpush.bf16.msra.mxu0 0
      %4035 = vmatpush.bf16.msra.mxu0 0
      %4036 = vmatpush.bf16.msra.mxu0 0
      %4037 = vmatpush.bf16.msra.mxu0 0
      %4038 = vmatpush.bf16.msra.mxu0 %v4012
      %4039 = vmatmul.bf16.gmra.mxu0 %v4029
      %v4040 = vpop.f32.mrf.mxu0
      %v4041 = vadd.f32 0.0, %v4040
      %v4042 = vpop.f32.mrf.mxu0
      %v4043 = vadd.f32 0.0, %v4042
      %4044 = vdwg.mxu0
      %4045 = vmatpush.bf16.msra.mxu0 0
      %4046 = vmatpush.bf16.msra.mxu0 0
      %4047 = vmatpush.bf16.msra.mxu0 0
      %4048 = vmatpush.bf16.msra.mxu0 0
      %4049 = vmatpush.bf16.msra.mxu0 0
      %4050 = vmatpush.bf16.msra.mxu0 0
      %4051 = vmatpush.bf16.msra.mxu0 0
      %4052 = vmatpush.bf16.msra.mxu0 %v4013
      %4053 = vmatmul.bf16.gmra.mxu0 %v4029
      %v4054 = vpop.f32.mrf.mxu0
      %v4055 = vadd.f32 0.0, %v4054
      %v4056 = vpop.f32.mrf.mxu0
      %v4057 = vadd.f32 0.0, %v4056
      %4058 = vdwg.mxu0
      %4059 = vmatpush.bf16.msra.mxu0 0
      %4060 = vmatpush.bf16.msra.mxu0 0
      %4061 = vmatpush.bf16.msra.mxu0 0
      %4062 = vmatpush.bf16.msra.mxu0 0
      %4063 = vmatpush.bf16.msra.mxu0 0
      %4064 = vmatpush.bf16.msra.mxu0 0
      %4065 = vmatpush.bf16.msra.mxu0 0
      %4066 = vmatpush.bf16.msra.mxu0 %v4014
      %4067 = vmatmul.bf16.gmra.mxu0 %v4029
      %v4068 = vpop.f32.mrf.mxu0
      %v4069 = vadd.f32 0.0, %v4068
      %v4070 = vpop.f32.mrf.mxu0
      %v4071 = vadd.f32 0.0, %v4070
      %4072 = vdwg.mxu0
      %4073 = vmatpush.bf16.msra.mxu0 0
      %4074 = vmatpush.bf16.msra.mxu0 0
      %4075 = vmatpush.bf16.msra.mxu0 0
      %4076 = vmatpush.bf16.msra.mxu0 0
      %4077 = vmatpush.bf16.msra.mxu0 0
      %4078 = vmatpush.bf16.msra.mxu0 0
      %4079 = vmatpush.bf16.msra.mxu0 0
      %4080 = vmatpush.bf16.msra.mxu0 %v4015
      %4081 = vmatmul.bf16.gmra.mxu0 %v4029
      %v4082 = vpop.f32.mrf.mxu0
      %v4083 = vadd.f32 0.0, %v4082
      %v4084 = vpop.f32.mrf.mxu0
      %v4085 = vadd.f32 0.0, %v4084
      %4086 = vdwg.mxu0
      %4087 = vmatpush.bf16.msra.mxu0 0
      %4088 = vmatpush.bf16.msra.mxu0 0
      %4089 = vmatpush.bf16.msra.mxu0 0
      %4090 = vmatpush.bf16.msra.mxu0 0
      %4091 = vmatpush.bf16.msra.mxu0 0
      %4092 = vmatpush.bf16.msra.mxu0 0
      %4093 = vmatpush.bf16.msra.mxu0 0
      %4094 = vmatpush.bf16.msra.mxu0 %v4016
      %4095 = vmatmul.bf16.gmra.mxu0 %v4029
      %v4096 = vpop.f32.mrf.mxu0
      %v4097 = vadd.f32 0.0, %v4096
      %v4098 = vpop.f32.mrf.mxu0
      %v4099 = vadd.f32 0.0, %v4098
      %4100 = vdwg.mxu0
      %4101 = vmatpush.bf16.msra.mxu0 0
      %4102 = vmatpush.bf16.msra.mxu0 0
      %4103 = vmatpush.bf16.msra.mxu0 0
      %4104 = vmatpush.bf16.msra.mxu0 0
      %4105 = vmatpush.bf16.msra.mxu0 0
      %4106 = vmatpush.bf16.msra.mxu0 0
      %4107 = vmatpush.bf16.msra.mxu0 0
      %4108 = vmatpush.bf16.msra.mxu0 %v4017
      %4109 = vmatmul.bf16.gmra.mxu0 %v4029
      %v4110 = vpop.f32.mrf.mxu0
      %v4111 = vadd.f32 0.0, %v4110
      %v4112 = vpop.f32.mrf.mxu0
      %v4113 = vadd.f32 0.0, %v4112
      %4114 = vdwg.mxu0
      %4115 = vmatpush.bf16.msra.mxu0 0
      %4116 = vmatpush.bf16.msra.mxu0 0
      %4117 = vmatpush.bf16.msra.mxu0 0
      %4118 = vmatpush.bf16.msra.mxu0 0
      %4119 = vmatpush.bf16.msra.mxu0 0
      %4120 = vmatpush.bf16.msra.mxu0 0
      %4121 = vmatpush.bf16.msra.mxu0 0
      %4122 = vmatpush.bf16.msra.mxu0 %v4018
      %4123 = vmatmul.bf16.gmra.mxu0 %v4029
      %v4124 = vpop.f32.mrf.mxu0
      %v4125 = vadd.f32 0.0, %v4124
      %v4126 = vpop.f32.mrf.mxu0
      %v4127 = vadd.f32 0.0, %v4126
      %4128 = vdwg.mxu0
      %4129 = vmatpush.bf16.msra.mxu0 0
      %4130 = vmatpush.bf16.msra.mxu0 0
      %4131 = vmatpush.bf16.msra.mxu0 0
      %4132 = vmatpush.bf16.msra.mxu0 0
      %4133 = vmatpush.bf16.msra.mxu0 0
      %4134 = vmatpush.bf16.msra.mxu0 0
      %4135 = vmatpush.bf16.msra.mxu0 0
      %4136 = vmatpush.bf16.msra.mxu0 %v4019
      %4137 = vmatmul.bf16.gmra.mxu0 %v4029
      %v4138 = vpop.f32.mrf.mxu0
      %v4139 = vadd.f32 0.0, %v4138
      %v4140 = vpop.f32.mrf.mxu0
      %v4141 = vadd.f32 0.0, %v4140
      %4142 = vdwg.mxu0
      %v4143 = vadd.f32 %v3884, %v4041
      %v4144 = vadd.f32 %v3898, %v4055
      %v4145 = vadd.f32 %v3912, %v4069
      %v4146 = vadd.f32 %v3926, %v4083
      %v4147 = vadd.f32 %v3940, %v4097
      %v4148 = vadd.f32 %v3954, %v4111
      %v4149 = vadd.f32 %v3968, %v4125
      %v4150 = vadd.f32 %v3982, %v4139
      %v4151 = vadd.f32 %v3886, %v4043
      %v4152 = vadd.f32 %v3900, %v4057
      %v4153 = vadd.f32 %v3914, %v4071
      %v4154 = vadd.f32 %v3928, %v4085
      %v4155 = vadd.f32 %v3942, %v4099
      %v4156 = vadd.f32 %v3956, %v4113
      %v4157 = vadd.f32 %v3970, %v4127
      %v4158 = vadd.f32 %v3984, %v4141
      %v4159 = vmul.f32 %v4143, %v2440
      %v4160 = vmul.f32 %v4144, %v2441
      %v4161 = vmul.f32 %v4145, %v2442
      %v4162 = vmul.f32 %v4146, %v2443
      %v4163 = vmul.f32 %v4147, %v2444
      %v4164 = vmul.f32 %v4148, %v2445
      %v4165 = vmul.f32 %v4149, %v2446
      %v4166 = vmul.f32 %v4150, %v2447
      %v4167 = vmul.f32 %v4151, %v2440
      %v4168 = vmul.f32 %v4152, %v2441
      %v4169 = vmul.f32 %v4153, %v2442
      %v4170 = vmul.f32 %v4154, %v2443
      %v4171 = vmul.f32 %v4155, %v2444
      %v4172 = vmul.f32 %v4156, %v2445
      %v4173 = vmul.f32 %v4157, %v2446
      %v4174 = vmul.f32 %v4158, %v2447
      %v4175 = vadd.f32 %v3656, %v4159
      %v4176 = vadd.f32 %v3657, %v4160
      %v4177 = vadd.f32 %v3658, %v4161
      %v4178 = vadd.f32 %v3659, %v4162
      %v4179 = vadd.f32 %v3660, %v4163
      %v4180 = vadd.f32 %v3661, %v4164
      %v4181 = vadd.f32 %v3662, %v4165
      %v4182 = vadd.f32 %v3663, %v4166
      %v4183 = vadd.f32 %v3664, %v4167
      %v4184 = vadd.f32 %v3665, %v4168
      %v4185 = vadd.f32 %v3666, %v4169
      %v4186 = vadd.f32 %v3667, %v4170
      %v4187 = vadd.f32 %v3668, %v4171
      %v4188 = vadd.f32 %v3669, %v4172
      %v4189 = vadd.f32 %v3670, %v4173
      %v4190 = vadd.f32 %v3671, %v4174
      %v4191 = vmax.f32 %v4175, 0.0
      %v4192 = vmax.f32 %v4176, 0.0
      %v4193 = vmax.f32 %v4177, 0.0
      %v4194 = vmax.f32 %v4178, 0.0
      %v4195 = vmax.f32 %v4179, 0.0
      %v4196 = vmax.f32 %v4180, 0.0
      %v4197 = vmax.f32 %v4181, 0.0
      %v4198 = vmax.f32 %v4182, 0.0
      %v4199 = vmax.f32 %v4183, 0.0
      %v4200 = vmax.f32 %v4184, 0.0
      %v4201 = vmax.f32 %v4185, 0.0
      %v4202 = vmax.f32 %v4186, 0.0
      %v4203 = vmax.f32 %v4187, 0.0
      %v4204 = vmax.f32 %v4188, 0.0
      %v4205 = vmax.f32 %v4189, 0.0
      %v4206 = vmax.f32 %v4190, 0.0
      %4207 = vst [vmem:[%s298] sm:$0xff] %v4191
      %4208 = vst [vmem:[%s298 + $0x8] sm:$0xff] %v4192
      %4209 = vst [vmem:[%s298 + $0x10] sm:$0xff] %v4193
      %4210 = vst [vmem:[%s298 + $0x18] sm:$0xff] %v4194
      %4211 = vst [vmem:[%s298 + $0x20] sm:$0xff] %v4195
      %4212 = vst [vmem:[%s298 + $0x28] sm:$0xff] %v4196
      %4213 = vst [vmem:[%s298 + $0x30] sm:$0xff] %v4197
      %4214 = vst [vmem:[%s298 + $0x38] sm:$0xff] %v4198
      %4215 = vst [vmem:[%s298 + $0x40] sm:$0xff] %v4199
      %4216 = vst [vmem:[%s298 + $0x48] sm:$0xff] %v4200
      %4217 = vst [vmem:[%s298 + $0x50] sm:$0xff] %v4201
      %4218 = vst [vmem:[%s298 + $0x58] sm:$0xff] %v4202
      %4219 = vst [vmem:[%s298 + $0x60] sm:$0xff] %v4203
      %4220 = vst [vmem:[%s298 + $0x68] sm:$0xff] %v4204
      %4221 = vst [vmem:[%s298 + $0x70] sm:$0xff] %v4205
      %4222 = vst [vmem:[%s298 + $0x78] sm:$0xff] %v4206
      %p4223 = scmp.lt.s32.totalorder %s18, 1
      %s4224 = scalar_select %p4223, %s18, 1
      %s4225 = smul.addr %s4224, 16
      %s4226 = smul.addr %s4225, 8
      %s4227 = scalar_lea.vmem %s7, %s4226
      // Predicated region
      $region49: #{decoder_block_forward.1} parent=47 // pred_check
        %p4228 = pneg %p193
      $region50: #{decoder_block_forward.1} parent=47 // pred_check_branch
        %4230 = sbr.rel (%p4228) target = $region52
      $region51: #{decoder_block_forward.1} parent=47 // pred_region
        _
      $region52: #{decoder_block_forward.1} parent=47 // pred_fallthru
        _
    $region48: #{decoder_block_forward.1} parent=5 // pred_fallthru
      _
    %p4231 = scmp.le.s32.totalorder 2, %s13
    // Predicated region
    $region53: #{decoder_block_forward.1} parent=5 // pred_check
      %p4232 = pneg %p4231
    $region54: #{decoder_block_forward.1} parent=5 // pred_check_branch
      %4234 = sbr.rel (%p4232) target = $region56
    $region55: #{decoder_block_forward.1} parent=5 // pred_region
      %s4235 = ssub.s32 %s13, 2
      // Predicated region
      $region57: #{decoder_block_forward.1} parent=55 // pred_check
        %p4236 = pneg %p199
      $region58: #{decoder_block_forward.1} parent=55 // pred_check_branch
        %4238 = sbr.rel (%p4236) target = $region60
      $region59: #{decoder_block_forward.1} parent=55 // pred_region
        %p4239 = scmp.lt.s32.totalorder %s19, 1
        %s4240 = scalar_select %p4239, %s19, 1
        %s4241 = smul.addr %s4240, 16
        %s4242 = smul.addr %s4241, 8
        %s4243 = scalar_lea.vmem %s7, %s4242
      $region60: #{decoder_block_forward.1} parent=55 // pred_fallthru
        _
    $region56: #{decoder_block_forward.1} parent=5 // pred_fallthru
      _
  $region6: #{decoder_block_forward.1} parent=0 // loop_footer
    %s17 = sadd.s32 1, %s13
  $region7: #{decoder_block_forward.1} parent=0 // loop_footer_branch
    %12 = sbr.rel target = $region3
  $region8: #{decoder_block_forward.1} parent=0 // loop_exit
    _

</llo_original>
